<compile_context>
chip_gen: v7x
topology: tpu7x:2x2x1
jax: 0.10.0
libtpu: 0.0.40
codegen_flags: <defaults>
</compile_context>

<pallas_src>
import functools

import jax
import jax.numpy as jnp
from jax import lax
from jax.experimental import pallas as pl
from jax.experimental.pallas import tpu as pltpu

BN_EPS = 1e-5


def _round_up(x, m):
    return (x + m - 1) // m * m


def _vmem_limit_bytes():
    # Chip-aware scoped-VMEM budget: generous on v5e/v6e (128 MiB physical),
    # capped with headroom on v7x (64 MiB physical).
    try:
        phys = pltpu.get_tpu_info().vmem_capacity_bytes
        return int(min(phys - 8 * 1024 * 1024, 100 * 1024 * 1024))
    except Exception:
        return 64 * 1024 * 1024


# ---------------------------------------------------------------------------------
# Kernel 1: 3x3x3 conv (tap-accumulated matmuls) + per-(n, d) BN partial moments
# ---------------------------------------------------------------------------------
def _conv3x3x3_kernel(xp_ref, w_ref, conv_ref, mom_ref, acc_ref, *, HP, WP, W):
    # xp_ref:   [PR, Cin_pad]  bf16 : one padded depth plane, rows = (H+2)*(W+2)+guard
    # w_ref:    [27, Cin_pad, Cout_pad] bf16 (VMEM resident; constant index map)
    # conv_ref: [HP, Cout_pad] bf16 : conv output in padded-row layout (written at finalize)
    # mom_ref:  [2, Cout_pad]  f32  : row 0 = sum, row 1 = sum of squares (real rows only)
    # acc_ref:  [HP, Cout_pad] f32  : VMEM accumulator, persists across the kd axis
    kd = pl.program_id(2)
    nk = pl.num_programs(2)

    # Sum the 9 in-plane taps as one chained expression -> a single accumulator
    # read-modify-write per kd step (vst-slot friendly, MRB-friendly on v7x).
    s = None
    for j in range(9):                      # static unroll over (kh, kw) taps
        kh, kw = divmod(j, 3)
        r0 = kh * WP + kw                   # row offset of this tap's contiguous slab
        lhs = xp_ref[pl.ds(r0, HP), :]      # [HP, Cin_pad] bf16
        d = jnp.dot(lhs, w_ref[kd * 9 + j], preferred_element_type=jnp.float32)
        s = d if s is None else s + d

    @pl.when(kd == 0)
    def _init():
        acc_ref[...] = s

    @pl.when(jnp.logical_and(kd > 0, kd < nk - 1))
    def _accumulate():
        acc_ref[...] += s

    @pl.when(kd == nk - 1)
    def _finalize():
        acc = acc_ref[...] + s              # f32, full conv result for this (n, d)
        rows = lax.broadcasted_iota(jnp.int32, (HP, 1), 0)
        mask = ((rows % WP) < W).astype(jnp.float32)   # 0.0 on width-halo junk rows
        masked = acc * mask
        mom_ref[...] = jnp.concatenate(
            [jnp.sum(masked, axis=0, keepdims=True),
             jnp.sum(masked * acc, axis=0, keepdims=True)], axis=0)
        conv_ref[...] = acc.astype(conv_ref.dtype)     # bf16 intermediate to HBM


def _conv3x3x3(xp, w_taps, n, d, hp, wp, w, cpad, pr, vmem_limit):
    kern = functools.partial(_conv3x3x3_kernel, HP=hp, WP=wp, W=w)
    return pl.pallas_call(
        kern,
        out_shape=(jax.ShapeDtypeStruct((n, d, hp, cpad), jnp.bfloat16),
                   jax.ShapeDtypeStruct((n, d, 2, cpad), jnp.float32)),
        grid_spec=pltpu.PrefetchScalarGridSpec(
            num_scalar_prefetch=0,
            grid=(n, d, 3),
            in_specs=[
                pl.BlockSpec((None, None, pr, cpad),
                             lambda ni, di, kd: (ni, di + kd, 0, 0)),
                pl.BlockSpec((27, cpad, cpad), lambda ni, di, kd: (0, 0, 0)),
            ],
            out_specs=(
                pl.BlockSpec((None, None, hp, cpad),
                             lambda ni, di, kd: (ni, di, 0, 0)),
                pl.BlockSpec((None, None, 2, cpad),
                             lambda ni, di, kd: (ni, di, 0, 0)),
            ),
            scratch_shapes=[pltpu.VMEM((hp, cpad), jnp.float32)],
        ),
        compiler_params=pltpu.CompilerParams(
            dimension_semantics=("parallel", "parallel", "arbitrary"),
            vmem_limit_bytes=vmem_limit),
    )(xp, w_taps)


# ---------------------------------------------------------------------------------
# Kernel 2a: BN apply + ReLU, fused repack into the stage-2 padded layout
#            out[N, D+2, PR, Cpad] bf16 with all halo / guard rows zeroed.
# ---------------------------------------------------------------------------------
def _bn_relu_repack_kernel(conv_ref, scale_ref, shift_ref, out_ref, *, HP, WP, W, D):
    dpi = pl.program_id(1)                  # padded-plane index 0..D+1
    out_ref[...] = jnp.zeros_like(out_ref)  # zero halos / guard rows (and halo planes)

    @pl.when(jnp.logical_and(dpi >= 1, dpi <= D))
    def _interior():
        y = conv_ref[...].astype(jnp.float32) * scale_ref[...] + shift_ref[...]
        y = jnp.maximum(y, 0.0)
        rows = lax.broadcasted_iota(jnp.int32, (HP, 1), 0)
        y = jnp.where((rows % WP) < W, y, 0.0)   # junk rows -> width halos, must be 0
        # Output row (h_out+1)*WP + (w_out+1) = conv row + (WP + 1).
        out_ref[pl.ds(WP + 1, HP), :] = y.astype(out_ref.dtype)


def _bn_relu_repack(conv, scale, shift, n, d, hp, wp, w, cpad, pr, vmem_limit):
    kern = functools.partial(_bn_relu_repack_kernel, HP=hp, WP=wp, W=w, D=d)
    conv_spec = pl.BlockSpec(
        (None, None, hp, cpad),
        lambda ni, dpi: (ni, jnp.clip(dpi - 1, 0, d - 1), 0, 0))
    vec_spec = pl.BlockSpec((1, cpad), lambda ni, dpi: (0, 0))
    out_spec = pl.BlockSpec((None, None, pr, cpad), lambda ni, dpi: (ni, dpi, 0, 0))
    return pl.pallas_call(
        kern,
        out_shape=jax.ShapeDtypeStruct((n, d + 2, pr, cpad), jnp.bfloat16),
        grid_spec=pltpu.PrefetchScalarGridSpec(
            num_scalar_prefetch=0,
            grid=(n, d + 2),
            in_specs=[conv_spec, vec_spec, vec_spec],
            out_specs=out_spec,
        ),
        compiler_params=pltpu.CompilerParams(
            dimension_semantics=("parallel", "parallel"),
            vmem_limit_bytes=vmem_limit),
    )(conv, scale, shift)


# ---------------------------------------------------------------------------------
# Kernel 2b: final BN apply + identity residual + ReLU
# ---------------------------------------------------------------------------------
def _bn_relu_residual_kernel(conv_ref, scale_ref, shift_ref, res_ref, out_ref):
    y = conv_ref[...].astype(jnp.float32) * scale_ref[...] + shift_ref[...]
    y = y + res_ref[...].astype(jnp.float32)
    out_ref[...] = jnp.maximum(y, 0.0).astype(out_ref.dtype)


def _bn_relu_residual(conv, scale, shift, res, vmem_limit):
    n, d, hp, cpad = conv.shape
    tile = pl.BlockSpec((None, None, hp, cpad), lambda ni, di: (ni, di, 0, 0))
    vec = pl.BlockSpec((1, cpad), lambda ni, di: (0, 0))
    return pl.pallas_call(
        _bn_relu_residual_kernel,
        out_shape=jax.ShapeDtypeStruct((n, d, hp, cpad), jnp.float32),
        grid_spec=pltpu.PrefetchScalarGridSpec(
            num_scalar_prefetch=0,
            grid=(n, d),
            in_specs=[tile, vec, vec, tile],
            out_specs=tile,
        ),
        compiler_params=pltpu.CompilerParams(
            dimension_semantics=("parallel", "parallel"),
            vmem_limit_bytes=vmem_limit),
    )(conv, scale, shift, res)


# ---------------------------------------------------------------------------------
# Glue (plain JAX): layout / padding / global BN statistics
# ---------------------------------------------------------------------------------
def _weight_to_taps(w_oidhw, cpad):
    # [Cout, Cin, kd, kh, kw] -> [27, Cin_pad, Cout_pad] bf16, tap index = kd*9+kh*3+kw
    cout, cin = w_oidhw.shape[:2]
    wt = jnp.transpose(w_oidhw, (2, 3, 4, 1, 0)).reshape(27, cin, cout)
    wt = jnp.pad(wt, ((0, 0), (0, cpad - cin), (0, cpad - cout)))
    return wt.astype(jnp.bfloat16)


def _bn_scale_shift(mom, gamma, beta, count, cpad):
    # mom: [N, D, 2, Cpad] per-plane partial sums -> global training-mode BN params.
    s = jnp.sum(mom[:, :, 0, :], axis=(0, 1))
    sq = jnp.sum(mom[:, :, 1, :], axis=(0, 1))
    mean = s / count
    var = jnp.maximum(sq / count - mean * mean, 0.0)          # biased variance
    gamma = jnp.pad(gamma, (0, cpad - gamma.shape[0]))
    beta = jnp.pad(beta, (0, cpad - beta.shape[0]))
    scale = gamma * lax.rsqrt(var + BN_EPS)
    shift = beta - mean * scale
    return scale.reshape(1, cpad), shift.reshape(1, cpad)


def basic_block_forward(x_ncdhw, params):
    """BasicBlock forward (stride=1, downsample=None). x: [N, C, D, H, W] float32."""
    n, c_in, d, h, w = x_ncdhw.shape
    planes = params["w1"].shape[0]
    assert c_in == planes, "identity residual requires in_planes == planes"
    cpad = _round_up(max(c_in, planes), 128)       # lane-dense channel padding
    wp = w + 2
    hp = h * wp                                    # conv-output rows per plane
    pr = _round_up((h + 2) * wp + 2, 8)            # padded-plane rows (>=2 guard, aligned)
    count = n * d * h * w                          # BN sample count (real voxels only)
    vmem_limit = _vmem_limit_bytes()

    x = jnp.transpose(x_ncdhw, (0, 2, 3, 4, 1))    # NDHWC
    xc = jnp.pad(x, ((0, 0), (0, 0), (0, 0), (0, 0), (0, cpad - c_in)))

    # Stage-1 conv input: padded layout [N, D+2, PR, Cpad] bf16 (built once in XLA).
    xp1 = jnp.pad(xc, ((0, 0), (1, 1), (1, 1), (1, 1), (0, 0)))
    xp1 = xp1.reshape(n, d + 2, (h + 2) * wp, cpad)
    xp1 = jnp.pad(xp1, ((0, 0), (0, 0), (0, pr - (h + 2) * wp), (0, 0)))
    xp1 = xp1.astype(jnp.bfloat16)

    # Residual pre-built once in the conv-output padded-row layout, bf16.
    res = jnp.pad(xc, ((0, 0), (0, 0), (0, 0), (0, 2), (0, 0)))
    res = res.reshape(n, d, hp, cpad).astype(jnp.bfloat16)

    # ---- Stage 1: conv1 -> bn1 -> relu, repacked straight into stage-2 layout -----
    conv1, mom1 = _conv3x3x3(xp1, _weight_to_taps(params["w1"], cpad),
                             n, d, hp, wp, w, cpad, pr, vmem_limit)
    scale1, shift1 = _bn_scale_shift(mom1, params["g1"], params["b1"], count, cpad)
    xp2 = _bn_relu_repack(conv1, scale1, shift1, n, d, hp, wp, w, cpad, pr, vmem_limit)

    # ---- Stage 2: conv2 -> bn2 -> (+ identity residual) -> relu -------------------
    conv2, mom2 = _conv3x3x3(xp2, _weight_to_taps(params["w2"], cpad),
                             n, d, hp, wp, w, cpad, pr, vmem_limit)
    scale2, shift2 = _bn_scale_shift(mom2, params["g2"], params["b2"], count, cpad)
    out = _bn_relu_residual(conv2, scale2, shift2, res, vmem_limit)

    out = out.reshape(n, d, h, wp, cpad)[:, :, :, :w, :planes]
    return jnp.transpose(out, (0, 4, 1, 2, 3))     # back to NCDHW


# ---------------------------------------------------------------------------------
# Pure-JAX reference (for correctness check).  Conv operands rounded to bf16 to mirror
# the kernel's MXU operand precision; accumulation / BN / residual stay f32.
# ---------------------------------------------------------------------------------
def _ref_conv3d(x, w):
    return lax.conv_general_dilated(
        x, w, window_strides=(1, 1, 1), padding=[(1, 1)] * 3,
        dimension_numbers=("NCDHW", "OIDHW", "NCDHW"),
        precision=lax.Precision.HIGHEST)


def _ref_bn_train(x, gamma, beta):
    mean = jnp.mean(x, axis=(0, 2, 3, 4), keepdims=True)
    var = jnp.mean((x - mean) ** 2, axis=(0, 2, 3, 4), keepdims=True)
    g = gamma.reshape(1, -1, 1, 1, 1)
    b = beta.reshape(1, -1, 1, 1, 1)
    return (x - mean) * lax.rsqrt(var + BN_EPS) * g + b


def _bf16(a):
    return a.astype(jnp.bfloat16).astype(jnp.float32)


def reference_forward(x, params):
    out = _ref_conv3d(_bf16(x), _bf16(params["w1"]))
    out = jax.nn.relu(_ref_bn_train(out, params["g1"], params["b1"]))
    out = _ref_conv3d(_bf16(out), _bf16(params["w2"]))
    out = _ref_bn_train(out, params["g2"], params["b2"])
    return jax.nn.relu(out + x)


# ---------------------------------------------------------------------------------
if __name__ == "__main__":
    # Small shapes: batch=2, in_planes=planes=4, spatial=8^3, stride=1.
    N, C, D, H, W = 2, 4, 8, 8, 8
    planes = C

    key = jax.random.PRNGKey(0)
    kx, kw1, kw2, kg1, kb1, kg2, kb2 = jax.random.split(key, 7)

    x = jax.random.normal(kx, (N, C, D, H, W), jnp.float32)
    params = {
        "w1": 0.1 * jax.random.normal(kw1, (planes, C, 3, 3, 3), jnp.float32),
        "w2": 0.1 * jax.random.normal(kw2, (planes, planes, 3, 3, 3), jnp.float32),
        "g1": 1.0 + 0.1 * jax.random.normal(kg1, (planes,), jnp.float32),
        "b1": 0.1 * jax.random.normal(kb1, (planes,), jnp.float32),
        "g2": 1.0 + 0.1 * jax.random.normal(kg2, (planes,), jnp.float32),
        "b2": 0.1 * jax.random.normal(kb2, (planes,), jnp.float32),
    }

    out = jax.block_until_ready(jax.jit(basic_block_forward)(x, params))
    ref = jax.block_until_ready(jax.jit(reference_forward)(x, params))

    assert out.shape == (N, planes, D, H, W)
    max_diff = float(jnp.max(jnp.abs(out - ref)))
    assert jnp.allclose(out, ref, atol=3e-2, rtol=3e-2), f"max abs diff {max_diff}"
    print("KERNEL_OK")
</pallas_src>

<mosaic_0001>
module attributes {stable_mosaic.version = 11 : i64} {
  func.func @_conv3x3x3_kernel(%arg0: i32, %arg1: i32, %arg2: i32, %arg3: memref<1x1x104x128xbf16, #tpu.memory_space<vmem>>, %arg4: memref<27x128x128xbf16, #tpu.memory_space<vmem>>, %arg5: memref<1x1x80x128xbf16, #tpu.memory_space<vmem>>, %arg6: memref<1x1x2x128xf32, #tpu.memory_space<vmem>>, %arg7: memref<80x128xf32, #tpu.memory_space<vmem>>) attributes {dimension_semantics = [#tpu.dimension_semantics<parallel>, #tpu.dimension_semantics<parallel>, #tpu.dimension_semantics<arbitrary>], iteration_bounds = array<i64: 2, 8, 3>, scalar_prefetch = 0 : i64, scratch_operands = 1 : i64, tpu.core_type = #tpu.core_type<tc>, window_params = [{transform_indices = @transform_0, window_bounds = array<i64: 1, 1, 104, 128>}, {pipeline_mode = #tpu.pipeline_mode<synchronous>, transform_indices = @transform_1, window_bounds = array<i64: 27, 128, 128>}, {transform_indices = @transform_2, window_bounds = array<i64: 1, 1, 80, 128>}, {transform_indices = @transform_3, window_bounds = array<i64: 1, 1, 2, 128>}]} {
    %c0 = arith.constant 0 : index
    %c0_0 = arith.constant 0 : index
    %c0_1 = arith.constant 0 : index
    %c0_2 = arith.constant 0 : index
    %0 = vector.load %arg3[%c0, %c0_0, %c0_1, %c0_2] : memref<1x1x104x128xbf16, #tpu.memory_space<vmem>>, vector<1x1x80x128xbf16>
    %1 = vector.shape_cast %0 : vector<1x1x80x128xbf16> to vector<80x128xbf16>
    %c9_i32 = arith.constant 9 : i32
    %2 = arith.muli %arg2, %c9_i32 : i32
    %c0_i32 = arith.constant 0 : i32
    %3 = arith.addi %2, %c0_i32 : i32
    %4 = arith.index_cast %3 : i32 to index
    %c0_3 = arith.constant 0 : index
    %c0_4 = arith.constant 0 : index
    %5 = vector.load %arg4[%4, %c0_3, %c0_4] : memref<27x128x128xbf16, #tpu.memory_space<vmem>>, vector<1x128x128xbf16>
    %6 = vector.shape_cast %5 : vector<1x128x128xbf16> to vector<128x128xbf16>
    %cst = arith.constant dense<0.000000e+00> : vector<80x128xf32>
    %7 = tpu.matmul %1, %6, %cst {dimension_numbers = #tpu.dot_dimension_numbers<[1], [0], [0], [1], [0, 0, 1, 1], [], []>} : vector<80x128xbf16>, vector<128x128xbf16>, vector<80x128xf32> -> vector<80x128xf32>
    %c0_5 = arith.constant 0 : index
    %c0_6 = arith.constant 0 : index
    %c1 = arith.constant 1 : index
    %c0_7 = arith.constant 0 : index
    %8 = vector.load %arg3[%c0_5, %c0_6, %c1, %c0_7] : memref<1x1x104x128xbf16, #tpu.memory_space<vmem>>, vector<1x1x80x128xbf16>
    %9 = vector.shape_cast %8 : vector<1x1x80x128xbf16> to vector<80x128xbf16>
    %c9_i32_8 = arith.constant 9 : i32
    %10 = arith.muli %arg2, %c9_i32_8 : i32
    %c1_i32 = arith.constant 1 : i32
    %11 = arith.addi %10, %c1_i32 : i32
    %12 = arith.index_cast %11 : i32 to index
    %c0_9 = arith.constant 0 : index
    %c0_10 = arith.constant 0 : index
    %13 = vector.load %arg4[%12, %c0_9, %c0_10] : memref<27x128x128xbf16, #tpu.memory_space<vmem>>, vector<1x128x128xbf16>
    %14 = vector.shape_cast %13 : vector<1x128x128xbf16> to vector<128x128xbf16>
    %cst_11 = arith.constant dense<0.000000e+00> : vector<80x128xf32>
    %15 = tpu.matmul %9, %14, %cst_11 {dimension_numbers = #tpu.dot_dimension_numbers<[1], [0], [0], [1], [0, 0, 1, 1], [], []>} : vector<80x128xbf16>, vector<128x128xbf16>, vector<80x128xf32> -> vector<80x128xf32>
    %16 = arith.addf %7, %15 : vector<80x128xf32>
    %c0_12 = arith.constant 0 : index
    %c0_13 = arith.constant 0 : index
    %c2 = arith.constant 2 : index
    %c0_14 = arith.constant 0 : index
    %17 = vector.load %arg3[%c0_12, %c0_13, %c2, %c0_14] : memref<1x1x104x128xbf16, #tpu.memory_space<vmem>>, vector<1x1x80x128xbf16>
    %18 = vector.shape_cast %17 : vector<1x1x80x128xbf16> to vector<80x128xbf16>
    %c9_i32_15 = arith.constant 9 : i32
    %19 = arith.muli %arg2, %c9_i32_15 : i32
    %c2_i32 = arith.constant 2 : i32
    %20 = arith.addi %19, %c2_i32 : i32
    %21 = arith.index_cast %20 : i32 to index
    %c0_16 = arith.constant 0 : index
    %c0_17 = arith.constant 0 : index
    %22 = vector.load %arg4[%21, %c0_16, %c0_17] : memref<27x128x128xbf16, #tpu.memory_space<vmem>>, vector<1x128x128xbf16>
    %23 = vector.shape_cast %22 : vector<1x128x128xbf16> to vector<128x128xbf16>
    %cst_18 = arith.constant dense<0.000000e+00> : vector<80x128xf32>
    %24 = tpu.matmul %18, %23, %cst_18 {dimension_numbers = #tpu.dot_dimension_numbers<[1], [0], [0], [1], [0, 0, 1, 1], [], []>} : vector<80x128xbf16>, vector<128x128xbf16>, vector<80x128xf32> -> vector<80x128xf32>
    %25 = arith.addf %16, %24 : vector<80x128xf32>
    %c0_19 = arith.constant 0 : index
    %c0_20 = arith.constant 0 : index
    %c10 = arith.constant 10 : index
    %c0_21 = arith.constant 0 : index
    %26 = vector.load %arg3[%c0_19, %c0_20, %c10, %c0_21] : memref<1x1x104x128xbf16, #tpu.memory_space<vmem>>, vector<1x1x80x128xbf16>
    %27 = vector.shape_cast %26 : vector<1x1x80x128xbf16> to vector<80x128xbf16>
    %c9_i32_22 = arith.constant 9 : i32
    %28 = arith.muli %arg2, %c9_i32_22 : i32
    %c3_i32 = arith.constant 3 : i32
    %29 = arith.addi %28, %c3_i32 : i32
    %30 = arith.index_cast %29 : i32 to index
    %c0_23 = arith.constant 0 : index
    %c0_24 = arith.constant 0 : index
    %31 = vector.load %arg4[%30, %c0_23, %c0_24] : memref<27x128x128xbf16, #tpu.memory_space<vmem>>, vector<1x128x128xbf16>
    %32 = vector.shape_cast %31 : vector<1x128x128xbf16> to vector<128x128xbf16>
    %cst_25 = arith.constant dense<0.000000e+00> : vector<80x128xf32>
    %33 = tpu.matmul %27, %32, %cst_25 {dimension_numbers = #tpu.dot_dimension_numbers<[1], [0], [0], [1], [0, 0, 1, 1], [], []>} : vector<80x128xbf16>, vector<128x128xbf16>, vector<80x128xf32> -> vector<80x128xf32>
    %34 = arith.addf %25, %33 : vector<80x128xf32>
    %c0_26 = arith.constant 0 : index
    %c0_27 = arith.constant 0 : index
    %c11 = arith.constant 11 : index
    %c0_28 = arith.constant 0 : index
    %35 = vector.load %arg3[%c0_26, %c0_27, %c11, %c0_28] : memref<1x1x104x128xbf16, #tpu.memory_space<vmem>>, vector<1x1x80x128xbf16>
    %36 = vector.shape_cast %35 : vector<1x1x80x128xbf16> to vector<80x128xbf16>
    %c9_i32_29 = arith.constant 9 : i32
    %37 = arith.muli %arg2, %c9_i32_29 : i32
    %c4_i32 = arith.constant 4 : i32
    %38 = arith.addi %37, %c4_i32 : i32
    %39 = arith.index_cast %38 : i32 to index
    %c0_30 = arith.constant 0 : index
    %c0_31 = arith.constant 0 : index
    %40 = vector.load %arg4[%39, %c0_30, %c0_31] : memref<27x128x128xbf16, #tpu.memory_space<vmem>>, vector<1x128x128xbf16>
    %41 = vector.shape_cast %40 : vector<1x128x128xbf16> to vector<128x128xbf16>
    %cst_32 = arith.constant dense<0.000000e+00> : vector<80x128xf32>
    %42 = tpu.matmul %36, %41, %cst_32 {dimension_numbers = #tpu.dot_dimension_numbers<[1], [0], [0], [1], [0, 0, 1, 1], [], []>} : vector<80x128xbf16>, vector<128x128xbf16>, vector<80x128xf32> -> vector<80x128xf32>
    %43 = arith.addf %34, %42 : vector<80x128xf32>
    %c0_33 = arith.constant 0 : index
    %c0_34 = arith.constant 0 : index
    %c12 = arith.constant 12 : index
    %c0_35 = arith.constant 0 : index
    %44 = vector.load %arg3[%c0_33, %c0_34, %c12, %c0_35] : memref<1x1x104x128xbf16, #tpu.memory_space<vmem>>, vector<1x1x80x128xbf16>
    %45 = vector.shape_cast %44 : vector<1x1x80x128xbf16> to vector<80x128xbf16>
    %c9_i32_36 = arith.constant 9 : i32
    %46 = arith.muli %arg2, %c9_i32_36 : i32
    %c5_i32 = arith.constant 5 : i32
    %47 = arith.addi %46, %c5_i32 : i32
    %48 = arith.index_cast %47 : i32 to index
    %c0_37 = arith.constant 0 : index
    %c0_38 = arith.constant 0 : index
    %49 = vector.load %arg4[%48, %c0_37, %c0_38] : memref<27x128x128xbf16, #tpu.memory_space<vmem>>, vector<1x128x128xbf16>
    %50 = vector.shape_cast %49 : vector<1x128x128xbf16> to vector<128x128xbf16>
    %cst_39 = arith.constant dense<0.000000e+00> : vector<80x128xf32>
    %51 = tpu.matmul %45, %50, %cst_39 {dimension_numbers = #tpu.dot_dimension_numbers<[1], [0], [0], [1], [0, 0, 1, 1], [], []>} : vector<80x128xbf16>, vector<128x128xbf16>, vector<80x128xf32> -> vector<80x128xf32>
    %52 = arith.addf %43, %51 : vector<80x128xf32>
    %c0_40 = arith.constant 0 : index
    %c0_41 = arith.constant 0 : index
    %c20 = arith.constant 20 : index
    %c0_42 = arith.constant 0 : index
    %53 = vector.load %arg3[%c0_40, %c0_41, %c20, %c0_42] : memref<1x1x104x128xbf16, #tpu.memory_space<vmem>>, vector<1x1x80x128xbf16>
    %54 = vector.shape_cast %53 : vector<1x1x80x128xbf16> to vector<80x128xbf16>
    %c9_i32_43 = arith.constant 9 : i32
    %55 = arith.muli %arg2, %c9_i32_43 : i32
    %c6_i32 = arith.constant 6 : i32
    %56 = arith.addi %55, %c6_i32 : i32
    %57 = arith.index_cast %56 : i32 to index
    %c0_44 = arith.constant 0 : index
    %c0_45 = arith.constant 0 : index
    %58 = vector.load %arg4[%57, %c0_44, %c0_45] : memref<27x128x128xbf16, #tpu.memory_space<vmem>>, vector<1x128x128xbf16>
    %59 = vector.shape_cast %58 : vector<1x128x128xbf16> to vector<128x128xbf16>
    %cst_46 = arith.constant dense<0.000000e+00> : vector<80x128xf32>
    %60 = tpu.matmul %54, %59, %cst_46 {dimension_numbers = #tpu.dot_dimension_numbers<[1], [0], [0], [1], [0, 0, 1, 1], [], []>} : vector<80x128xbf16>, vector<128x128xbf16>, vector<80x128xf32> -> vector<80x128xf32>
    %61 = arith.addf %52, %60 : vector<80x128xf32>
    %c0_47 = arith.constant 0 : index
    %c0_48 = arith.constant 0 : index
    %c21 = arith.constant 21 : index
    %c0_49 = arith.constant 0 : index
    %62 = vector.load %arg3[%c0_47, %c0_48, %c21, %c0_49] : memref<1x1x104x128xbf16, #tpu.memory_space<vmem>>, vector<1x1x80x128xbf16>
    %63 = vector.shape_cast %62 : vector<1x1x80x128xbf16> to vector<80x128xbf16>
    %c9_i32_50 = arith.constant 9 : i32
    %64 = arith.muli %arg2, %c9_i32_50 : i32
    %c7_i32 = arith.constant 7 : i32
    %65 = arith.addi %64, %c7_i32 : i32
    %66 = arith.index_cast %65 : i32 to index
    %c0_51 = arith.constant 0 : index
    %c0_52 = arith.constant 0 : index
    %67 = vector.load %arg4[%66, %c0_51, %c0_52] : memref<27x128x128xbf16, #tpu.memory_space<vmem>>, vector<1x128x128xbf16>
    %68 = vector.shape_cast %67 : vector<1x128x128xbf16> to vector<128x128xbf16>
    %cst_53 = arith.constant dense<0.000000e+00> : vector<80x128xf32>
    %69 = tpu.matmul %63, %68, %cst_53 {dimension_numbers = #tpu.dot_dimension_numbers<[1], [0], [0], [1], [0, 0, 1, 1], [], []>} : vector<80x128xbf16>, vector<128x128xbf16>, vector<80x128xf32> -> vector<80x128xf32>
    %70 = arith.addf %61, %69 : vector<80x128xf32>
    %c0_54 = arith.constant 0 : index
    %c0_55 = arith.constant 0 : index
    %c22 = arith.constant 22 : index
    %c0_56 = arith.constant 0 : index
    %71 = vector.load %arg3[%c0_54, %c0_55, %c22, %c0_56] : memref<1x1x104x128xbf16, #tpu.memory_space<vmem>>, vector<1x1x80x128xbf16>
    %72 = vector.shape_cast %71 : vector<1x1x80x128xbf16> to vector<80x128xbf16>
    %c9_i32_57 = arith.constant 9 : i32
    %73 = arith.muli %arg2, %c9_i32_57 : i32
    %c8_i32 = arith.constant 8 : i32
    %74 = arith.addi %73, %c8_i32 : i32
    %75 = arith.index_cast %74 : i32 to index
    %c0_58 = arith.constant 0 : index
    %c0_59 = arith.constant 0 : index
    %76 = vector.load %arg4[%75, %c0_58, %c0_59] : memref<27x128x128xbf16, #tpu.memory_space<vmem>>, vector<1x128x128xbf16>
    %77 = vector.shape_cast %76 : vector<1x128x128xbf16> to vector<128x128xbf16>
    %cst_60 = arith.constant dense<0.000000e+00> : vector<80x128xf32>
    %78 = tpu.matmul %72, %77, %cst_60 {dimension_numbers = #tpu.dot_dimension_numbers<[1], [0], [0], [1], [0, 0, 1, 1], [], []>} : vector<80x128xbf16>, vector<128x128xbf16>, vector<80x128xf32> -> vector<80x128xf32>
    %79 = arith.addf %70, %78 : vector<80x128xf32>
    %c0_i32_61 = arith.constant 0 : i32
    %80 = arith.cmpi eq, %arg2, %c0_i32_61 : i32
    %81 = arith.extui %80 : i1 to i32
    %c0_i32_62 = arith.constant 0 : i32
    %82 = arith.cmpi ne, %81, %c0_i32_62 : i32
    scf.if %82 {
      %c0_68 = arith.constant 0 : index
      %c0_69 = arith.constant 0 : index
      %91 = vector.load %arg7[%c0_68, %c0_69] : memref<80x128xf32, #tpu.memory_space<vmem>>, vector<80x128xf32>
      tpu.vector_store %arg7[%c0_68, %c0_69], %79 {strides = array<i32>} : memref<80x128xf32, #tpu.memory_space<vmem>>, vector<80x128xf32>,
    } else {
    }
    %c0_i32_63 = arith.constant 0 : i32
    %83 = arith.cmpi sgt, %arg2, %c0_i32_63 : i32
    %c2_i32_64 = arith.constant 2 : i32
    %84 = arith.cmpi slt, %arg2, %c2_i32_64 : i32
    %85 = arith.andi %83, %84 : i1
    %86 = arith.extui %85 : i1 to i32
    %c0_i32_65 = arith.constant 0 : i32
    %87 = arith.cmpi ne, %86, %c0_i32_65 : i32
    scf.if %87 {
      %c0_68 = arith.constant 0 : index
      %c0_69 = arith.constant 0 : index
      %91 = vector.load %arg7[%c0_68, %c0_69] : memref<80x128xf32, #tpu.memory_space<vmem>>, vector<80x128xf32>
      %92 = arith.addf %91, %79 : vector<80x128xf32>
      %c0_70 = arith.constant 0 : index
      %c0_71 = arith.constant 0 : index
      %93 = vector.load %arg7[%c0_70, %c0_71] : memref<80x128xf32, #tpu.memory_space<vmem>>, vector<80x128xf32>
      tpu.vector_store %arg7[%c0_70, %c0_71], %92 {strides = array<i32>} : memref<80x128xf32, #tpu.memory_space<vmem>>, vector<80x128xf32>,
    } else {
    }
    %c2_i32_66 = arith.constant 2 : i32
    %88 = arith.cmpi eq, %arg2, %c2_i32_66 : i32
    %89 = arith.extui %88 : i1 to i32
    %c0_i32_67 = arith.constant 0 : i32
    %90 = arith.cmpi ne, %89, %c0_i32_67 : i32
    scf.if %90 {
      %c0_68 = arith.constant 0 : index
      %c0_69 = arith.constant 0 : index
      %91 = vector.load %arg7[%c0_68, %c0_69] : memref<80x128xf32, #tpu.memory_space<vmem>>, vector<80x128xf32>
      %92 = arith.addf %91, %79 : vector<80x128xf32>
      %93 = tpu.iota {dimensions = array<i32: 0>} : vector<80x1xi32>
      %c10_i32 = arith.constant 10 : i32
      %c0_i32_70 = arith.constant 0 : i32
      %94 = arith.cmpi eq, %c10_i32, %c0_i32_70 : i32
      %c1_i32_71 = arith.constant 1 : i32
      %95 = arith.select %94, %c1_i32_71, %c10_i32 : i32
      %96 = vector.broadcast %95 : i32 to vector<80x1xi32>
      %97 = arith.remsi %93, %96 : vector<80x1xi32>
      %c0_i32_72 = arith.constant 0 : i32
      %98 = vector.broadcast %c0_i32_72 : i32 to vector<80x1xi32>
      %99 = arith.cmpi ne, %97, %98 : vector<80x1xi32>
      %c0_i32_73 = arith.constant 0 : i32
      %100 = vector.broadcast %c0_i32_73 : i32 to vector<80x1xi32>
      %101 = arith.cmpi slt, %97, %100 : vector<80x1xi32>
      %c0_i32_74 = arith.constant 0 : i32
      %102 = arith.cmpi slt, %95, %c0_i32_74 : i32
      %103 = vector.broadcast %102 : i1 to vector<80x1xi1>
      %104 = vector.broadcast %103 : vector<80x1xi1> to vector<80x1xi1>
      %105 = arith.xori %101, %104 : vector<80x1xi1>
      %106 = arith.andi %105, %99 : vector<80x1xi1>
      %107 = vector.broadcast %95 : i32 to vector<80x1xi32>
      %108 = arith.addi %97, %107 : vector<80x1xi32>
      %109 = arith.select %106, %108, %97 : vector<80x1xi1>, vector<80x1xi32>
      %c8_i32_75 = arith.constant 8 : i32
      %110 = vector.broadcast %c8_i32_75 : i32 to vector<80x1xi32>
      %111 = arith.cmpi slt, %109, %110 : vector<80x1xi32>
      %112 = arith.extui %111 : vector<80x1xi1> to vector<80x1xi32>
      %113 = arith.sitofp %112 : vector<80x1xi32> to vector<80x1xf32>
      %114 = vector.broadcast %113 : vector<80x1xf32> to vector<80x128xf32>
      %115 = arith.mulf %92, %114 : vector<80x128xf32>
      %cst_76 = arith.constant dense<0.000000e+00> : vector<128xf32>
      %116 = vector.multi_reduction <add>, %115, %cst_76 [0] : vector<80x128xf32> to vector<128xf32>
      %117 = vector.shape_cast %116 : vector<128xf32> to vector<1x128xf32>
      %118 = arith.mulf %115, %92 : vector<80x128xf32>
      %cst_77 = arith.constant dense<0.000000e+00> : vector<128xf32>
      %119 = vector.multi_reduction <add>, %118, %cst_77 [0] : vector<80x128xf32> to vector<128xf32>
      %120 = vector.shape_cast %119 : vector<128xf32> to vector<1x128xf32>
      %121 = tpu.concatenate %117, %120 in 0 : vector<1x128xf32>, vector<1x128xf32> -> vector<2x128xf32>
      %c0_78 = arith.constant 0 : index
      %c0_79 = arith.constant 0 : index
      %c0_80 = arith.constant 0 : index
      %c0_81 = arith.constant 0 : index
      %122 = vector.load %arg6[%c0_78, %c0_79, %c0_80, %c0_81] : memref<1x1x2x128xf32, #tpu.memory_space<vmem>>, vector<1x1x2x128xf32>
      %123 = vector.shape_cast %122 : vector<1x1x2x128xf32> to vector<2x128xf32>
      %124 = vector.shape_cast %121 : vector<2x128xf32> to vector<1x1x2x128xf32>
      tpu.vector_store %arg6[%c0_78, %c0_79, %c0_80, %c0_81], %124 {strides = array<i32>} : memref<1x1x2x128xf32, #tpu.memory_space<vmem>>, vector<1x1x2x128xf32>,
      %125 = arith.truncf %92 : vector<80x128xf32> to vector<80x128xbf16>
      %c0_82 = arith.constant 0 : index
      %c0_83 = arith.constant 0 : index
      %c0_84 = arith.constant 0 : index
      %c0_85 = arith.constant 0 : index
      %126 = vector.load %arg5[%c0_82, %c0_83, %c0_84, %c0_85] : memref<1x1x80x128xbf16, #tpu.memory_space<vmem>>, vector<1x1x80x128xbf16>
      %127 = vector.shape_cast %126 : vector<1x1x80x128xbf16> to vector<80x128xbf16>
      %128 = vector.shape_cast %125 : vector<80x128xbf16> to vector<1x1x80x128xbf16>
      tpu.vector_store %arg5[%c0_82, %c0_83, %c0_84, %c0_85], %128 {strides = array<i32>} : memref<1x1x80x128xbf16, #tpu.memory_space<vmem>>, vector<1x1x80x128xbf16>,
    } else {
    }
    return
  }
  func.func @transform_0(%arg0: i32, %arg1: i32, %arg2: i32) -> (i32, i32, i32, i32) {
    %0 = arith.addi %arg1, %arg2 : i32
    %c0_i32 = arith.constant 0 : i32
    %c0_i32_0 = arith.constant 0 : i32
    %c0_i32_1 = arith.constant 0 : i32
    return %arg0, %0, %c0_i32, %c0_i32_0 : i32, i32, i32, i32
  }
  func.func @transform_1(%arg0: i32, %arg1: i32, %arg2: i32) -> (i32, i32, i32) {
    %c0_i32 = arith.constant 0 : i32
    %c0_i32_0 = arith.constant 0 : i32
    %c0_i32_1 = arith.constant 0 : i32
    %c0_i32_2 = arith.constant 0 : i32
    return %c0_i32, %c0_i32_0, %c0_i32_1 : i32, i32, i32
  }
  func.func @transform_2(%arg0: i32, %arg1: i32, %arg2: i32) -> (i32, i32, i32, i32) {
    %c0_i32 = arith.constant 0 : i32
    %c0_i32_0 = arith.constant 0 : i32
    %c0_i32_1 = arith.constant 0 : i32
    return %arg0, %arg1, %c0_i32, %c0_i32_0 : i32, i32, i32, i32
  }
  func.func @transform_3(%arg0: i32, %arg1: i32, %arg2: i32) -> (i32, i32, i32, i32) {
    %c0_i32 = arith.constant 0 : i32
    %c0_i32_0 = arith.constant 0 : i32
    %c0_i32_1 = arith.constant 0 : i32
    return %arg0, %arg1, %c0_i32, %c0_i32_0 : i32, i32, i32, i32
  }
}

module attributes {stable_mosaic.version = 11 : i64} {
  func.func @_bn_relu_repack_kernel(%arg0: i32, %arg1: i32, %arg2: memref<1x1x80x128xbf16, #tpu.memory_space<vmem>>, %arg3: memref<1x128xf32, #tpu.memory_space<vmem>>, %arg4: memref<1x128xf32, #tpu.memory_space<vmem>>, %arg5: memref<1x1x104x128xbf16, #tpu.memory_space<vmem>>) attributes {dimension_semantics = [#tpu.dimension_semantics<parallel>, #tpu.dimension_semantics<parallel>], iteration_bounds = array<i64: 2, 10>, scalar_prefetch = 0 : i64, scratch_operands = 0 : i64, tpu.core_type = #tpu.core_type<tc>, window_params = [{transform_indices = @transform_0, window_bounds = array<i64: 1, 1, 80, 128>}, {pipeline_mode = #tpu.pipeline_mode<synchronous>, transform_indices = @transform_1, window_bounds = array<i64: 1, 128>}, {pipeline_mode = #tpu.pipeline_mode<synchronous>, transform_indices = @transform_2, window_bounds = array<i64: 1, 128>}, {transform_indices = @transform_3, window_bounds = array<i64: 1, 1, 104, 128>}]} {
    %cst = arith.constant 0.000000e+00 : bf16
    %0 = vector.broadcast %cst : bf16 to vector<104x128xbf16>
    %c0 = arith.constant 0 : index
    %c0_0 = arith.constant 0 : index
    %c0_1 = arith.constant 0 : index
    %c0_2 = arith.constant 0 : index
    %1 = vector.load %arg5[%c0, %c0_0, %c0_1, %c0_2] : memref<1x1x104x128xbf16, #tpu.memory_space<vmem>>, vector<1x1x104x128xbf16>
    %2 = vector.shape_cast %1 : vector<1x1x104x128xbf16> to vector<104x128xbf16>
    %3 = vector.shape_cast %0 : vector<104x128xbf16> to vector<1x1x104x128xbf16>
    tpu.vector_store %arg5[%c0, %c0_0, %c0_1, %c0_2], %3 {strides = array<i32>} : memref<1x1x104x128xbf16, #tpu.memory_space<vmem>>, vector<1x1x104x128xbf16>,
    %c1_i32 = arith.constant 1 : i32
    %4 = arith.cmpi sge, %arg1, %c1_i32 : i32
    %c8_i32 = arith.constant 8 : i32
    %5 = arith.cmpi sle, %arg1, %c8_i32 : i32
    %6 = arith.andi %4, %5 : i1
    %7 = arith.extui %6 : i1 to i32
    %c0_i32 = arith.constant 0 : i32
    %8 = arith.cmpi ne, %7, %c0_i32 : i32
    scf.if %8 {
      %c0_3 = arith.constant 0 : index
      %c0_4 = arith.constant 0 : index
      %c0_5 = arith.constant 0 : index
      %c0_6 = arith.constant 0 : index
      %9 = vector.load %arg2[%c0_3, %c0_4, %c0_5, %c0_6] : memref<1x1x80x128xbf16, #tpu.memory_space<vmem>>, vector<1x1x80x128xbf16>
      %10 = vector.shape_cast %9 : vector<1x1x80x128xbf16> to vector<80x128xbf16>
      %11 = arith.extf %10 : vector<80x128xbf16> to vector<80x128xf32>
      %c0_7 = arith.constant 0 : index
      %c0_8 = arith.constant 0 : index
      %12 = vector.load %arg3[%c0_7, %c0_8] : memref<1x128xf32, #tpu.memory_space<vmem>>, vector<1x128xf32>
      %13 = vector.broadcast %12 : vector<1x128xf32> to vector<80x128xf32>
      %14 = arith.mulf %11, %13 : vector<80x128xf32>
      %c0_9 = arith.constant 0 : index
      %c0_10 = arith.constant 0 : index
      %15 = vector.load %arg4[%c0_9, %c0_10] : memref<1x128xf32, #tpu.memory_space<vmem>>, vector<1x128xf32>
      %16 = vector.broadcast %15 : vector<1x128xf32> to vector<80x128xf32>
      %17 = arith.addf %14, %16 : vector<80x128xf32>
      %cst_11 = arith.constant 0.000000e+00 : f32
      %18 = vector.broadcast %cst_11 : f32 to vector<80x128xf32>
      %19 = arith.maximumf %17, %18 : vector<80x128xf32>
      %20 = tpu.iota {dimensions = array<i32: 0>} : vector<80x1xi32>
      %c10_i32 = arith.constant 10 : i32
      %c0_i32_12 = arith.constant 0 : i32
      %21 = arith.cmpi eq, %c10_i32, %c0_i32_12 : i32
      %c1_i32_13 = arith.constant 1 : i32
      %22 = arith.select %21, %c1_i32_13, %c10_i32 : i32
      %23 = vector.broadcast %22 : i32 to vector<80x1xi32>
      %24 = arith.remsi %20, %23 : vector<80x1xi32>
      %c0_i32_14 = arith.constant 0 : i32
      %25 = vector.broadcast %c0_i32_14 : i32 to vector<80x1xi32>
      %26 = arith.cmpi ne, %24, %25 : vector<80x1xi32>
      %c0_i32_15 = arith.constant 0 : i32
      %27 = vector.broadcast %c0_i32_15 : i32 to vector<80x1xi32>
      %28 = arith.cmpi slt, %24, %27 : vector<80x1xi32>
      %c0_i32_16 = arith.constant 0 : i32
      %29 = arith.cmpi slt, %22, %c0_i32_16 : i32
      %30 = vector.broadcast %29 : i1 to vector<80x1xi1>
      %31 = vector.broadcast %30 : vector<80x1xi1> to vector<80x1xi1>
      %32 = arith.xori %28, %31 : vector<80x1xi1>
      %33 = arith.andi %32, %26 : vector<80x1xi1>
      %34 = vector.broadcast %22 : i32 to vector<80x1xi32>
      %35 = arith.addi %24, %34 : vector<80x1xi32>
      %36 = arith.select %33, %35, %24 : vector<80x1xi1>, vector<80x1xi32>
      %c8_i32_17 = arith.constant 8 : i32
      %37 = vector.broadcast %c8_i32_17 : i32 to vector<80x1xi32>
      %38 = arith.cmpi slt, %36, %37 : vector<80x1xi32>
      %cst_18 = arith.constant 0.000000e+00 : f32
      %39 = vector.shape_cast %38 : vector<80x1xi1> to vector<80x1xi1>
      %40 = vector.broadcast %39 : vector<80x1xi1> to vector<80x128xi1>
      %41 = vector.broadcast %cst_18 : f32 to vector<80x128xf32>
      %42 = arith.select %40, %19, %41 : vector<80x128xi1>, vector<80x128xf32>
      %43 = arith.truncf %42 : vector<80x128xf32> to vector<80x128xbf16>
      %c0_19 = arith.constant 0 : index
      %c0_20 = arith.constant 0 : index
      %c11 = arith.constant 11 : index
      %c0_21 = arith.constant 0 : index
      %44 = vector.load %arg5[%c0_19, %c0_20, %c11, %c0_21] : memref<1x1x104x128xbf16, #tpu.memory_space<vmem>>, vector<1x1x80x128xbf16>
      %45 = vector.shape_cast %44 : vector<1x1x80x128xbf16> to vector<80x128xbf16>
      %46 = vector.shape_cast %43 : vector<80x128xbf16> to vector<1x1x80x128xbf16>
      tpu.vector_store %arg5[%c0_19, %c0_20, %c11, %c0_21], %46 {strides = array<i32>} : memref<1x1x104x128xbf16, #tpu.memory_space<vmem>>, vector<1x1x80x128xbf16>,
    } else {
    }
    return
  }
  func.func @transform_0(%arg0: i32, %arg1: i32) -> (i32, i32, i32, i32) {
    %c1_i32 = arith.constant 1 : i32
    %0 = arith.subi %arg1, %c1_i32 : i32
    %c0_i32 = arith.constant 0 : i32
    %c7_i32 = arith.constant 7 : i32
    %1 = arith.maxsi %c0_i32, %0 : i32
    %2 = arith.minsi %c7_i32, %1 : i32
    %c0_i32_0 = arith.constant 0 : i32
    %c0_i32_1 = arith.constant 0 : i32
    %c0_i32_2 = arith.constant 0 : i32
    return %arg0, %2, %c0_i32_0, %c0_i32_1 : i32, i32, i32, i32
  }
  func.func @transform_1(%arg0: i32, %arg1: i32) -> (i32, i32) {
    %c0_i32 = arith.constant 0 : i32
    %c0_i32_0 = arith.constant 0 : i32
    %c0_i32_1 = arith.constant 0 : i32
    return %c0_i32, %c0_i32_0 : i32, i32
  }
  func.func @transform_2(%arg0: i32, %arg1: i32) -> (i32, i32) {
    %c0_i32 = arith.constant 0 : i32
    %c0_i32_0 = arith.constant 0 : i32
    %c0_i32_1 = arith.constant 0 : i32
    return %c0_i32, %c0_i32_0 : i32, i32
  }
  func.func @transform_3(%arg0: i32, %arg1: i32) -> (i32, i32, i32, i32) {
    %c0_i32 = arith.constant 0 : i32
    %c0_i32_0 = arith.constant 0 : i32
    %c0_i32_1 = arith.constant 0 : i32
    return %arg0, %arg1, %c0_i32, %c0_i32_0 : i32, i32, i32, i32
  }
}

module attributes {stable_mosaic.version = 11 : i64} {
  func.func @_bn_relu_residual_kernel(%arg0: i32, %arg1: i32, %arg2: memref<1x1x80x128xbf16, #tpu.memory_space<vmem>>, %arg3: memref<1x128xf32, #tpu.memory_space<vmem>>, %arg4: memref<1x128xf32, #tpu.memory_space<vmem>>, %arg5: memref<1x1x80x128xbf16, #tpu.memory_space<vmem>>, %arg6: memref<1x1x80x128xf32, #tpu.memory_space<vmem>>) attributes {dimension_semantics = [#tpu.dimension_semantics<parallel>, #tpu.dimension_semantics<parallel>], iteration_bounds = array<i64: 2, 8>, scalar_prefetch = 0 : i64, scratch_operands = 0 : i64, tpu.core_type = #tpu.core_type<tc>, window_params = [{transform_indices = @transform_0, window_bounds = array<i64: 1, 1, 80, 128>}, {pipeline_mode = #tpu.pipeline_mode<synchronous>, transform_indices = @transform_1, window_bounds = array<i64: 1, 128>}, {pipeline_mode = #tpu.pipeline_mode<synchronous>, transform_indices = @transform_2, window_bounds = array<i64: 1, 128>}, {transform_indices = @transform_3, window_bounds = array<i64: 1, 1, 80, 128>}, {transform_indices = @transform_4, window_bounds = array<i64: 1, 1, 80, 128>}]} {
    %c0 = arith.constant 0 : index
    %c0_0 = arith.constant 0 : index
    %c0_1 = arith.constant 0 : index
    %c0_2 = arith.constant 0 : index
    %0 = vector.load %arg2[%c0, %c0_0, %c0_1, %c0_2] : memref<1x1x80x128xbf16, #tpu.memory_space<vmem>>, vector<1x1x80x128xbf16>
    %1 = vector.shape_cast %0 : vector<1x1x80x128xbf16> to vector<80x128xbf16>
    %2 = arith.extf %1 : vector<80x128xbf16> to vector<80x128xf32>
    %c0_3 = arith.constant 0 : index
    %c0_4 = arith.constant 0 : index
    %3 = vector.load %arg3[%c0_3, %c0_4] : memref<1x128xf32, #tpu.memory_space<vmem>>, vector<1x128xf32>
    %4 = vector.broadcast %3 : vector<1x128xf32> to vector<80x128xf32>
    %5 = arith.mulf %2, %4 : vector<80x128xf32>
    %c0_5 = arith.constant 0 : index
    %c0_6 = arith.constant 0 : index
    %6 = vector.load %arg4[%c0_5, %c0_6] : memref<1x128xf32, #tpu.memory_space<vmem>>, vector<1x128xf32>
    %7 = vector.broadcast %6 : vector<1x128xf32> to vector<80x128xf32>
    %8 = arith.addf %5, %7 : vector<80x128xf32>
    %c0_7 = arith.constant 0 : index
    %c0_8 = arith.constant 0 : index
    %c0_9 = arith.constant 0 : index
    %c0_10 = arith.constant 0 : index
    %9 = vector.load %arg5[%c0_7, %c0_8, %c0_9, %c0_10] : memref<1x1x80x128xbf16, #tpu.memory_space<vmem>>, vector<1x1x80x128xbf16>
    %10 = vector.shape_cast %9 : vector<1x1x80x128xbf16> to vector<80x128xbf16>
    %11 = arith.extf %10 : vector<80x128xbf16> to vector<80x128xf32>
    %12 = arith.addf %8, %11 : vector<80x128xf32>
    %cst = arith.constant 0.000000e+00 : f32
    %13 = vector.broadcast %cst : f32 to vector<80x128xf32>
    %14 = arith.maximumf %12, %13 : vector<80x128xf32>
    %c0_11 = arith.constant 0 : index
    %c0_12 = arith.constant 0 : index
    %c0_13 = arith.constant 0 : index
    %c0_14 = arith.constant 0 : index
    %15 = vector.load %arg6[%c0_11, %c0_12, %c0_13, %c0_14] : memref<1x1x80x128xf32, #tpu.memory_space<vmem>>, vector<1x1x80x128xf32>
    %16 = vector.shape_cast %15 : vector<1x1x80x128xf32> to vector<80x128xf32>
    %17 = vector.shape_cast %14 : vector<80x128xf32> to vector<1x1x80x128xf32>
    tpu.vector_store %arg6[%c0_11, %c0_12, %c0_13, %c0_14], %17 {strides = array<i32>} : memref<1x1x80x128xf32, #tpu.memory_space<vmem>>, vector<1x1x80x128xf32>,
    return
  }
  func.func @transform_0(%arg0: i32, %arg1: i32) -> (i32, i32, i32, i32) {
    %c0_i32 = arith.constant 0 : i32
    %c0_i32_0 = arith.constant 0 : i32
    %c0_i32_1 = arith.constant 0 : i32
    return %arg0, %arg1, %c0_i32, %c0_i32_0 : i32, i32, i32, i32
  }
  func.func @transform_1(%arg0: i32, %arg1: i32) -> (i32, i32) {
    %c0_i32 = arith.constant 0 : i32
    %c0_i32_0 = arith.constant 0 : i32
    %c0_i32_1 = arith.constant 0 : i32
    return %c0_i32, %c0_i32_0 : i32, i32
  }
  func.func @transform_2(%arg0: i32, %arg1: i32) -> (i32, i32) {
    %c0_i32 = arith.constant 0 : i32
    %c0_i32_0 = arith.constant 0 : i32
    %c0_i32_1 = arith.constant 0 : i32
    return %c0_i32, %c0_i32_0 : i32, i32
  }
  func.func @transform_3(%arg0: i32, %arg1: i32) -> (i32, i32, i32, i32) {
    %c0_i32 = arith.constant 0 : i32
    %c0_i32_0 = arith.constant 0 : i32
    %c0_i32_1 = arith.constant 0 : i32
    return %arg0, %arg1, %c0_i32, %c0_i32_0 : i32, i32, i32, i32
  }
  func.func @transform_4(%arg0: i32, %arg1: i32) -> (i32, i32, i32, i32) {
    %c0_i32 = arith.constant 0 : i32
    %c0_i32_0 = arith.constant 0 : i32
    %c0_i32_1 = arith.constant 0 : i32
    return %arg0, %arg1, %c0_i32, %c0_i32_0 : i32, i32, i32, i32
  }
}

</mosaic_0001>

<llo_original>
// kernel: basic_block_forward.5
$region0: #{basic_block_forward.5}
  #allocation0 [shape = 'u32[]', space=smem, size = 0x4, offset = 0x4, fixed_abs, tag = 'smem constant byte address 0x4 - core index']
  #allocation1 [shape = 'u32[144,128]{1,0:T(1,128)}', space=vmem, size = 0x12000, scoped, tag = 'internal scratch']
  %s0 = inlined_call_operand.hbm [shape: bf16[2,8,80,128], index: 0, kind: input, shape index: {}]
  %s1 = inlined_call_operand.hbm [shape: f32[1,128], index: 1, kind: input, shape index: {}]
  %s2 = inlined_call_operand.hbm [shape: f32[1,128], index: 2, kind: input, shape index: {}]
  %s3 = inlined_call_operand.hbm [shape: bf16[2,10,104,128], index: 3, kind: output, shape index: {}]
  %s4 = sld [smem:[#allocation0]]
  $region61: #{basic_block_forward.5} parent=0
    _
  %s6 = ssub.s32 1, %s4
  %s7 = scalar_select 0, %s6, %s4
  $region1: #{basic_block_forward.5} parent=0
    #allocation2 [shape = 'u8[40960]{0}', space=vmem, size = 0xa000, scoped, tag = 'input window, operand 0']
    #allocation3 [shape = 's32[2]{0}', space=sflag, size = 0x8, scoped, tag = 'scoped memory for basic_block_forward.5']
    #allocation4 [shape = 's32[2]{0}', space=sflag, size = 0x8, scoped, tag = 'scoped memory for basic_block_forward.5']
    #allocation5 [shape = 'u8[512]{0}', space=vmem, size = 0x400, scoped, tag = 'input window, operand 1, single buffered']
    #allocation6 [shape = 's32[1]{0}', space=sflag, size = 0x4, scoped, tag = 'scoped memory for basic_block_forward.5']
    #allocation7 [shape = 'u8[512]{0}', space=vmem, size = 0x400, scoped, tag = 'input window, operand 2, single buffered']
    #allocation8 [shape = 'u8[53248]{0}', space=vmem, size = 0xd000, scoped, tag = 'output window, operand 0']
    %8 = vsyncpa [#allocation3], 0
    %s9 = scalar_lea.sflag [#allocation3], 1
    %10 = vsyncpa %s9, 0
    %11 = vsyncpa [#allocation6], 0
    %12 = vsyncpa [#allocation4], 0
    %s13 = scalar_lea.sflag [#allocation4], 1
    %14 = vsyncpa %s13, 0
    loop: start=0, step=1, limit=22
    $region2: #{basic_block_forward.5} parent=1 // loop_pre_header
      _
    $region3: #{basic_block_forward.5} parent=1 // loop_header
      %s16 = sphi 0, %s20
      %p17 = scmp.ge.s32.totalorder %s16, 22
      %s23 = sphi 0, %s35
      %s24 = sphi 0, %s31
      %s25 = sphi 0, %s23
      %s26 = sphi 0, %s24
      %s27 = sphi 0, %s25
      %s28 = sphi 0, %s26
      %s50 = sphi 0, %s52
      %s53 = sphi 0, %s50
      %s54 = sphi 0, %s53
      %s70 = sphi 0, %s54
      %s74 = sphi 0, %s74
      %s76 = sphi 0, %s74
      %s77 = sphi 0, %s76
      %s91 = sphi 0, %s77
      %s95 = sphi 0, %s95
      %s97 = sphi 0, %s95
      %s98 = sphi 0, %s97
      %s112 = sphi 0, %s98
      %s120 = sphi 0, %s122
      %s123 = sphi 0, %s120
      %s124 = sphi 0, %s123
      %s140 = sphi 0, %s124
    $region4: #{basic_block_forward.5} parent=1 // loop_header_branch
      %19 = sbr.rel (%p17) target = $region8
    $region5: #{basic_block_forward.5} parent=1 // loop_body
      %s21 = ssub.s32 %s16, 1
      %s22 = ssub.s32 %s16, 2
      %s29 = sadd.s32 1, %s24
      %p30 = scmp.ge.s32.totalorder %s29, 10
      %s31 = scalar_select %p30, 0, %s29
      %s32 = sadd.s32 1, %s23
      %s33 = scalar_select %p30, %s32, %s23
      %p34 = scmp.ge.s32.totalorder %s33, 2
      %s35 = scalar_select %p34, 0, %s33
      %s36 = ssub.s32 %s24, 1
      %p37 = scmp.gt.s32.totalorder %s36, 0
      %s38 = scalar_select %p37, %s36, 0
      %p39 = scmp.lt.s32.totalorder %s38, 7
      %s40 = scalar_select %p39, %s38, 7
      %s41 = ssub.s32 %s31, 1
      %p42 = scmp.gt.s32.totalorder %s41, 0
      %s43 = scalar_select %p42, %s41, 0
      %p44 = scmp.lt.s32.totalorder %s43, 7
      %s45 = scalar_select %p44, %s43, 7
      %s46 = ssub.s32 %s23, %s35
      %s47 = ssub.s32 %s40, %s45
      %s48 = sor.u32 %s46, %s47
      %p49 = scmp.eq.s32.totalorder %s48, 0
      %s51 = sadd.s32 %s50, 1
      %s52 = scalar_select %p49, %s50, %s51
      %p55 = pneg %p49
      %p56 = scmp.eq.s32.totalorder %s16, 19
      %p57 = por %p55, %p56
      %p58 = scmp.ne.s32.totalorder %s50, %s53
      %p59 = scmp.eq.s32.totalorder %s16, 0
      %p60 = por %p58, %p59
      %p61 = scmp.ne.s32.totalorder %s50, %s53
      %p62 = scmp.eq.s32.totalorder %s21, 19
      %p63 = por %p61, %p62
      %p64 = scmp.ne.s32.totalorder %s53, %s54
      %p65 = scmp.eq.s32.totalorder %s21, 0
      %p66 = por %p64, %p65
      %p67 = scmp.ne.s32.totalorder %s53, %s54
      %p68 = scmp.eq.s32.totalorder %s22, 19
      %p69 = por %p67, %p68
      %p71 = scmp.ne.s32.totalorder %s54, %s70
      %p72 = scmp.eq.s32.totalorder %s22, 0
      %p73 = por %p71, %p72
      %s75 = sadd.s32 %s74, 1
      %p78 = scmp.eq.s32.totalorder %s16, 19
      %p79 = scmp.ne.s32.totalorder %s74, %s76
      %p80 = scmp.eq.s32.totalorder %s16, 0
      %p81 = por %p79, %p80
      %p82 = scmp.ne.s32.totalorder %s74, %s76
      %p83 = scmp.eq.s32.totalorder %s21, 19
      %p84 = por %p82, %p83
      %p85 = scmp.ne.s32.totalorder %s76, %s77
      %p86 = scmp.eq.s32.totalorder %s21, 0
      %p87 = por %p85, %p86
      %p88 = scmp.ne.s32.totalorder %s76, %s77
      %p89 = scmp.eq.s32.totalorder %s22, 19
      %p90 = por %p88, %p89
      %p92 = scmp.ne.s32.totalorder %s77, %s91
      %p93 = scmp.eq.s32.totalorder %s22, 0
      %p94 = por %p92, %p93
      %s96 = sadd.s32 %s95, 1
      %p99 = scmp.eq.s32.totalorder %s16, 19
      %p100 = scmp.ne.s32.totalorder %s95, %s97
      %p101 = scmp.eq.s32.totalorder %s16, 0
      %p102 = por %p100, %p101
      %p103 = scmp.ne.s32.totalorder %s95, %s97
      %p104 = scmp.eq.s32.totalorder %s21, 19
      %p105 = por %p103, %p104
      %p106 = scmp.ne.s32.totalorder %s97, %s98
      %p107 = scmp.eq.s32.totalorder %s21, 0
      %p108 = por %p106, %p107
      %p109 = scmp.ne.s32.totalorder %s97, %s98
      %p110 = scmp.eq.s32.totalorder %s22, 19
      %p111 = por %p109, %p110
      %p113 = scmp.ne.s32.totalorder %s98, %s112
      %p114 = scmp.eq.s32.totalorder %s22, 0
      %p115 = por %p113, %p114
      %s116 = ssub.s32 %s23, %s35
      %s117 = ssub.s32 %s24, %s31
      %s118 = sor.u32 %s116, %s117
      %p119 = scmp.eq.s32.totalorder %s118, 0
      %s121 = sadd.s32 %s120, 1
      %s122 = scalar_select %p119, %s120, %s121
      %p125 = pneg %p119
      %p126 = scmp.eq.s32.totalorder %s16, 19
      %p127 = por %p125, %p126
      %p128 = scmp.ne.s32.totalorder %s120, %s123
      %p129 = scmp.eq.s32.totalorder %s16, 0
      %p130 = por %p128, %p129
      %p131 = scmp.ne.s32.totalorder %s120, %s123
      %p132 = scmp.eq.s32.totalorder %s21, 19
      %p133 = por %p131, %p132
      %p134 = scmp.ne.s32.totalorder %s123, %s124
      %p135 = scmp.eq.s32.totalorder %s21, 0
      %p136 = por %p134, %p135
      %p137 = scmp.ne.s32.totalorder %s123, %s124
      %p138 = scmp.eq.s32.totalorder %s22, 19
      %p139 = por %p137, %p138
      %p141 = scmp.ne.s32.totalorder %s124, %s140
      %p142 = scmp.eq.s32.totalorder %s22, 0
      %p143 = por %p141, %p142
      %p144 = scmp.le.s32.totalorder 1, %s16
      %p145 = scmp.lt.s32.totalorder %s16, 21
      %p146 = pnand %p144, %p145
      %p147 = pneg %p146
      // Predicated region
      $region9: #{basic_block_forward.5} parent=5 // pred_check
        _
      $region10: #{basic_block_forward.5} parent=5 // pred_check_branch
        %149 = sbr.rel (%p146) target = $region12
      $region11: #{basic_block_forward.5} parent=5 // pred_region
        %s150 = ssub.s32 %s16, 1
        // Predicated region
        $region13: #{basic_block_forward.5} parent=11 // pred_check
          %p151 = pneg %p87
        $region14: #{basic_block_forward.5} parent=11 // pred_check_branch
          %153 = sbr.rel (%p151) target = $region16
        $region15: #{basic_block_forward.5} parent=11 // pred_region
          %s155 = ssub.s32 16, 16
          %156 = vsyncadd [#allocation6], %s155
          %s158 = sshll.u32 [#allocation5], 4
          %s159 = int_to_ptr.vmem [resolvable:$true] %s158
          %161 = dma.hbm_to_vmem [thread:$0]  %s1, 16, %s159, [#allocation6]
        $region16: #{basic_block_forward.5} parent=11 // pred_fallthru
          _
        // Predicated region
        $region17: #{basic_block_forward.5} parent=11 // pred_check
          %p162 = pneg %p108
        $region18: #{basic_block_forward.5} parent=11 // pred_check_branch
          %164 = sbr.rel (%p162) target = $region20
        $region19: #{basic_block_forward.5} parent=11 // pred_region
          %s166 = ssub.s32 16, 16
          %167 = vsyncadd [#allocation6], %s166
          %s169 = sshll.u32 [#allocation7], 4
          %s170 = int_to_ptr.vmem [resolvable:$true] %s169
          %172 = dma.hbm_to_vmem [thread:$0]  %s2, 16, %s170, [#allocation6]
        $region20: #{basic_block_forward.5} parent=11 // pred_fallthru
          _
      $region12: #{basic_block_forward.5} parent=5 // pred_fallthru
        _
      %p173 = scmp.lt.s32.totalorder %s16, 20
      // Predicated region
      $region21: #{basic_block_forward.5} parent=5 // pred_check
        %p174 = pneg %p173
      $region22: #{basic_block_forward.5} parent=5 // pred_check_branch
        %176 = sbr.rel (%p174) target = $region24
      $region23: #{basic_block_forward.5} parent=5 // pred_region
        // Predicated region
        $region25: #{basic_block_forward.5} parent=23 // pred_check
          %p177 = pneg %p60
        $region26: #{basic_block_forward.5} parent=23 // pred_check_branch
          %179 = sbr.rel (%p177) target = $region28
        $region27: #{basic_block_forward.5} parent=23 // pred_region
          %s180 = sand.u32 %s50, 1
          %s181 = scalar_lea.sflag [#allocation3], %s180
          %s182 = sand.u32 %s50, 1
          %s183 = smul.addr %s182, 40
          %s184 = scalar_lea.vmem [#allocation2], %s183
          %s185 = ssub.s32 %s24, 1
          %p186 = scmp.gt.s32.totalorder %s185, 0
          %s187 = scalar_select %p186, %s185, 0
          %p188 = scmp.lt.s32.totalorder %s187, 7
          %s189 = scalar_select %p188, %s187, 7
          %s191 = ssub.s32 640, 640
          %192 = vsyncadd %s181, %s191
          %s193 = smul.addr %s189, 10
          %s194 = smul.addr %s23, 80
          %s195 = sadd.s32 %s193, %s194
          %s196 = smul.addr %s195, 64
          %s197 = scalar_lea.hbm %s0, %s196
          %s198 = sshll.u32 %s184, 4
          %s199 = int_to_ptr.vmem [resolvable:$true] %s198
          %204 = dma.hbm_to_vmem [thread:$0]  %s197, 640, %s199, %s181, 64, 64, 4
        $region28: #{basic_block_forward.5} parent=23 // pred_fallthru
          _
      $region24: #{basic_block_forward.5} parent=5 // pred_fallthru
        _
      %p205 = scmp.le.s32.totalorder 1, %s16
      %p206 = scmp.lt.s32.totalorder %s16, 21
      %p207 = pnand %p205, %p206
      %p208 = pneg %p207
      // Predicated region
      $region29: #{basic_block_forward.5} parent=5 // pred_check
        _
      $region30: #{basic_block_forward.5} parent=5 // pred_check_branch
        %210 = sbr.rel (%p207) target = $region32
      $region31: #{basic_block_forward.5} parent=5 // pred_region
        %s211 = ssub.s32 %s16, 1
        %s212 = sand.u32 %s53, 1
        %s213 = scalar_lea.sflag [#allocation3], %s212
        %s214 = sand.u32 %s53, 1
        %s215 = smul.addr %s214, 40
        %s216 = scalar_lea.vmem [#allocation2], %s215
        // Predicated region
        $region33: #{basic_block_forward.5} parent=31 // pred_check
          %p217 = pneg %p66
        $region34: #{basic_block_forward.5} parent=31 // pred_check_branch
          %219 = sbr.rel (%p217) target = $region36
        $region35: #{basic_block_forward.5} parent=31 // pred_region
          %220 = dma.done %s213, 640
        $region36: #{basic_block_forward.5} parent=31 // pred_fallthru
          _
        // Predicated region
        $region37: #{basic_block_forward.5} parent=31 // pred_check
          %p221 = pneg %p87
        $region38: #{basic_block_forward.5} parent=31 // pred_check_branch
          %223 = sbr.rel (%p221) target = $region40
        $region39: #{basic_block_forward.5} parent=31 // pred_region
          %224 = dma.done [#allocation6], 16
        $region40: #{basic_block_forward.5} parent=31 // pred_fallthru
          _
        // Predicated region
        $region41: #{basic_block_forward.5} parent=31 // pred_check
          %p225 = pneg %p108
        $region42: #{basic_block_forward.5} parent=31 // pred_check_branch
          %227 = sbr.rel (%p225) target = $region44
        $region43: #{basic_block_forward.5} parent=31 // pred_region
          %228 = dma.done [#allocation6], 16
        $region44: #{basic_block_forward.5} parent=31 // pred_fallthru
          _
        %s229 = sand.u32 %s53, 1
        %s230 = scalar_lea.sflag [#allocation3], %s229
        %s231 = sand.u32 %s53, 1
        %s232 = smul.addr %s231, 40
        %s233 = scalar_lea.vmem [#allocation2], %s232
        %p234 = pneg %p66
        %p235 = pneg %p63
        %p236 = pneg %p87
        %p237 = pneg %p84
        %p238 = pneg %p108
        %p239 = pneg %p105
        %p240 = pneg %p136
        %p241 = pneg %p133
        %s242 = sand.u32 %s123, 1
        %s243 = scalar_lea.sflag [#allocation4], %s242
        %s244 = sand.u32 %s123, 1
        %s245 = smul.addr %s244, 52
        %s246 = scalar_lea.vmem [#allocation8], %s245
        %s247 = ssub.s32 %s26, 1
        %p248 = scmp.gt.s32.totalorder %s247, 0
        %s249 = scalar_select %p248, %s247, 0
        %p250 = scmp.lt.s32.totalorder %s249, 7
        %s251 = scalar_select %p250, %s249, 7
        %253 = vst [vmem:[%s246] sm:$0xf] 0
        %254 = vst [vmem:[%s246 + $0x4] sm:$0xf] 0
        %255 = vst [vmem:[%s246 + $0x8] sm:$0xf] 0
        %256 = vst [vmem:[%s246 + $0xc] sm:$0xf] 0
        %257 = vst [vmem:[%s246 + $0x10] sm:$0xf] 0
        %258 = vst [vmem:[%s246 + $0x14] sm:$0xf] 0
        %259 = vst [vmem:[%s246 + $0x18] sm:$0xf] 0
        %260 = vst [vmem:[%s246 + $0x1c] sm:$0xf] 0
        %261 = vst [vmem:[%s246 + $0x20] sm:$0xf] 0
        %262 = vst [vmem:[%s246 + $0x24] sm:$0xf] 0
        %263 = vst [vmem:[%s246 + $0x28] sm:$0xf] 0
        %264 = vst [vmem:[%s246 + $0x2c] sm:$0xf] 0
        %265 = vst [vmem:[%s246 + $0x30] sm:$0xf] 0
        %p266 = scmp.ge.s32.totalorder %s26, 1
        %p267 = scmp.le.s32.totalorder %s26, 8
        %p268 = pnand %p266, %p267
        %p269 = pneg %p268
        // Predicated region
        $region45: #{basic_block_forward.5} parent=31 // pred_check
          _
        $region46: #{basic_block_forward.5} parent=31 // pred_check_branch
          %271 = sbr.rel (%p268) target = $region48
        $region47: #{basic_block_forward.5} parent=31 // pred_region
          %v272 = vld [vmem:[%s216] sm:$0xf]
          %v273 = vld [vmem:[%s216 + $0x4] sm:$0xf]
          %v274 = vld [vmem:[%s216 + $0x8] sm:$0xf]
          %v275 = vld [vmem:[%s216 + $0xc] sm:$0xf]
          %v276 = vld [vmem:[%s216 + $0x10] sm:$0xf]
          %v277 = vld [vmem:[%s216 + $0x14] sm:$0xf]
          %v278 = vld [vmem:[%s216 + $0x18] sm:$0xf]
          %v279 = vld [vmem:[%s216 + $0x1c] sm:$0xf]
          %v280 = vld [vmem:[%s216 + $0x20] sm:$0xf]
          %v281 = vld [vmem:[%s216 + $0x24] sm:$0xf]
          %v282 = vunpack.c.l.bf16 %v272
          %v283 = vunpack.c.l.bf16 %v273
          %v284 = vunpack.c.l.bf16 %v274
          %v285 = vunpack.c.l.bf16 %v275
          %v286 = vunpack.c.l.bf16 %v276
          %v287 = vunpack.c.l.bf16 %v277
          %v288 = vunpack.c.l.bf16 %v278
          %v289 = vunpack.c.l.bf16 %v279
          %v290 = vunpack.c.l.bf16 %v280
          %v291 = vunpack.c.l.bf16 %v281
          %v292 = vld [vmem:[#allocation5] sm:$0x1]
          %v294 = vlaneseq
          %v295 = vshrl.u32 %v294, 7
          %v296 = vsub.s32 0, %v295
          %v297 = vrot.slane %v292, %v296
          %v299 = vmul.f32 %v282, %v297
          %v300 = vmul.f32 %v283, %v297
          %v301 = vmul.f32 %v284, %v297
          %v302 = vmul.f32 %v285, %v297
          %v303 = vmul.f32 %v286, %v297
          %v304 = vmul.f32 %v287, %v297
          %v305 = vmul.f32 %v288, %v297
          %v306 = vmul.f32 %v289, %v297
          %v307 = vmul.f32 %v290, %v297
          %v308 = vmul.f32 %v291, %v297
          %v309 = vld [vmem:[#allocation7] sm:$0x1]
          %v311 = vlaneseq
          %v312 = vshrl.u32 %v311, 7
          %v313 = vsub.s32 0, %v312
          %v314 = vrot.slane %v309, %v313
          %v316 = vadd.f32 %v299, %v314
          %v317 = vadd.f32 %v300, %v314
          %v318 = vadd.f32 %v301, %v314
          %v319 = vadd.f32 %v302, %v314
          %v320 = vadd.f32 %v303, %v314
          %v321 = vadd.f32 %v304, %v314
          %v322 = vadd.f32 %v305, %v314
          %v323 = vadd.f32 %v306, %v314
          %v324 = vadd.f32 %v307, %v314
          %v325 = vadd.f32 %v308, %v314
          %v326 = vmax.f32 %v316, 0.0
          %v327 = vmax.f32 %v317, 0.0
          %v328 = vmax.f32 %v318, 0.0
          %v329 = vmax.f32 %v319, 0.0
          %v330 = vmax.f32 %v320, 0.0
          %v331 = vmax.f32 %v321, 0.0
          %v332 = vmax.f32 %v322, 0.0
          %v333 = vmax.f32 %v323, 0.0
          %v334 = vmax.f32 %v324, 0.0
          %v335 = vmax.f32 %v325, 0.0
          %v336 = vlaneseq
          %v337 = vshrl.u32 %v336, 7
          %v338 = vadd.s32 %v337, 8
          %v339 = vadd.s32 %v337, 16
          %v340 = vadd.s32 %v337, 24
          %v341 = vadd.s32 %v337, 32
          %v342 = vadd.s32 %v337, 40
          %v343 = vadd.s32 %v337, 48
          %v344 = vadd.s32 %v337, 56
          %v345 = vadd.s32 %v337, 64
          %v346 = vadd.s32 %v337, 72
          %vm347 = vcmp.lt.s32.totalorder %v337, 0
          %v348 = vsub.s32 0, %v337
          %v349 = vsel %vm347, %v348, %v337
          %v350 = vmul.u32.u64.compose %v349, 3435973837
          %v351 = vextract.low.u32 %v350
          %v352 = vextract.high.u32 %v350
          %v353 = vshrl.u32 %v352, 3
          %v354 = vmul.u32 %v353, 10
          %v355 = vsub.s32 %v349, %v354
          %v356 = vsub.s32 0, %v355
          %v357 = vsel %vm347, %v356, %v355
          %vm358 = vcmp.lt.s32.totalorder %v338, 0
          %v359 = vsub.s32 0, %v338
          %v360 = vsel %vm358, %v359, %v338
          %v361 = vmul.u32.u64.compose %v360, 3435973837
          %v362 = vextract.low.u32 %v361
          %v363 = vextract.high.u32 %v361
          %v364 = vshrl.u32 %v363, 3
          %v365 = vmul.u32 %v364, 10
          %v366 = vsub.s32 %v360, %v365
          %v367 = vsub.s32 0, %v366
          %v368 = vsel %vm358, %v367, %v366
          %vm369 = vcmp.lt.s32.totalorder %v339, 0
          %v370 = vsub.s32 0, %v339
          %v371 = vsel %vm369, %v370, %v339
          %v372 = vmul.u32.u64.compose %v371, 3435973837
          %v373 = vextract.low.u32 %v372
          %v374 = vextract.high.u32 %v372
          %v375 = vshrl.u32 %v374, 3
          %v376 = vmul.u32 %v375, 10
          %v377 = vsub.s32 %v371, %v376
          %v378 = vsub.s32 0, %v377
          %v379 = vsel %vm369, %v378, %v377
          %vm380 = vcmp.lt.s32.totalorder %v340, 0
          %v381 = vsub.s32 0, %v340
          %v382 = vsel %vm380, %v381, %v340
          %v383 = vmul.u32.u64.compose %v382, 3435973837
          %v384 = vextract.low.u32 %v383
          %v385 = vextract.high.u32 %v383
          %v386 = vshrl.u32 %v385, 3
          %v387 = vmul.u32 %v386, 10
          %v388 = vsub.s32 %v382, %v387
          %v389 = vsub.s32 0, %v388
          %v390 = vsel %vm380, %v389, %v388
          %vm391 = vcmp.lt.s32.totalorder %v341, 0
          %v392 = vsub.s32 0, %v341
          %v393 = vsel %vm391, %v392, %v341
          %v394 = vmul.u32.u64.compose %v393, 3435973837
          %v395 = vextract.low.u32 %v394
          %v396 = vextract.high.u32 %v394
          %v397 = vshrl.u32 %v396, 3
          %v398 = vmul.u32 %v397, 10
          %v399 = vsub.s32 %v393, %v398
          %v400 = vsub.s32 0, %v399
          %v401 = vsel %vm391, %v400, %v399
          %vm402 = vcmp.lt.s32.totalorder %v342, 0
          %v403 = vsub.s32 0, %v342
          %v404 = vsel %vm402, %v403, %v342
          %v405 = vmul.u32.u64.compose %v404, 3435973837
          %v406 = vextract.low.u32 %v405
          %v407 = vextract.high.u32 %v405
          %v408 = vshrl.u32 %v407, 3
          %v409 = vmul.u32 %v408, 10
          %v410 = vsub.s32 %v404, %v409
          %v411 = vsub.s32 0, %v410
          %v412 = vsel %vm402, %v411, %v410
          %vm413 = vcmp.lt.s32.totalorder %v343, 0
          %v414 = vsub.s32 0, %v343
          %v415 = vsel %vm413, %v414, %v343
          %v416 = vmul.u32.u64.compose %v415, 3435973837
          %v417 = vextract.low.u32 %v416
          %v418 = vextract.high.u32 %v416
          %v419 = vshrl.u32 %v418, 3
          %v420 = vmul.u32 %v419, 10
          %v421 = vsub.s32 %v415, %v420
          %v422 = vsub.s32 0, %v421
          %v423 = vsel %vm413, %v422, %v421
          %vm424 = vcmp.lt.s32.totalorder %v344, 0
          %v425 = vsub.s32 0, %v344
          %v426 = vsel %vm424, %v425, %v344
          %v427 = vmul.u32.u64.compose %v426, 3435973837
          %v428 = vextract.low.u32 %v427
          %v429 = vextract.high.u32 %v427
          %v430 = vshrl.u32 %v429, 3
          %v431 = vmul.u32 %v430, 10
          %v432 = vsub.s32 %v426, %v431
          %v433 = vsub.s32 0, %v432
          %v434 = vsel %vm424, %v433, %v432
          %vm435 = vcmp.lt.s32.totalorder %v345, 0
          %v436 = vsub.s32 0, %v345
          %v437 = vsel %vm435, %v436, %v345
          %v438 = vmul.u32.u64.compose %v437, 3435973837
          %v439 = vextract.low.u32 %v438
          %v440 = vextract.high.u32 %v438
          %v441 = vshrl.u32 %v440, 3
          %v442 = vmul.u32 %v441, 10
          %v443 = vsub.s32 %v437, %v442
          %v444 = vsub.s32 0, %v443
          %v445 = vsel %vm435, %v444, %v443
          %vm446 = vcmp.lt.s32.totalorder %v346, 0
          %v447 = vsub.s32 0, %v346
          %v448 = vsel %vm446, %v447, %v346
          %v449 = vmul.u32.u64.compose %v448, 3435973837
          %v450 = vextract.low.u32 %v449
          %v451 = vextract.high.u32 %v449
          %v452 = vshrl.u32 %v451, 3
          %v453 = vmul.u32 %v452, 10
          %v454 = vsub.s32 %v448, %v453
          %v455 = vsub.s32 0, %v454
          %v456 = vsel %vm446, %v455, %v454
          %vm457 = vcmp.ne.s32.totalorder %v357, 0
          %vm458 = vcmp.ne.s32.totalorder %v368, 0
          %vm459 = vcmp.ne.s32.totalorder %v379, 0
          %vm460 = vcmp.ne.s32.totalorder %v390, 0
          %vm461 = vcmp.ne.s32.totalorder %v401, 0
          %vm462 = vcmp.ne.s32.totalorder %v412, 0
          %vm463 = vcmp.ne.s32.totalorder %v423, 0
          %vm464 = vcmp.ne.s32.totalorder %v434, 0
          %vm465 = vcmp.ne.s32.totalorder %v445, 0
          %vm466 = vcmp.ne.s32.totalorder %v456, 0
          %vm467 = vcmp.lt.s32.totalorder %v357, 0
          %vm468 = vcmp.lt.s32.totalorder %v368, 0
          %vm469 = vcmp.lt.s32.totalorder %v379, 0
          %vm470 = vcmp.lt.s32.totalorder %v390, 0
          %vm471 = vcmp.lt.s32.totalorder %v401, 0
          %vm472 = vcmp.lt.s32.totalorder %v412, 0
          %vm473 = vcmp.lt.s32.totalorder %v423, 0
          %vm474 = vcmp.lt.s32.totalorder %v434, 0
          %vm475 = vcmp.lt.s32.totalorder %v445, 0
          %vm476 = vcmp.lt.s32.totalorder %v456, 0
          %vm477 = vmand %vm467, %vm457
          %vm478 = vmand %vm468, %vm458
          %vm479 = vmand %vm469, %vm459
          %vm480 = vmand %vm470, %vm460
          %vm481 = vmand %vm471, %vm461
          %vm482 = vmand %vm472, %vm462
          %vm483 = vmand %vm473, %vm463
          %vm484 = vmand %vm474, %vm464
          %vm485 = vmand %vm475, %vm465
          %vm486 = vmand %vm476, %vm466
          %v487 = vadd.s32 %v357, 10
          %v488 = vadd.s32 %v368, 10
          %v489 = vadd.s32 %v379, 10
          %v490 = vadd.s32 %v390, 10
          %v491 = vadd.s32 %v401, 10
          %v492 = vadd.s32 %v412, 10
          %v493 = vadd.s32 %v423, 10
          %v494 = vadd.s32 %v434, 10
          %v495 = vadd.s32 %v445, 10
          %v496 = vadd.s32 %v456, 10
          %v497 = vsel %vm477, %v487, %v357
          %v498 = vsel %vm478, %v488, %v368
          %v499 = vsel %vm479, %v489, %v379
          %v500 = vsel %vm480, %v490, %v390
          %v501 = vsel %vm481, %v491, %v401
          %v502 = vsel %vm482, %v492, %v412
          %v503 = vsel %vm483, %v493, %v423
          %v504 = vsel %vm484, %v494, %v434
          %v505 = vsel %vm485, %v495, %v445
          %v506 = vsel %vm486, %v496, %v456
          %vm507 = vcmp.lt.s32.totalorder %v497, 8
          %vm508 = vcmp.lt.s32.totalorder %v498, 8
          %vm509 = vcmp.lt.s32.totalorder %v499, 8
          %vm510 = vcmp.lt.s32.totalorder %v500, 8
          %vm511 = vcmp.lt.s32.totalorder %v501, 8
          %vm512 = vcmp.lt.s32.totalorder %v502, 8
          %vm513 = vcmp.lt.s32.totalorder %v503, 8
          %vm514 = vcmp.lt.s32.totalorder %v504, 8
          %vm515 = vcmp.lt.s32.totalorder %v505, 8
          %vm516 = vcmp.lt.s32.totalorder %v506, 8
          %v517 = vsel %vm507, 1, 0
          %v518 = vsel %vm508, 1, 0
          %v519 = vsel %vm509, 1, 0
          %v520 = vsel %vm510, 1, 0
          %v521 = vsel %vm511, 1, 0
          %v522 = vsel %vm512, 1, 0
          %v523 = vsel %vm513, 1, 0
          %v524 = vsel %vm514, 1, 0
          %v525 = vsel %vm515, 1, 0
          %v526 = vsel %vm516, 1, 0
          %vm527 = vcmp.eq.s32.totalorder %v517, 1
          %vm528 = vcmp.eq.s32.totalorder %v518, 1
          %vm529 = vcmp.eq.s32.totalorder %v519, 1
          %vm530 = vcmp.eq.s32.totalorder %v520, 1
          %vm531 = vcmp.eq.s32.totalorder %v521, 1
          %vm532 = vcmp.eq.s32.totalorder %v522, 1
          %vm533 = vcmp.eq.s32.totalorder %v523, 1
          %vm534 = vcmp.eq.s32.totalorder %v524, 1
          %vm535 = vcmp.eq.s32.totalorder %v525, 1
          %vm536 = vcmp.eq.s32.totalorder %v526, 1
          %v537 = vsel %vm527, %v326, 0.0
          %v538 = vsel %vm528, %v327, 0.0
          %v539 = vsel %vm529, %v328, 0.0
          %v540 = vsel %vm530, %v329, 0.0
          %v541 = vsel %vm531, %v330, 0.0
          %v542 = vsel %vm532, %v331, 0.0
          %v543 = vsel %vm533, %v332, 0.0
          %v544 = vsel %vm534, %v333, 0.0
          %v545 = vsel %vm535, %v334, 0.0
          %v546 = vsel %vm536, %v335, 0.0
          %v547 = vpack.c.bf16 %v538, %v537
          %v548 = vpack.c.bf16 %v540, %v539
          %v549 = vpack.c.bf16 %v542, %v541
          %v550 = vpack.c.bf16 %v544, %v543
          %v551 = vpack.c.bf16 %v546, %v545
          %v557 = vunpack.c.l.b16 %v547
          %v558 = vunpack.c.h.b16 %v547
          %v559 = vunpack.c.l.b16 %v548
          %v560 = vunpack.c.h.b16 %v548
          %v561 = vunpack.c.l.b16 %v549
          %v562 = vunpack.c.h.b16 %v549
          %v563 = vunpack.c.l.b16 %v550
          %v564 = vunpack.c.h.b16 %v550
          %v565 = vunpack.c.l.b16 %v551
          %v566 = vunpack.c.h.b16 %v551
          %v567 = vpack.c.b16 %v557, %v557
          %v568 = vpack.c.b16 %v558, %v558
          %v569 = vpack.c.b16 %v559, %v559
          %v570 = vpack.c.b16 %v560, %v560
          %v571 = vpack.c.b16 %v561, %v561
          %v572 = vpack.c.b16 %v562, %v562
          %v573 = vpack.c.b16 %v563, %v563
          %v574 = vpack.c.b16 %v564, %v564
          %v575 = vpack.c.b16 %v565, %v565
          %v576 = vpack.c.b16 %v566, %v566
          %vm577 = vsmask.f32 1280
          %vm578 = vsmask.f32 5392
          %vm579 = vmor %vm577, %vm578
          %v581 = vshrl.u32 %v567, 16
          %v583 = vrot.slane %v581, 6
          %v584 = vshll.u32 %v567, 16
          %v586 = vrot.slane %v584, 7
          %v587 = vor.u32 %v583, %v586
          %v588 = vrot.slane %v587, 4
          %v590 = vshrl.u32 %v568, 16
          %v592 = vrot.slane %v590, 6
          %v593 = vshll.u32 %v568, 16
          %v595 = vrot.slane %v593, 7
          %v596 = vor.u32 %v592, %v595
          %v597 = vsel %vm579, %v588, %v596
          %v598 = vrot.slane %v596, 4
          %v600 = vshrl.u32 %v569, 16
          %v602 = vrot.slane %v600, 6
          %v603 = vshll.u32 %v569, 16
          %v605 = vrot.slane %v603, 7
          %v606 = vor.u32 %v602, %v605
          %v607 = vsel %vm579, %v598, %v606
          %v608 = vrot.slane %v606, 4
          %v610 = vshrl.u32 %v570, 16
          %v612 = vrot.slane %v610, 6
          %v613 = vshll.u32 %v570, 16
          %v615 = vrot.slane %v613, 7
          %v616 = vor.u32 %v612, %v615
          %v617 = vsel %vm579, %v608, %v616
          %v618 = vrot.slane %v616, 4
          %v620 = vshrl.u32 %v571, 16
          %v622 = vrot.slane %v620, 6
          %v623 = vshll.u32 %v571, 16
          %v625 = vrot.slane %v623, 7
          %v626 = vor.u32 %v622, %v625
          %v627 = vsel %vm579, %v618, %v626
          %v628 = vrot.slane %v626, 4
          %v630 = vshrl.u32 %v572, 16
          %v632 = vrot.slane %v630, 6
          %v633 = vshll.u32 %v572, 16
          %v635 = vrot.slane %v633, 7
          %v636 = vor.u32 %v632, %v635
          %v637 = vsel %vm579, %v628, %v636
          %v638 = vrot.slane %v636, 4
          %v640 = vshrl.u32 %v573, 16
          %v642 = vrot.slane %v640, 6
          %v643 = vshll.u32 %v573, 16
          %v645 = vrot.slane %v643, 7
          %v646 = vor.u32 %v642, %v645
          %v647 = vsel %vm579, %v638, %v646
          %v648 = vrot.slane %v646, 4
          %v650 = vshrl.u32 %v574, 16
          %v652 = vrot.slane %v650, 6
          %v653 = vshll.u32 %v574, 16
          %v655 = vrot.slane %v653, 7
          %v656 = vor.u32 %v652, %v655
          %v657 = vsel %vm579, %v648, %v656
          %v658 = vrot.slane %v656, 4
          %v660 = vshrl.u32 %v575, 16
          %v662 = vrot.slane %v660, 6
          %v663 = vshll.u32 %v575, 16
          %v665 = vrot.slane %v663, 7
          %v666 = vor.u32 %v662, %v665
          %v667 = vsel %vm579, %v658, %v666
          %v668 = vrot.slane %v666, 4
          %v670 = vshrl.u32 %v576, 16
          %v672 = vrot.slane %v670, 6
          %v673 = vshll.u32 %v576, 16
          %v675 = vrot.slane %v673, 7
          %v676 = vor.u32 %v672, %v675
          %v677 = vsel %vm579, %v668, %v676
          %v678 = vrot.slane %v676, 4
          %vm690 = vcmask 1043457
          %vm691 = vsmask.f32 7942
          %vm692 = vmand %vm690, %vm691
          %v693 = vld [vmem:[%s246 + $0x4] sm:$0xe]
          %v694 = vsel %vm692, %v587, %v693
          %695 = vst [vmem:[%s246 + $0x4] sm:$0xe] %v694
          %696 = vst [vmem:[%s246 + $0x8] sm:$0xf] %v597
          %697 = vst [vmem:[%s246 + $0xc] sm:$0xf] %v607
          %698 = vst [vmem:[%s246 + $0x10] sm:$0xf] %v617
          %699 = vst [vmem:[%s246 + $0x14] sm:$0xf] %v627
          %700 = vst [vmem:[%s246 + $0x18] sm:$0xf] %v637
          %701 = vst [vmem:[%s246 + $0x1c] sm:$0xf] %v647
          %702 = vst [vmem:[%s246 + $0x20] sm:$0xf] %v657
          %703 = vst [vmem:[%s246 + $0x24] sm:$0xf] %v667
          %704 = vst [vmem:[%s246 + $0x28] sm:$0xf] %v677
          %vm705 = vcmask 1041408
          %vm706 = vmand %vm705, %vm577
          %v707 = vld [vmem:[%s246 + $0x2c] sm:$0x3]
          %v708 = vsel %vm706, %v678, %v707
          %709 = vst [vmem:[%s246 + $0x2c] sm:$0x3] %v708
        $region48: #{basic_block_forward.5} parent=31 // pred_fallthru
          _
        %s710 = sand.u32 %s123, 1
        %s711 = scalar_lea.sflag [#allocation4], %s710
        %s712 = sand.u32 %s123, 1
        %s713 = smul.addr %s712, 52
        %s714 = scalar_lea.vmem [#allocation8], %s713
        // Predicated region
        $region49: #{basic_block_forward.5} parent=31 // pred_check
          %p715 = pneg %p133
        $region50: #{basic_block_forward.5} parent=31 // pred_check_branch
          %717 = sbr.rel (%p715) target = $region52
        $region51: #{basic_block_forward.5} parent=31 // pred_region
          %s719 = ssub.s32 832, 832
          %720 = vsyncadd %s711, %s719
          %s721 = smul.addr %s26, 13
          %s722 = smul.addr %s25, 130
          %s723 = sadd.s32 %s721, %s722
          %s724 = smul.addr %s723, 64
          %s725 = scalar_lea.hbm %s3, %s724
          %s726 = sshll.u32 %s714, 4
          %s727 = int_to_ptr.vmem [resolvable:$true] %s726
          %732 = dma.vmem_to_hbm [thread:$0]  %s727, 832, %s725, %s711, 64, 64, 4
        $region52: #{basic_block_forward.5} parent=31 // pred_fallthru
          _
      $region32: #{basic_block_forward.5} parent=5 // pred_fallthru
        _
      %p733 = scmp.le.s32.totalorder 2, %s16
      // Predicated region
      $region53: #{basic_block_forward.5} parent=5 // pred_check
        %p734 = pneg %p733
      $region54: #{basic_block_forward.5} parent=5 // pred_check_branch
        %736 = sbr.rel (%p734) target = $region56
      $region55: #{basic_block_forward.5} parent=5 // pred_region
        %s737 = ssub.s32 %s16, 2
        // Predicated region
        $region57: #{basic_block_forward.5} parent=55 // pred_check
          %p738 = pneg %p139
        $region58: #{basic_block_forward.5} parent=55 // pred_check_branch
          %740 = sbr.rel (%p738) target = $region60
        $region59: #{basic_block_forward.5} parent=55 // pred_region
          %s741 = sand.u32 %s124, 1
          %s742 = scalar_lea.sflag [#allocation4], %s741
          %s743 = sand.u32 %s124, 1
          %s744 = smul.addr %s743, 52
          %s745 = scalar_lea.vmem [#allocation8], %s744
          %746 = dma.done %s742, 832
        $region60: #{basic_block_forward.5} parent=55 // pred_fallthru
          _
      $region56: #{basic_block_forward.5} parent=5 // pred_fallthru
        _
    $region6: #{basic_block_forward.5} parent=1 // loop_footer
      %s20 = sadd.s32 1, %s16
    $region7: #{basic_block_forward.5} parent=1 // loop_footer_branch
      %15 = sbr.rel target = $region3
    $region8: #{basic_block_forward.5} parent=1 // loop_exit
      _
    %747 = vsyncpa [#allocation3], 1
    %s748 = scalar_lea.sflag [#allocation3], 1
    %749 = vsyncpa %s748, 1
    %750 = vsyncpa [#allocation6], 1
    %751 = vsyncpa [#allocation4], 1
    %s752 = scalar_lea.sflag [#allocation4], 1
    %753 = vsyncpa %s752, 1

// kernel: basic_block_forward.4
$region0: #{basic_block_forward.4}
  #allocation0 [shape = 'u32[]', space=smem, size = 0x4, offset = 0x4, fixed_abs, tag = 'smem constant byte address 0x4 - core index']
  #allocation1 [shape = 'u32[144,128]{1,0:T(1,128)}', space=vmem, size = 0x12000, scoped, tag = 'internal scratch']
  #allocation2 [shape = 'f32[80,128]{1,0:T(8,128)}', space=vmem, size = 0xa000, scoped, tag = 'scratch operand']
  %s0 = inlined_call_operand.hbm [shape: bf16[2,10,104,128], index: 0, kind: input, shape index: {}]
  %s1 = inlined_call_operand.hbm [shape: bf16[27,128,128], index: 1, kind: input, shape index: {}]
  %s2 = inlined_call_operand.hbm [shape: bf16[2,8,80,128], index: 2, kind: output, shape index: {0}]
  %s3 = inlined_call_operand.hbm [shape: f32[2,8,2,128], index: 3, kind: output, shape index: {1}]
  %4 = xla_tuple %s2, %s3
  %s5 = sld [smem:[#allocation0]]
  $region69: #{basic_block_forward.4} parent=0
    _
  %s7 = ssub.s32 1, %s5
  %s8 = scalar_select 0, %s7, %s5
  $region1: #{basic_block_forward.4} parent=0
    #allocation3 [shape = 'u8[53248]{0}', space=vmem, size = 0xd000, scoped, tag = 'input window, operand 0']
    #allocation4 [shape = 's32[2]{0}', space=sflag, size = 0x8, scoped, tag = 'scoped memory for basic_block_forward.4']
    #allocation5 [shape = 's32[2]{0}', space=sflag, size = 0x8, scoped, tag = 'scoped memory for basic_block_forward.4']
    #allocation6 [shape = 'u8[884736]{0}', space=vmem, size = 0xd8000, scoped, tag = 'input window, operand 1, single buffered']
    #allocation7 [shape = 's32[1]{0}', space=sflag, size = 0x4, scoped, tag = 'scoped memory for basic_block_forward.4']
    #allocation8 [shape = 'u8[40960]{0}', space=vmem, size = 0xa000, scoped, tag = 'output window, operand 0']
    #allocation9 [shape = 'u8[2048]{0}', space=vmem, size = 0x800, scoped, tag = 'output window, operand 1']
    #allocation10 [shape = 's32[2]{0}', space=sflag, size = 0x8, scoped, tag = 'scoped memory for basic_block_forward.4']
    %9 = vsyncpa [#allocation4], 0
    %s10 = scalar_lea.sflag [#allocation4], 1
    %11 = vsyncpa %s10, 0
    %12 = vsyncpa [#allocation7], 0
    %13 = vsyncpa [#allocation5], 0
    %s14 = scalar_lea.sflag [#allocation5], 1
    %15 = vsyncpa %s14, 0
    %16 = vsyncpa [#allocation10], 0
    %s17 = scalar_lea.sflag [#allocation10], 1
    %18 = vsyncpa %s17, 0
    loop: start=0, step=1, limit=50
    $region2: #{basic_block_forward.4} parent=1 // loop_pre_header
      _
    $region3: #{basic_block_forward.4} parent=1 // loop_header
      %s20 = sphi 0, %s24
      %p21 = scmp.ge.s32.totalorder %s20, 50
      %s27 = sphi 0, %s46
      %s28 = sphi 0, %s42
      %s29 = sphi 0, %s38
      %s30 = sphi 0, %s27
      %s31 = sphi 0, %s28
      %s32 = sphi 0, %s29
      %s33 = sphi 0, %s30
      %s34 = sphi 0, %s31
      %s35 = sphi 0, %s32
      %s53 = sphi 0, %s55
      %s56 = sphi 0, %s53
      %s57 = sphi 0, %s56
      %s73 = sphi 0, %s57
      %s77 = sphi 0, %s77
      %s79 = sphi 0, %s77
      %s80 = sphi 0, %s79
      %s94 = sphi 0, %s80
      %s102 = sphi 0, %s104
      %s105 = sphi 0, %s102
      %s106 = sphi 0, %s105
      %s122 = sphi 0, %s106
      %s130 = sphi 0, %s132
      %s133 = sphi 0, %s130
      %s134 = sphi 0, %s133
      %s150 = sphi 0, %s134
    $region4: #{basic_block_forward.4} parent=1 // loop_header_branch
      %23 = sbr.rel (%p21) target = $region8
    $region5: #{basic_block_forward.4} parent=1 // loop_body
      %s25 = ssub.s32 %s20, 1
      %s26 = ssub.s32 %s20, 2
      %s36 = sadd.s32 1, %s29
      %p37 = scmp.ge.s32.totalorder %s36, 3
      %s38 = scalar_select %p37, 0, %s36
      %s39 = sadd.s32 1, %s28
      %s40 = scalar_select %p37, %s39, %s28
      %p41 = scmp.ge.s32.totalorder %s40, 8
      %s42 = scalar_select %p41, 0, %s40
      %s43 = sadd.s32 1, %s27
      %s44 = scalar_select %p41, %s43, %s27
      %p45 = scmp.ge.s32.totalorder %s44, 2
      %s46 = scalar_select %p45, 0, %s44
      %s47 = sadd.s32 %s28, %s29
      %s48 = sadd.s32 %s42, %s38
      %s49 = ssub.s32 %s27, %s46
      %s50 = ssub.s32 %s47, %s48
      %s51 = sor.u32 %s49, %s50
      %p52 = scmp.eq.s32.totalorder %s51, 0
      %s54 = sadd.s32 %s53, 1
      %s55 = scalar_select %p52, %s53, %s54
      %p58 = pneg %p52
      %p59 = scmp.eq.s32.totalorder %s20, 47
      %p60 = por %p58, %p59
      %p61 = scmp.ne.s32.totalorder %s53, %s56
      %p62 = scmp.eq.s32.totalorder %s20, 0
      %p63 = por %p61, %p62
      %p64 = scmp.ne.s32.totalorder %s53, %s56
      %p65 = scmp.eq.s32.totalorder %s25, 47
      %p66 = por %p64, %p65
      %p67 = scmp.ne.s32.totalorder %s56, %s57
      %p68 = scmp.eq.s32.totalorder %s25, 0
      %p69 = por %p67, %p68
      %p70 = scmp.ne.s32.totalorder %s56, %s57
      %p71 = scmp.eq.s32.totalorder %s26, 47
      %p72 = por %p70, %p71
      %p74 = scmp.ne.s32.totalorder %s57, %s73
      %p75 = scmp.eq.s32.totalorder %s26, 0
      %p76 = por %p74, %p75
      %s78 = sadd.s32 %s77, 1
      %p81 = scmp.eq.s32.totalorder %s20, 47
      %p82 = scmp.ne.s32.totalorder %s77, %s79
      %p83 = scmp.eq.s32.totalorder %s20, 0
      %p84 = por %p82, %p83
      %p85 = scmp.ne.s32.totalorder %s77, %s79
      %p86 = scmp.eq.s32.totalorder %s25, 47
      %p87 = por %p85, %p86
      %p88 = scmp.ne.s32.totalorder %s79, %s80
      %p89 = scmp.eq.s32.totalorder %s25, 0
      %p90 = por %p88, %p89
      %p91 = scmp.ne.s32.totalorder %s79, %s80
      %p92 = scmp.eq.s32.totalorder %s26, 47
      %p93 = por %p91, %p92
      %p95 = scmp.ne.s32.totalorder %s80, %s94
      %p96 = scmp.eq.s32.totalorder %s26, 0
      %p97 = por %p95, %p96
      %s98 = ssub.s32 %s27, %s46
      %s99 = ssub.s32 %s28, %s42
      %s100 = sor.u32 %s98, %s99
      %p101 = scmp.eq.s32.totalorder %s100, 0
      %s103 = sadd.s32 %s102, 1
      %s104 = scalar_select %p101, %s102, %s103
      %p107 = pneg %p101
      %p108 = scmp.eq.s32.totalorder %s20, 47
      %p109 = por %p107, %p108
      %p110 = scmp.ne.s32.totalorder %s102, %s105
      %p111 = scmp.eq.s32.totalorder %s20, 0
      %p112 = por %p110, %p111
      %p113 = scmp.ne.s32.totalorder %s102, %s105
      %p114 = scmp.eq.s32.totalorder %s25, 47
      %p115 = por %p113, %p114
      %p116 = scmp.ne.s32.totalorder %s105, %s106
      %p117 = scmp.eq.s32.totalorder %s25, 0
      %p118 = por %p116, %p117
      %p119 = scmp.ne.s32.totalorder %s105, %s106
      %p120 = scmp.eq.s32.totalorder %s26, 47
      %p121 = por %p119, %p120
      %p123 = scmp.ne.s32.totalorder %s106, %s122
      %p124 = scmp.eq.s32.totalorder %s26, 0
      %p125 = por %p123, %p124
      %s126 = ssub.s32 %s27, %s46
      %s127 = ssub.s32 %s28, %s42
      %s128 = sor.u32 %s126, %s127
      %p129 = scmp.eq.s32.totalorder %s128, 0
      %s131 = sadd.s32 %s130, 1
      %s132 = scalar_select %p129, %s130, %s131
      %p135 = pneg %p129
      %p136 = scmp.eq.s32.totalorder %s20, 47
      %p137 = por %p135, %p136
      %p138 = scmp.ne.s32.totalorder %s130, %s133
      %p139 = scmp.eq.s32.totalorder %s20, 0
      %p140 = por %p138, %p139
      %p141 = scmp.ne.s32.totalorder %s130, %s133
      %p142 = scmp.eq.s32.totalorder %s25, 47
      %p143 = por %p141, %p142
      %p144 = scmp.ne.s32.totalorder %s133, %s134
      %p145 = scmp.eq.s32.totalorder %s25, 0
      %p146 = por %p144, %p145
      %p147 = scmp.ne.s32.totalorder %s133, %s134
      %p148 = scmp.eq.s32.totalorder %s26, 47
      %p149 = por %p147, %p148
      %p151 = scmp.ne.s32.totalorder %s134, %s150
      %p152 = scmp.eq.s32.totalorder %s26, 0
      %p153 = por %p151, %p152
      %p154 = scmp.le.s32.totalorder 1, %s20
      %p155 = scmp.lt.s32.totalorder %s20, 49
      %p156 = pnand %p154, %p155
      %p157 = pneg %p156
      // Predicated region
      $region9: #{basic_block_forward.4} parent=5 // pred_check
        _
      $region10: #{basic_block_forward.4} parent=5 // pred_check_branch
        %159 = sbr.rel (%p156) target = $region12
      $region11: #{basic_block_forward.4} parent=5 // pred_region
        %s160 = ssub.s32 %s20, 1
        // Predicated region
        $region13: #{basic_block_forward.4} parent=11 // pred_check
          %p161 = pneg %p90
        $region14: #{basic_block_forward.4} parent=11 // pred_check_branch
          %163 = sbr.rel (%p161) target = $region16
        $region15: #{basic_block_forward.4} parent=11 // pred_region
          %s165 = ssub.s32 27648, 27648
          %166 = vsyncadd [#allocation7], %s165
          %s167 = sshll.u32 [#allocation6], 4
          %s168 = int_to_ptr.vmem [resolvable:$true] %s167
          %173 = dma.hbm_to_vmem [thread:$0]  %s1, 27648, %s168, [#allocation7], 64, 64, 4
        $region16: #{basic_block_forward.4} parent=11 // pred_fallthru
          _
      $region12: #{basic_block_forward.4} parent=5 // pred_fallthru
        _
      %p174 = scmp.lt.s32.totalorder %s20, 48
      // Predicated region
      $region17: #{basic_block_forward.4} parent=5 // pred_check
        %p175 = pneg %p174
      $region18: #{basic_block_forward.4} parent=5 // pred_check_branch
        %177 = sbr.rel (%p175) target = $region20
      $region19: #{basic_block_forward.4} parent=5 // pred_region
        // Predicated region
        $region21: #{basic_block_forward.4} parent=19 // pred_check
          %p178 = pneg %p63
        $region22: #{basic_block_forward.4} parent=19 // pred_check_branch
          %180 = sbr.rel (%p178) target = $region24
        $region23: #{basic_block_forward.4} parent=19 // pred_region
          %s181 = sand.u32 %s53, 1
          %s182 = scalar_lea.sflag [#allocation4], %s181
          %s183 = sand.u32 %s53, 1
          %s184 = smul.addr %s183, 52
          %s185 = scalar_lea.vmem [#allocation3], %s184
          %s186 = sadd.s32 %s28, %s29
          %s188 = ssub.s32 832, 832
          %189 = vsyncadd %s182, %s188
          %s190 = smul.addr %s186, 13
          %s191 = smul.addr %s27, 130
          %s192 = sadd.s32 %s190, %s191
          %s193 = smul.addr %s192, 64
          %s194 = scalar_lea.hbm %s0, %s193
          %s195 = sshll.u32 %s185, 4
          %s196 = int_to_ptr.vmem [resolvable:$true] %s195
          %201 = dma.hbm_to_vmem [thread:$0]  %s194, 832, %s196, %s182, 64, 64, 4
        $region24: #{basic_block_forward.4} parent=19 // pred_fallthru
          _
      $region20: #{basic_block_forward.4} parent=5 // pred_fallthru
        _
      %p202 = scmp.le.s32.totalorder 1, %s20
      %p203 = scmp.lt.s32.totalorder %s20, 49
      %p204 = pnand %p202, %p203
      %p205 = pneg %p204
      // Predicated region
      $region25: #{basic_block_forward.4} parent=5 // pred_check
        _
      $region26: #{basic_block_forward.4} parent=5 // pred_check_branch
        %207 = sbr.rel (%p204) target = $region28
      $region27: #{basic_block_forward.4} parent=5 // pred_region
        %s208 = ssub.s32 %s20, 1
        %s209 = sand.u32 %s56, 1
        %s210 = scalar_lea.sflag [#allocation4], %s209
        %s211 = sand.u32 %s56, 1
        %s212 = smul.addr %s211, 52
        %s213 = scalar_lea.vmem [#allocation3], %s212
        // Predicated region
        $region29: #{basic_block_forward.4} parent=27 // pred_check
          %p214 = pneg %p69
        $region30: #{basic_block_forward.4} parent=27 // pred_check_branch
          %216 = sbr.rel (%p214) target = $region32
        $region31: #{basic_block_forward.4} parent=27 // pred_region
          %217 = dma.done %s210, 832
        $region32: #{basic_block_forward.4} parent=27 // pred_fallthru
          _
        // Predicated region
        $region33: #{basic_block_forward.4} parent=27 // pred_check
          %p218 = pneg %p90
        $region34: #{basic_block_forward.4} parent=27 // pred_check_branch
          %220 = sbr.rel (%p218) target = $region36
        $region35: #{basic_block_forward.4} parent=27 // pred_region
          %221 = dma.done [#allocation7], 27648
        $region36: #{basic_block_forward.4} parent=27 // pred_fallthru
          _
        %s222 = sand.u32 %s56, 1
        %s223 = scalar_lea.sflag [#allocation4], %s222
        %s224 = sand.u32 %s56, 1
        %s225 = smul.addr %s224, 52
        %s226 = scalar_lea.vmem [#allocation3], %s225
        %p227 = pneg %p69
        %p228 = pneg %p66
        %p229 = pneg %p90
        %p230 = pneg %p87
        %p231 = pneg %p118
        %p232 = pneg %p115
        %s233 = sand.u32 %s105, 1
        %s234 = scalar_lea.sflag [#allocation5], %s233
        %s235 = sand.u32 %s105, 1
        %s236 = smul.addr %s235, 40
        %s237 = scalar_lea.vmem [#allocation8], %s236
        %p238 = pneg %p146
        %p239 = pneg %p143
        %s240 = sand.u32 %s133, 1
        %s241 = scalar_lea.sflag [#allocation10], %s240
        %s242 = sand.u32 %s133, 1
        %s243 = smul.addr %s242, 2
        %s244 = scalar_lea.vmem [#allocation9], %s243
        %s245 = sadd.s32 %s31, %s32
        %v247 = vld [vmem:[%s213] sm:$0xf]
        %v248 = vld [vmem:[%s213 + $0x4] sm:$0xf]
        %v249 = vld [vmem:[%s213 + $0x8] sm:$0xf]
        %v250 = vld [vmem:[%s213 + $0xc] sm:$0xf]
        %v251 = vld [vmem:[%s213 + $0x10] sm:$0xf]
        %v252 = vld [vmem:[%s213 + $0x14] sm:$0xf]
        %v253 = vld [vmem:[%s213 + $0x18] sm:$0xf]
        %v254 = vld [vmem:[%s213 + $0x1c] sm:$0xf]
        %v255 = vld [vmem:[%s213 + $0x20] sm:$0xf]
        %v256 = vld [vmem:[%s213 + $0x24] sm:$0xf]
        %s257 = smul.u32 %s32, 9
        %s258 = smul.u32 %s257, 16
        %s259 = smul.addr %s258, 4
        %s260 = scalar_lea.vmem [#allocation6], %s259
        %v261 = vld [vmem:[%s260] sm:$0xf]
        %v262 = vld [vmem:[%s260 + $0x4] sm:$0xf]
        %v263 = vld [vmem:[%s260 + $0x8] sm:$0xf]
        %v264 = vld [vmem:[%s260 + $0xc] sm:$0xf]
        %v265 = vld [vmem:[%s260 + $0x10] sm:$0xf]
        %v266 = vld [vmem:[%s260 + $0x14] sm:$0xf]
        %v267 = vld [vmem:[%s260 + $0x18] sm:$0xf]
        %v268 = vld [vmem:[%s260 + $0x1c] sm:$0xf]
        %v269 = vld [vmem:[%s260 + $0x20] sm:$0xf]
        %v270 = vld [vmem:[%s260 + $0x24] sm:$0xf]
        %v271 = vld [vmem:[%s260 + $0x28] sm:$0xf]
        %v272 = vld [vmem:[%s260 + $0x2c] sm:$0xf]
        %v273 = vld [vmem:[%s260 + $0x30] sm:$0xf]
        %v274 = vld [vmem:[%s260 + $0x34] sm:$0xf]
        %v275 = vld [vmem:[%s260 + $0x38] sm:$0xf]
        %v276 = vld [vmem:[%s260 + $0x3c] sm:$0xf]
        %v277 = vld [vmem:[%s213 + $0x28] sm:$0x1]
        %s278 = sadd.s32 %s257, 1
        %s279 = smul.u32 %s278, 16
        %s280 = smul.addr %s279, 4
        %s281 = scalar_lea.vmem [#allocation6], %s280
        %v282 = vld [vmem:[%s281] sm:$0xf]
        %v283 = vld [vmem:[%s281 + $0x4] sm:$0xf]
        %v284 = vld [vmem:[%s281 + $0x8] sm:$0xf]
        %v285 = vld [vmem:[%s281 + $0xc] sm:$0xf]
        %v286 = vld [vmem:[%s281 + $0x10] sm:$0xf]
        %v287 = vld [vmem:[%s281 + $0x14] sm:$0xf]
        %v288 = vld [vmem:[%s281 + $0x18] sm:$0xf]
        %v289 = vld [vmem:[%s281 + $0x1c] sm:$0xf]
        %v290 = vld [vmem:[%s281 + $0x20] sm:$0xf]
        %v291 = vld [vmem:[%s281 + $0x24] sm:$0xf]
        %v292 = vld [vmem:[%s281 + $0x28] sm:$0xf]
        %v293 = vld [vmem:[%s281 + $0x2c] sm:$0xf]
        %v294 = vld [vmem:[%s281 + $0x30] sm:$0xf]
        %v295 = vld [vmem:[%s281 + $0x34] sm:$0xf]
        %v296 = vld [vmem:[%s281 + $0x38] sm:$0xf]
        %v297 = vld [vmem:[%s281 + $0x3c] sm:$0xf]
        %v309 = vunpack.c.l.b16 %v247
        %v310 = vunpack.c.l.b16 %v248
        %v311 = vunpack.c.l.b16 %v249
        %v312 = vunpack.c.l.b16 %v250
        %v313 = vunpack.c.l.b16 %v251
        %v314 = vunpack.c.l.b16 %v252
        %v315 = vunpack.c.l.b16 %v253
        %v316 = vunpack.c.l.b16 %v254
        %v317 = vunpack.c.l.b16 %v255
        %v318 = vunpack.c.l.b16 %v256
        %v319 = vunpack.c.l.b16 %v277
        %v320 = vpack.c.b16 %v310, %v309
        %v321 = vpack.c.b16 %v312, %v311
        %v322 = vpack.c.b16 %v314, %v313
        %v323 = vpack.c.b16 %v316, %v315
        %v324 = vpack.c.b16 %v318, %v317
        %v325 = vpack.c.b16 %v319, %v319
        %vm326 = vsmask.f32 7424
        %v328 = vshrl.u32 %v320, 16
        %v330 = vshll.u32 %v320, 16
        %v332 = vrot.slane %v330, 1
        %v333 = vor.u32 %v328, %v332
        %v335 = vshll.u32 %v321, 16
        %v337 = vrot.slane %v335, 1
        %v338 = vsel %vm326, %v333, %v337
        %v339 = vshrl.u32 %v321, 16
        %v341 = vor.u32 %v339, %v337
        %v343 = vshll.u32 %v322, 16
        %v345 = vrot.slane %v343, 1
        %v346 = vsel %vm326, %v341, %v345
        %v347 = vshrl.u32 %v322, 16
        %v349 = vor.u32 %v347, %v345
        %v351 = vshll.u32 %v323, 16
        %v353 = vrot.slane %v351, 1
        %v354 = vsel %vm326, %v349, %v353
        %v355 = vshrl.u32 %v323, 16
        %v357 = vor.u32 %v355, %v353
        %v359 = vshll.u32 %v324, 16
        %v361 = vrot.slane %v359, 1
        %v362 = vsel %vm326, %v357, %v361
        %v363 = vshrl.u32 %v324, 16
        %v365 = vor.u32 %v363, %v361
        %v367 = vshll.u32 %v325, 16
        %v369 = vrot.slane %v367, 1
        %v370 = vsel %vm326, %v365, %v369
        %v392 = vunpack.c.l.b16 %v282
        %v393 = vunpack.c.l.b16 %v283
        %v394 = vunpack.c.l.b16 %v284
        %v395 = vunpack.c.l.b16 %v285
        %v396 = vunpack.c.l.b16 %v286
        %v397 = vunpack.c.l.b16 %v287
        %v398 = vunpack.c.l.b16 %v288
        %v399 = vunpack.c.l.b16 %v289
        %v400 = vunpack.c.l.b16 %v290
        %v401 = vunpack.c.l.b16 %v291
        %v402 = vunpack.c.l.b16 %v292
        %v403 = vunpack.c.l.b16 %v293
        %v404 = vunpack.c.l.b16 %v294
        %v405 = vunpack.c.l.b16 %v295
        %v406 = vunpack.c.l.b16 %v296
        %v407 = vunpack.c.l.b16 %v297
        %v408 = vpack.c.b16 %v393, %v392
        %v409 = vpack.c.b16 %v395, %v394
        %v410 = vpack.c.b16 %v397, %v396
        %v411 = vpack.c.b16 %v399, %v398
        %v412 = vpack.c.b16 %v401, %v400
        %v413 = vpack.c.b16 %v403, %v402
        %v414 = vpack.c.b16 %v405, %v404
        %v415 = vpack.c.b16 %v407, %v406
        %424 = vmatprep.subr.bf16.mxu0 0
        %425 = vmatpush1.bf16.msra.mxu0 %v408
        %426 = vmatprep.subr.bf16.mxu0 0
        %427 = vmatpush1.bf16.msra.mxu0 %v409
        %428 = vmatprep.subr.bf16.mxu0 0
        %429 = vmatpush1.bf16.msra.mxu0 %v410
        %430 = vmatprep.subr.bf16.mxu0 0
        %431 = vmatpush1.bf16.msra.mxu0 %v411
        %432 = vmatprep.subr.bf16.mxu0 0
        %433 = vmatpush1.bf16.msra.mxu0 %v412
        %434 = vmatprep.subr.bf16.mxu0 0
        %435 = vmatpush1.bf16.msra.mxu0 %v413
        %436 = vmatprep.subr.bf16.mxu0 0
        %437 = vmatpush1.bf16.msra.mxu0 %v414
        %438 = vmatprep.subr.bf16.mxu0 0
        %439 = vmatpush1.bf16.msra.mxu0 %v415
        %440 = vmatprep.subr.bf16.mxu0 0
        %441 = vmatpush1.bf16.msra.mxu0 0
        %442 = vmatprep.subr.bf16.mxu0 0
        %443 = vmatpush1.bf16.msra.mxu0 0
        %444 = vmatprep.subr.bf16.mxu0 0
        %445 = vmatpush1.bf16.msra.mxu0 0
        %446 = vmatprep.subr.bf16.mxu0 0
        %447 = vmatpush1.bf16.msra.mxu0 0
        %448 = vmatprep.subr.bf16.mxu0 0
        %449 = vmatpush1.bf16.msra.mxu0 0
        %450 = vmatprep.subr.bf16.mxu0 0
        %451 = vmatpush1.bf16.msra.mxu0 0
        %452 = vmatprep.subr.bf16.mxu0 0
        %453 = vmatpush1.bf16.msra.mxu0 0
        %454 = vmatprep.subr.bf16.mxu0 0
        %455 = vmatpush1.bf16.msra.mxu0 0
        %456 = vmatprep.mubr.bf16.mxu0 0
        %457 = vmatmul.mubr.bf16.gmra.mrb[0].mxu0 %v338
        %v458 = vpop.f32.mrb[0].mxu0
        %v459 = vadd.f32 0.0, %v458
        %v460 = vpop.f32.mrb[0].mxu0
        %v461 = vpop.f32.mrb[0].mxu0
        %v462 = vadd.f32 0.0, %v461
        %v463 = vpop.f32.mrb[0].mxu0
        %464 = vmatprep.mubr.bf16.mxu0 0
        %465 = vmatmul.mubr.bf16.gmra.mrb[0].mxu0 %v346
        %v466 = vpop.f32.mrb[0].mxu0
        %v467 = vadd.f32 0.0, %v466
        %v468 = vpop.f32.mrb[0].mxu0
        %v469 = vpop.f32.mrb[0].mxu0
        %v470 = vadd.f32 0.0, %v469
        %v471 = vpop.f32.mrb[0].mxu0
        %472 = vmatprep.mubr.bf16.mxu0 0
        %473 = vmatmul.mubr.bf16.gmra.mrb[0].mxu0 %v354
        %v474 = vpop.f32.mrb[0].mxu0
        %v475 = vadd.f32 0.0, %v474
        %v476 = vpop.f32.mrb[0].mxu0
        %v477 = vpop.f32.mrb[0].mxu0
        %v478 = vadd.f32 0.0, %v477
        %v479 = vpop.f32.mrb[0].mxu0
        %480 = vmatprep.mubr.bf16.mxu0 0
        %481 = vmatmul.mubr.bf16.gmra.mrb[0].mxu0 %v362
        %v482 = vpop.f32.mrb[0].mxu0
        %v483 = vadd.f32 0.0, %v482
        %v484 = vpop.f32.mrb[0].mxu0
        %v485 = vpop.f32.mrb[0].mxu0
        %v486 = vadd.f32 0.0, %v485
        %v487 = vpop.f32.mrb[0].mxu0
        %488 = vmatprep.mubr.bf16.mxu0 0
        %489 = vmatmul.mubr.bf16.gmra.mrb[0].mxu0 %v370
        %v490 = vpop.f32.mrb[0].mxu0
        %v491 = vadd.f32 0.0, %v490
        %v492 = vpop.f32.mrb[0].mxu0
        %v493 = vpop.f32.mrb[0].mxu0
        %v494 = vadd.f32 0.0, %v493
        %v495 = vpop.f32.mrb[0].mxu0
        %496 = vdwg.mxu0
        %v518 = vunpack.c.l.b16 %v261
        %v519 = vunpack.c.l.b16 %v262
        %v520 = vunpack.c.l.b16 %v263
        %v521 = vunpack.c.l.b16 %v264
        %v522 = vunpack.c.l.b16 %v265
        %v523 = vunpack.c.l.b16 %v266
        %v524 = vunpack.c.l.b16 %v267
        %v525 = vunpack.c.l.b16 %v268
        %v526 = vunpack.c.l.b16 %v269
        %v527 = vunpack.c.l.b16 %v270
        %v528 = vunpack.c.l.b16 %v271
        %v529 = vunpack.c.l.b16 %v272
        %v530 = vunpack.c.l.b16 %v273
        %v531 = vunpack.c.l.b16 %v274
        %v532 = vunpack.c.l.b16 %v275
        %v533 = vunpack.c.l.b16 %v276
        %v534 = vpack.c.b16 %v519, %v518
        %v535 = vpack.c.b16 %v521, %v520
        %v536 = vpack.c.b16 %v523, %v522
        %v537 = vpack.c.b16 %v525, %v524
        %v538 = vpack.c.b16 %v527, %v526
        %v539 = vpack.c.b16 %v529, %v528
        %v540 = vpack.c.b16 %v531, %v530
        %v541 = vpack.c.b16 %v533, %v532
        %550 = vmatprep.subr.bf16.mxu0 0
        %551 = vmatpush1.bf16.msra.mxu0 %v534
        %552 = vmatprep.subr.bf16.mxu0 0
        %553 = vmatpush1.bf16.msra.mxu0 %v535
        %554 = vmatprep.subr.bf16.mxu0 0
        %555 = vmatpush1.bf16.msra.mxu0 %v536
        %556 = vmatprep.subr.bf16.mxu0 0
        %557 = vmatpush1.bf16.msra.mxu0 %v537
        %558 = vmatprep.subr.bf16.mxu0 0
        %559 = vmatpush1.bf16.msra.mxu0 %v538
        %560 = vmatprep.subr.bf16.mxu0 0
        %561 = vmatpush1.bf16.msra.mxu0 %v539
        %562 = vmatprep.subr.bf16.mxu0 0
        %563 = vmatpush1.bf16.msra.mxu0 %v540
        %564 = vmatprep.subr.bf16.mxu0 0
        %565 = vmatpush1.bf16.msra.mxu0 %v541
        %566 = vmatprep.subr.bf16.mxu0 0
        %567 = vmatpush1.bf16.msra.mxu0 0
        %568 = vmatprep.subr.bf16.mxu0 0
        %569 = vmatpush1.bf16.msra.mxu0 0
        %570 = vmatprep.subr.bf16.mxu0 0
        %571 = vmatpush1.bf16.msra.mxu0 0
        %572 = vmatprep.subr.bf16.mxu0 0
        %573 = vmatpush1.bf16.msra.mxu0 0
        %574 = vmatprep.subr.bf16.mxu0 0
        %575 = vmatpush1.bf16.msra.mxu0 0
        %576 = vmatprep.subr.bf16.mxu0 0
        %577 = vmatpush1.bf16.msra.mxu0 0
        %578 = vmatprep.subr.bf16.mxu0 0
        %579 = vmatpush1.bf16.msra.mxu0 0
        %580 = vmatprep.subr.bf16.mxu0 0
        %581 = vmatpush1.bf16.msra.mxu0 0
        %582 = vmatprep.mubr.bf16.mxu0 0
        %583 = vmatmul.mubr.bf16.gmra.mrb[0].mxu0 %v320
        %v584 = vpop.f32.mrb[0].mxu0
        %v585 = vadd.f32 %v459, %v584
        %v586 = vpop.f32.mrb[0].mxu0
        %v587 = vpop.f32.mrb[0].mxu0
        %v588 = vadd.f32 %v462, %v587
        %v589 = vpop.f32.mrb[0].mxu0
        %590 = vmatprep.mubr.bf16.mxu0 0
        %591 = vmatmul.mubr.bf16.gmra.mrb[0].mxu0 %v321
        %v592 = vpop.f32.mrb[0].mxu0
        %v593 = vadd.f32 %v467, %v592
        %v594 = vpop.f32.mrb[0].mxu0
        %v595 = vpop.f32.mrb[0].mxu0
        %v596 = vadd.f32 %v470, %v595
        %v597 = vpop.f32.mrb[0].mxu0
        %598 = vmatprep.mubr.bf16.mxu0 0
        %599 = vmatmul.mubr.bf16.gmra.mrb[0].mxu0 %v322
        %v600 = vpop.f32.mrb[0].mxu0
        %v601 = vadd.f32 %v475, %v600
        %v602 = vpop.f32.mrb[0].mxu0
        %v603 = vpop.f32.mrb[0].mxu0
        %v604 = vadd.f32 %v478, %v603
        %v605 = vpop.f32.mrb[0].mxu0
        %606 = vmatprep.mubr.bf16.mxu0 0
        %607 = vmatmul.mubr.bf16.gmra.mrb[0].mxu0 %v323
        %v608 = vpop.f32.mrb[0].mxu0
        %v609 = vadd.f32 %v483, %v608
        %v610 = vpop.f32.mrb[0].mxu0
        %v611 = vpop.f32.mrb[0].mxu0
        %v612 = vadd.f32 %v486, %v611
        %v613 = vpop.f32.mrb[0].mxu0
        %614 = vmatprep.mubr.bf16.mxu0 0
        %615 = vmatmul.mubr.bf16.gmra.mrb[0].mxu0 %v324
        %v616 = vpop.f32.mrb[0].mxu0
        %v617 = vadd.f32 %v491, %v616
        %v618 = vpop.f32.mrb[0].mxu0
        %v619 = vpop.f32.mrb[0].mxu0
        %v620 = vadd.f32 %v494, %v619
        %v621 = vpop.f32.mrb[0].mxu0
        %622 = vdwg.mxu0
        %v623 = vld [vmem:[%s213] sm:$0xe]
        %s624 = sadd.s32 %s257, 2
        %s625 = smul.u32 %s624, 16
        %s626 = smul.addr %s625, 4
        %s627 = scalar_lea.vmem [#allocation6], %s626
        %v628 = vld [vmem:[%s627] sm:$0xf]
        %v629 = vld [vmem:[%s627 + $0x4] sm:$0xf]
        %v630 = vld [vmem:[%s627 + $0x8] sm:$0xf]
        %v631 = vld [vmem:[%s627 + $0xc] sm:$0xf]
        %v632 = vld [vmem:[%s627 + $0x10] sm:$0xf]
        %v633 = vld [vmem:[%s627 + $0x14] sm:$0xf]
        %v634 = vld [vmem:[%s627 + $0x18] sm:$0xf]
        %v635 = vld [vmem:[%s627 + $0x1c] sm:$0xf]
        %v636 = vld [vmem:[%s627 + $0x20] sm:$0xf]
        %v637 = vld [vmem:[%s627 + $0x24] sm:$0xf]
        %v638 = vld [vmem:[%s627 + $0x28] sm:$0xf]
        %v639 = vld [vmem:[%s627 + $0x2c] sm:$0xf]
        %v640 = vld [vmem:[%s627 + $0x30] sm:$0xf]
        %v641 = vld [vmem:[%s627 + $0x34] sm:$0xf]
        %v642 = vld [vmem:[%s627 + $0x38] sm:$0xf]
        %v643 = vld [vmem:[%s627 + $0x3c] sm:$0xf]
        %v645 = vunpack.c.l.b16 %v623
        %v646 = vpack.c.b16 %v310, %v645
        %vm647 = vcmask 1046528
        %v648 = vrot.slane %v646, 1
        %v649 = vrot.slane %v321, 1
        %v650 = vsel %vm647, %v648, %v649
        %v651 = vrot.slane %v322, 1
        %v652 = vsel %vm647, %v649, %v651
        %v653 = vrot.slane %v323, 1
        %v654 = vsel %vm647, %v651, %v653
        %v655 = vrot.slane %v324, 1
        %v656 = vsel %vm647, %v653, %v655
        %v657 = vrot.slane %v325, 1
        %v658 = vsel %vm647, %v655, %v657
        %v680 = vunpack.c.l.b16 %v628
        %v681 = vunpack.c.l.b16 %v629
        %v682 = vunpack.c.l.b16 %v630
        %v683 = vunpack.c.l.b16 %v631
        %v684 = vunpack.c.l.b16 %v632
        %v685 = vunpack.c.l.b16 %v633
        %v686 = vunpack.c.l.b16 %v634
        %v687 = vunpack.c.l.b16 %v635
        %v688 = vunpack.c.l.b16 %v636
        %v689 = vunpack.c.l.b16 %v637
        %v690 = vunpack.c.l.b16 %v638
        %v691 = vunpack.c.l.b16 %v639
        %v692 = vunpack.c.l.b16 %v640
        %v693 = vunpack.c.l.b16 %v641
        %v694 = vunpack.c.l.b16 %v642
        %v695 = vunpack.c.l.b16 %v643
        %v696 = vpack.c.b16 %v681, %v680
        %v697 = vpack.c.b16 %v683, %v682
        %v698 = vpack.c.b16 %v685, %v684
        %v699 = vpack.c.b16 %v687, %v686
        %v700 = vpack.c.b16 %v689, %v688
        %v701 = vpack.c.b16 %v691, %v690
        %v702 = vpack.c.b16 %v693, %v692
        %v703 = vpack.c.b16 %v695, %v694
        %712 = vmatprep.subr.bf16.mxu0 0
        %713 = vmatpush1.bf16.msra.mxu0 %v696
        %714 = vmatprep.subr.bf16.mxu0 0
        %715 = vmatpush1.bf16.msra.mxu0 %v697
        %716 = vmatprep.subr.bf16.mxu0 0
        %717 = vmatpush1.bf16.msra.mxu0 %v698
        %718 = vmatprep.subr.bf16.mxu0 0
        %719 = vmatpush1.bf16.msra.mxu0 %v699
        %720 = vmatprep.subr.bf16.mxu0 0
        %721 = vmatpush1.bf16.msra.mxu0 %v700
        %722 = vmatprep.subr.bf16.mxu0 0
        %723 = vmatpush1.bf16.msra.mxu0 %v701
        %724 = vmatprep.subr.bf16.mxu0 0
        %725 = vmatpush1.bf16.msra.mxu0 %v702
        %726 = vmatprep.subr.bf16.mxu0 0
        %727 = vmatpush1.bf16.msra.mxu0 %v703
        %728 = vmatprep.subr.bf16.mxu0 0
        %729 = vmatpush1.bf16.msra.mxu0 0
        %730 = vmatprep.subr.bf16.mxu0 0
        %731 = vmatpush1.bf16.msra.mxu0 0
        %732 = vmatprep.subr.bf16.mxu0 0
        %733 = vmatpush1.bf16.msra.mxu0 0
        %734 = vmatprep.subr.bf16.mxu0 0
        %735 = vmatpush1.bf16.msra.mxu0 0
        %736 = vmatprep.subr.bf16.mxu0 0
        %737 = vmatpush1.bf16.msra.mxu0 0
        %738 = vmatprep.subr.bf16.mxu0 0
        %739 = vmatpush1.bf16.msra.mxu0 0
        %740 = vmatprep.subr.bf16.mxu0 0
        %741 = vmatpush1.bf16.msra.mxu0 0
        %742 = vmatprep.subr.bf16.mxu0 0
        %743 = vmatpush1.bf16.msra.mxu0 0
        %744 = vmatprep.mubr.bf16.mxu0 0
        %745 = vmatmul.mubr.bf16.gmra.mrb[0].mxu0 %v650
        %v746 = vpop.f32.mrb[0].mxu0
        %v747 = vadd.f32 0.0, %v746
        %v748 = vpop.f32.mrb[0].mxu0
        %v749 = vpop.f32.mrb[0].mxu0
        %v750 = vadd.f32 0.0, %v749
        %v751 = vpop.f32.mrb[0].mxu0
        %752 = vmatprep.mubr.bf16.mxu0 0
        %753 = vmatmul.mubr.bf16.gmra.mrb[0].mxu0 %v652
        %v754 = vpop.f32.mrb[0].mxu0
        %v755 = vadd.f32 0.0, %v754
        %v756 = vpop.f32.mrb[0].mxu0
        %v757 = vpop.f32.mrb[0].mxu0
        %v758 = vadd.f32 0.0, %v757
        %v759 = vpop.f32.mrb[0].mxu0
        %760 = vmatprep.mubr.bf16.mxu0 0
        %761 = vmatmul.mubr.bf16.gmra.mrb[0].mxu0 %v654
        %v762 = vpop.f32.mrb[0].mxu0
        %v763 = vadd.f32 0.0, %v762
        %v764 = vpop.f32.mrb[0].mxu0
        %v765 = vpop.f32.mrb[0].mxu0
        %v766 = vadd.f32 0.0, %v765
        %v767 = vpop.f32.mrb[0].mxu0
        %768 = vmatprep.mubr.bf16.mxu0 0
        %769 = vmatmul.mubr.bf16.gmra.mrb[0].mxu0 %v656
        %v770 = vpop.f32.mrb[0].mxu0
        %v771 = vadd.f32 0.0, %v770
        %v772 = vpop.f32.mrb[0].mxu0
        %v773 = vpop.f32.mrb[0].mxu0
        %v774 = vadd.f32 0.0, %v773
        %v775 = vpop.f32.mrb[0].mxu0
        %776 = vmatprep.mubr.bf16.mxu0 0
        %777 = vmatmul.mubr.bf16.gmra.mrb[0].mxu0 %v658
        %v778 = vpop.f32.mrb[0].mxu0
        %v779 = vadd.f32 0.0, %v778
        %v780 = vpop.f32.mrb[0].mxu0
        %v781 = vpop.f32.mrb[0].mxu0
        %v782 = vadd.f32 0.0, %v781
        %v783 = vpop.f32.mrb[0].mxu0
        %784 = vdwg.mxu0
        %v785 = vadd.f32 %v585, %v747
        %v786 = vadd.f32 %v588, %v750
        %v787 = vadd.f32 %v593, %v755
        %v788 = vadd.f32 %v596, %v758
        %v789 = vadd.f32 %v601, %v763
        %v790 = vadd.f32 %v604, %v766
        %v791 = vadd.f32 %v609, %v771
        %v792 = vadd.f32 %v612, %v774
        %v793 = vadd.f32 %v617, %v779
        %v794 = vadd.f32 %v620, %v782
        %v795 = vld [vmem:[%s213 + $0x4] sm:$0xe]
        %v796 = vld [vmem:[%s213 + $0x8] sm:$0xf]
        %v797 = vld [vmem:[%s213 + $0xc] sm:$0xf]
        %v798 = vld [vmem:[%s213 + $0x10] sm:$0xf]
        %v799 = vld [vmem:[%s213 + $0x14] sm:$0xf]
        %v800 = vld [vmem:[%s213 + $0x18] sm:$0xf]
        %v801 = vld [vmem:[%s213 + $0x1c] sm:$0xf]
        %v802 = vld [vmem:[%s213 + $0x20] sm:$0xf]
        %v803 = vld [vmem:[%s213 + $0x24] sm:$0xf]
        %v804 = vld [vmem:[%s213 + $0x28] sm:$0xf]
        %v805 = vld [vmem:[%s213 + $0x2c] sm:$0x1]
        %s806 = sadd.s32 %s257, 3
        %s807 = smul.u32 %s806, 16
        %s808 = smul.addr %s807, 4
        %s809 = scalar_lea.vmem [#allocation6], %s808
        %v810 = vld [vmem:[%s809] sm:$0xf]
        %v811 = vld [vmem:[%s809 + $0x4] sm:$0xf]
        %v812 = vld [vmem:[%s809 + $0x8] sm:$0xf]
        %v813 = vld [vmem:[%s809 + $0xc] sm:$0xf]
        %v814 = vld [vmem:[%s809 + $0x10] sm:$0xf]
        %v815 = vld [vmem:[%s809 + $0x14] sm:$0xf]
        %v816 = vld [vmem:[%s809 + $0x18] sm:$0xf]
        %v817 = vld [vmem:[%s809 + $0x1c] sm:$0xf]
        %v818 = vld [vmem:[%s809 + $0x20] sm:$0xf]
        %v819 = vld [vmem:[%s809 + $0x24] sm:$0xf]
        %v820 = vld [vmem:[%s809 + $0x28] sm:$0xf]
        %v821 = vld [vmem:[%s809 + $0x2c] sm:$0xf]
        %v822 = vld [vmem:[%s809 + $0x30] sm:$0xf]
        %v823 = vld [vmem:[%s809 + $0x34] sm:$0xf]
        %v824 = vld [vmem:[%s809 + $0x38] sm:$0xf]
        %v825 = vld [vmem:[%s809 + $0x3c] sm:$0xf]
        %v837 = vunpack.c.l.b16 %v795
        %v838 = vunpack.c.l.b16 %v796
        %v839 = vunpack.c.l.b16 %v797
        %v840 = vunpack.c.l.b16 %v798
        %v841 = vunpack.c.l.b16 %v799
        %v842 = vunpack.c.l.b16 %v800
        %v843 = vunpack.c.l.b16 %v801
        %v844 = vunpack.c.l.b16 %v802
        %v845 = vunpack.c.l.b16 %v803
        %v846 = vunpack.c.l.b16 %v804
        %v847 = vunpack.c.l.b16 %v805
        %v848 = vpack.c.b16 %v838, %v837
        %v849 = vpack.c.b16 %v840, %v839
        %v850 = vpack.c.b16 %v842, %v841
        %v851 = vpack.c.b16 %v844, %v843
        %v852 = vpack.c.b16 %v846, %v845
        %v853 = vpack.c.b16 %v847, %v847
        %v854 = vrot.slane %v848, 1
        %v855 = vrot.slane %v849, 1
        %v856 = vsel %vm647, %v854, %v855
        %v857 = vrot.slane %v850, 1
        %v858 = vsel %vm647, %v855, %v857
        %v859 = vrot.slane %v851, 1
        %v860 = vsel %vm647, %v857, %v859
        %v861 = vrot.slane %v852, 1
        %v862 = vsel %vm647, %v859, %v861
        %v863 = vrot.slane %v853, 1
        %v864 = vsel %vm647, %v861, %v863
        %v886 = vunpack.c.l.b16 %v810
        %v887 = vunpack.c.l.b16 %v811
        %v888 = vunpack.c.l.b16 %v812
        %v889 = vunpack.c.l.b16 %v813
        %v890 = vunpack.c.l.b16 %v814
        %v891 = vunpack.c.l.b16 %v815
        %v892 = vunpack.c.l.b16 %v816
        %v893 = vunpack.c.l.b16 %v817
        %v894 = vunpack.c.l.b16 %v818
        %v895 = vunpack.c.l.b16 %v819
        %v896 = vunpack.c.l.b16 %v820
        %v897 = vunpack.c.l.b16 %v821
        %v898 = vunpack.c.l.b16 %v822
        %v899 = vunpack.c.l.b16 %v823
        %v900 = vunpack.c.l.b16 %v824
        %v901 = vunpack.c.l.b16 %v825
        %v902 = vpack.c.b16 %v887, %v886
        %v903 = vpack.c.b16 %v889, %v888
        %v904 = vpack.c.b16 %v891, %v890
        %v905 = vpack.c.b16 %v893, %v892
        %v906 = vpack.c.b16 %v895, %v894
        %v907 = vpack.c.b16 %v897, %v896
        %v908 = vpack.c.b16 %v899, %v898
        %v909 = vpack.c.b16 %v901, %v900
        %918 = vmatprep.subr.bf16.mxu0 0
        %919 = vmatpush1.bf16.msra.mxu0 %v902
        %920 = vmatprep.subr.bf16.mxu0 0
        %921 = vmatpush1.bf16.msra.mxu0 %v903
        %922 = vmatprep.subr.bf16.mxu0 0
        %923 = vmatpush1.bf16.msra.mxu0 %v904
        %924 = vmatprep.subr.bf16.mxu0 0
        %925 = vmatpush1.bf16.msra.mxu0 %v905
        %926 = vmatprep.subr.bf16.mxu0 0
        %927 = vmatpush1.bf16.msra.mxu0 %v906
        %928 = vmatprep.subr.bf16.mxu0 0
        %929 = vmatpush1.bf16.msra.mxu0 %v907
        %930 = vmatprep.subr.bf16.mxu0 0
        %931 = vmatpush1.bf16.msra.mxu0 %v908
        %932 = vmatprep.subr.bf16.mxu0 0
        %933 = vmatpush1.bf16.msra.mxu0 %v909
        %934 = vmatprep.subr.bf16.mxu0 0
        %935 = vmatpush1.bf16.msra.mxu0 0
        %936 = vmatprep.subr.bf16.mxu0 0
        %937 = vmatpush1.bf16.msra.mxu0 0
        %938 = vmatprep.subr.bf16.mxu0 0
        %939 = vmatpush1.bf16.msra.mxu0 0
        %940 = vmatprep.subr.bf16.mxu0 0
        %941 = vmatpush1.bf16.msra.mxu0 0
        %942 = vmatprep.subr.bf16.mxu0 0
        %943 = vmatpush1.bf16.msra.mxu0 0
        %944 = vmatprep.subr.bf16.mxu0 0
        %945 = vmatpush1.bf16.msra.mxu0 0
        %946 = vmatprep.subr.bf16.mxu0 0
        %947 = vmatpush1.bf16.msra.mxu0 0
        %948 = vmatprep.subr.bf16.mxu0 0
        %949 = vmatpush1.bf16.msra.mxu0 0
        %950 = vmatprep.mubr.bf16.mxu0 0
        %951 = vmatmul.mubr.bf16.gmra.mrb[0].mxu0 %v856
        %v952 = vpop.f32.mrb[0].mxu0
        %v953 = vadd.f32 0.0, %v952
        %v954 = vpop.f32.mrb[0].mxu0
        %v955 = vpop.f32.mrb[0].mxu0
        %v956 = vadd.f32 0.0, %v955
        %v957 = vpop.f32.mrb[0].mxu0
        %958 = vmatprep.mubr.bf16.mxu0 0
        %959 = vmatmul.mubr.bf16.gmra.mrb[0].mxu0 %v858
        %v960 = vpop.f32.mrb[0].mxu0
        %v961 = vadd.f32 0.0, %v960
        %v962 = vpop.f32.mrb[0].mxu0
        %v963 = vpop.f32.mrb[0].mxu0
        %v964 = vadd.f32 0.0, %v963
        %v965 = vpop.f32.mrb[0].mxu0
        %966 = vmatprep.mubr.bf16.mxu0 0
        %967 = vmatmul.mubr.bf16.gmra.mrb[0].mxu0 %v860
        %v968 = vpop.f32.mrb[0].mxu0
        %v969 = vadd.f32 0.0, %v968
        %v970 = vpop.f32.mrb[0].mxu0
        %v971 = vpop.f32.mrb[0].mxu0
        %v972 = vadd.f32 0.0, %v971
        %v973 = vpop.f32.mrb[0].mxu0
        %974 = vmatprep.mubr.bf16.mxu0 0
        %975 = vmatmul.mubr.bf16.gmra.mrb[0].mxu0 %v862
        %v976 = vpop.f32.mrb[0].mxu0
        %v977 = vadd.f32 0.0, %v976
        %v978 = vpop.f32.mrb[0].mxu0
        %v979 = vpop.f32.mrb[0].mxu0
        %v980 = vadd.f32 0.0, %v979
        %v981 = vpop.f32.mrb[0].mxu0
        %982 = vmatprep.mubr.bf16.mxu0 0
        %983 = vmatmul.mubr.bf16.gmra.mrb[0].mxu0 %v864
        %v984 = vpop.f32.mrb[0].mxu0
        %v985 = vadd.f32 0.0, %v984
        %v986 = vpop.f32.mrb[0].mxu0
        %v987 = vpop.f32.mrb[0].mxu0
        %v988 = vadd.f32 0.0, %v987
        %v989 = vpop.f32.mrb[0].mxu0
        %990 = vdwg.mxu0
        %v991 = vadd.f32 %v785, %v953
        %v992 = vadd.f32 %v786, %v956
        %v993 = vadd.f32 %v787, %v961
        %v994 = vadd.f32 %v788, %v964
        %v995 = vadd.f32 %v789, %v969
        %v996 = vadd.f32 %v790, %v972
        %v997 = vadd.f32 %v791, %v977
        %v998 = vadd.f32 %v792, %v980
        %v999 = vadd.f32 %v793, %v985
        %v1000 = vadd.f32 %v794, %v988
        %v1001 = vld [vmem:[%s213 + $0x2c] sm:$0x3]
        %s1002 = sadd.s32 %s257, 4
        %s1003 = smul.u32 %s1002, 16
        %s1004 = smul.addr %s1003, 4
        %s1005 = scalar_lea.vmem [#allocation6], %s1004
        %v1006 = vld [vmem:[%s1005] sm:$0xf]
        %v1007 = vld [vmem:[%s1005 + $0x4] sm:$0xf]
        %v1008 = vld [vmem:[%s1005 + $0x8] sm:$0xf]
        %v1009 = vld [vmem:[%s1005 + $0xc] sm:$0xf]
        %v1010 = vld [vmem:[%s1005 + $0x10] sm:$0xf]
        %v1011 = vld [vmem:[%s1005 + $0x14] sm:$0xf]
        %v1012 = vld [vmem:[%s1005 + $0x18] sm:$0xf]
        %v1013 = vld [vmem:[%s1005 + $0x1c] sm:$0xf]
        %v1014 = vld [vmem:[%s1005 + $0x20] sm:$0xf]
        %v1015 = vld [vmem:[%s1005 + $0x24] sm:$0xf]
        %v1016 = vld [vmem:[%s1005 + $0x28] sm:$0xf]
        %v1017 = vld [vmem:[%s1005 + $0x2c] sm:$0xf]
        %v1018 = vld [vmem:[%s1005 + $0x30] sm:$0xf]
        %v1019 = vld [vmem:[%s1005 + $0x34] sm:$0xf]
        %v1020 = vld [vmem:[%s1005 + $0x38] sm:$0xf]
        %v1021 = vld [vmem:[%s1005 + $0x3c] sm:$0xf]
        %v1023 = vunpack.c.l.b16 %v1001
        %v1024 = vpack.c.b16 %v1023, %v1023
        %vm1025 = vsmask.f32 6400
        %v1027 = vshrl.u32 %v848, 16
        %v1029 = vrot.slane %v1027, 1
        %v1030 = vshll.u32 %v848, 16
        %v1032 = vrot.slane %v1030, 2
        %v1033 = vor.u32 %v1029, %v1032
        %v1035 = vshrl.u32 %v849, 16
        %v1037 = vrot.slane %v1035, 1
        %v1038 = vshll.u32 %v849, 16
        %v1040 = vrot.slane %v1038, 2
        %v1041 = vor.u32 %v1037, %v1040
        %v1042 = vsel %vm1025, %v1033, %v1041
        %v1044 = vshrl.u32 %v850, 16
        %v1046 = vrot.slane %v1044, 1
        %v1047 = vshll.u32 %v850, 16
        %v1049 = vrot.slane %v1047, 2
        %v1050 = vor.u32 %v1046, %v1049
        %v1051 = vsel %vm1025, %v1041, %v1050
        %v1053 = vshrl.u32 %v851, 16
        %v1055 = vrot.slane %v1053, 1
        %v1056 = vshll.u32 %v851, 16
        %v1058 = vrot.slane %v1056, 2
        %v1059 = vor.u32 %v1055, %v1058
        %v1060 = vsel %vm1025, %v1050, %v1059
        %v1062 = vshrl.u32 %v852, 16
        %v1064 = vrot.slane %v1062, 1
        %v1065 = vshll.u32 %v852, 16
        %v1067 = vrot.slane %v1065, 2
        %v1068 = vor.u32 %v1064, %v1067
        %v1069 = vsel %vm1025, %v1059, %v1068
        %v1071 = vshrl.u32 %v1024, 16
        %v1073 = vrot.slane %v1071, 1
        %v1074 = vshll.u32 %v1024, 16
        %v1076 = vrot.slane %v1074, 2
        %v1077 = vor.u32 %v1073, %v1076
        %v1078 = vsel %vm1025, %v1068, %v1077
        %v1100 = vunpack.c.l.b16 %v1006
        %v1101 = vunpack.c.l.b16 %v1007
        %v1102 = vunpack.c.l.b16 %v1008
        %v1103 = vunpack.c.l.b16 %v1009
        %v1104 = vunpack.c.l.b16 %v1010
        %v1105 = vunpack.c.l.b16 %v1011
        %v1106 = vunpack.c.l.b16 %v1012
        %v1107 = vunpack.c.l.b16 %v1013
        %v1108 = vunpack.c.l.b16 %v1014
        %v1109 = vunpack.c.l.b16 %v1015
        %v1110 = vunpack.c.l.b16 %v1016
        %v1111 = vunpack.c.l.b16 %v1017
        %v1112 = vunpack.c.l.b16 %v1018
        %v1113 = vunpack.c.l.b16 %v1019
        %v1114 = vunpack.c.l.b16 %v1020
        %v1115 = vunpack.c.l.b16 %v1021
        %v1116 = vpack.c.b16 %v1101, %v1100
        %v1117 = vpack.c.b16 %v1103, %v1102
        %v1118 = vpack.c.b16 %v1105, %v1104
        %v1119 = vpack.c.b16 %v1107, %v1106
        %v1120 = vpack.c.b16 %v1109, %v1108
        %v1121 = vpack.c.b16 %v1111, %v1110
        %v1122 = vpack.c.b16 %v1113, %v1112
        %v1123 = vpack.c.b16 %v1115, %v1114
        %1132 = vmatprep.subr.bf16.mxu0 0
        %1133 = vmatpush1.bf16.msra.mxu0 %v1116
        %1134 = vmatprep.subr.bf16.mxu0 0
        %1135 = vmatpush1.bf16.msra.mxu0 %v1117
        %1136 = vmatprep.subr.bf16.mxu0 0
        %1137 = vmatpush1.bf16.msra.mxu0 %v1118
        %1138 = vmatprep.subr.bf16.mxu0 0
        %1139 = vmatpush1.bf16.msra.mxu0 %v1119
        %1140 = vmatprep.subr.bf16.mxu0 0
        %1141 = vmatpush1.bf16.msra.mxu0 %v1120
        %1142 = vmatprep.subr.bf16.mxu0 0
        %1143 = vmatpush1.bf16.msra.mxu0 %v1121
        %1144 = vmatprep.subr.bf16.mxu0 0
        %1145 = vmatpush1.bf16.msra.mxu0 %v1122
        %1146 = vmatprep.subr.bf16.mxu0 0
        %1147 = vmatpush1.bf16.msra.mxu0 %v1123
        %1148 = vmatprep.subr.bf16.mxu0 0
        %1149 = vmatpush1.bf16.msra.mxu0 0
        %1150 = vmatprep.subr.bf16.mxu0 0
        %1151 = vmatpush1.bf16.msra.mxu0 0
        %1152 = vmatprep.subr.bf16.mxu0 0
        %1153 = vmatpush1.bf16.msra.mxu0 0
        %1154 = vmatprep.subr.bf16.mxu0 0
        %1155 = vmatpush1.bf16.msra.mxu0 0
        %1156 = vmatprep.subr.bf16.mxu0 0
        %1157 = vmatpush1.bf16.msra.mxu0 0
        %1158 = vmatprep.subr.bf16.mxu0 0
        %1159 = vmatpush1.bf16.msra.mxu0 0
        %1160 = vmatprep.subr.bf16.mxu0 0
        %1161 = vmatpush1.bf16.msra.mxu0 0
        %1162 = vmatprep.subr.bf16.mxu0 0
        %1163 = vmatpush1.bf16.msra.mxu0 0
        %1164 = vmatprep.mubr.bf16.mxu0 0
        %1165 = vmatmul.mubr.bf16.gmra.mrb[0].mxu0 %v1042
        %v1166 = vpop.f32.mrb[0].mxu0
        %v1167 = vadd.f32 0.0, %v1166
        %v1168 = vpop.f32.mrb[0].mxu0
        %v1169 = vpop.f32.mrb[0].mxu0
        %v1170 = vadd.f32 0.0, %v1169
        %v1171 = vpop.f32.mrb[0].mxu0
        %1172 = vmatprep.mubr.bf16.mxu0 0
        %1173 = vmatmul.mubr.bf16.gmra.mrb[0].mxu0 %v1051
        %v1174 = vpop.f32.mrb[0].mxu0
        %v1175 = vadd.f32 0.0, %v1174
        %v1176 = vpop.f32.mrb[0].mxu0
        %v1177 = vpop.f32.mrb[0].mxu0
        %v1178 = vadd.f32 0.0, %v1177
        %v1179 = vpop.f32.mrb[0].mxu0
        %1180 = vmatprep.mubr.bf16.mxu0 0
        %1181 = vmatmul.mubr.bf16.gmra.mrb[0].mxu0 %v1060
        %v1182 = vpop.f32.mrb[0].mxu0
        %v1183 = vadd.f32 0.0, %v1182
        %v1184 = vpop.f32.mrb[0].mxu0
        %v1185 = vpop.f32.mrb[0].mxu0
        %v1186 = vadd.f32 0.0, %v1185
        %v1187 = vpop.f32.mrb[0].mxu0
        %1188 = vmatprep.mubr.bf16.mxu0 0
        %1189 = vmatmul.mubr.bf16.gmra.mrb[0].mxu0 %v1069
        %v1190 = vpop.f32.mrb[0].mxu0
        %v1191 = vadd.f32 0.0, %v1190
        %v1192 = vpop.f32.mrb[0].mxu0
        %v1193 = vpop.f32.mrb[0].mxu0
        %v1194 = vadd.f32 0.0, %v1193
        %v1195 = vpop.f32.mrb[0].mxu0
        %1196 = vmatprep.mubr.bf16.mxu0 0
        %1197 = vmatmul.mubr.bf16.gmra.mrb[0].mxu0 %v1078
        %v1198 = vpop.f32.mrb[0].mxu0
        %v1199 = vadd.f32 0.0, %v1198
        %v1200 = vpop.f32.mrb[0].mxu0
        %v1201 = vpop.f32.mrb[0].mxu0
        %v1202 = vadd.f32 0.0, %v1201
        %v1203 = vpop.f32.mrb[0].mxu0
        %1204 = vdwg.mxu0
        %v1205 = vadd.f32 %v991, %v1167
        %v1206 = vadd.f32 %v992, %v1170
        %v1207 = vadd.f32 %v993, %v1175
        %v1208 = vadd.f32 %v994, %v1178
        %v1209 = vadd.f32 %v995, %v1183
        %v1210 = vadd.f32 %v996, %v1186
        %v1211 = vadd.f32 %v997, %v1191
        %v1212 = vadd.f32 %v998, %v1194
        %v1213 = vadd.f32 %v999, %v1199
        %v1214 = vadd.f32 %v1000, %v1202
        %v1215 = vld [vmem:[%s213 + $0x4] sm:$0xc]
        %s1216 = sadd.s32 %s257, 5
        %s1217 = smul.u32 %s1216, 16
        %s1218 = smul.addr %s1217, 4
        %s1219 = scalar_lea.vmem [#allocation6], %s1218
        %v1220 = vld [vmem:[%s1219] sm:$0xf]
        %v1221 = vld [vmem:[%s1219 + $0x4] sm:$0xf]
        %v1222 = vld [vmem:[%s1219 + $0x8] sm:$0xf]
        %v1223 = vld [vmem:[%s1219 + $0xc] sm:$0xf]
        %v1224 = vld [vmem:[%s1219 + $0x10] sm:$0xf]
        %v1225 = vld [vmem:[%s1219 + $0x14] sm:$0xf]
        %v1226 = vld [vmem:[%s1219 + $0x18] sm:$0xf]
        %v1227 = vld [vmem:[%s1219 + $0x1c] sm:$0xf]
        %v1228 = vld [vmem:[%s1219 + $0x20] sm:$0xf]
        %v1229 = vld [vmem:[%s1219 + $0x24] sm:$0xf]
        %v1230 = vld [vmem:[%s1219 + $0x28] sm:$0xf]
        %v1231 = vld [vmem:[%s1219 + $0x2c] sm:$0xf]
        %v1232 = vld [vmem:[%s1219 + $0x30] sm:$0xf]
        %v1233 = vld [vmem:[%s1219 + $0x34] sm:$0xf]
        %v1234 = vld [vmem:[%s1219 + $0x38] sm:$0xf]
        %v1235 = vld [vmem:[%s1219 + $0x3c] sm:$0xf]
        %v1237 = vunpack.c.l.b16 %v1215
        %v1238 = vpack.c.b16 %v838, %v1237
        %vm1239 = vcmask 1045504
        %v1240 = vrot.slane %v1238, 2
        %v1241 = vrot.slane %v849, 2
        %v1242 = vsel %vm1239, %v1240, %v1241
        %v1243 = vrot.slane %v850, 2
        %v1244 = vsel %vm1239, %v1241, %v1243
        %v1245 = vrot.slane %v851, 2
        %v1246 = vsel %vm1239, %v1243, %v1245
        %v1247 = vrot.slane %v852, 2
        %v1248 = vsel %vm1239, %v1245, %v1247
        %v1249 = vrot.slane %v1024, 2
        %v1250 = vsel %vm1239, %v1247, %v1249
        %v1272 = vunpack.c.l.b16 %v1220
        %v1273 = vunpack.c.l.b16 %v1221
        %v1274 = vunpack.c.l.b16 %v1222
        %v1275 = vunpack.c.l.b16 %v1223
        %v1276 = vunpack.c.l.b16 %v1224
        %v1277 = vunpack.c.l.b16 %v1225
        %v1278 = vunpack.c.l.b16 %v1226
        %v1279 = vunpack.c.l.b16 %v1227
        %v1280 = vunpack.c.l.b16 %v1228
        %v1281 = vunpack.c.l.b16 %v1229
        %v1282 = vunpack.c.l.b16 %v1230
        %v1283 = vunpack.c.l.b16 %v1231
        %v1284 = vunpack.c.l.b16 %v1232
        %v1285 = vunpack.c.l.b16 %v1233
        %v1286 = vunpack.c.l.b16 %v1234
        %v1287 = vunpack.c.l.b16 %v1235
        %v1288 = vpack.c.b16 %v1273, %v1272
        %v1289 = vpack.c.b16 %v1275, %v1274
        %v1290 = vpack.c.b16 %v1277, %v1276
        %v1291 = vpack.c.b16 %v1279, %v1278
        %v1292 = vpack.c.b16 %v1281, %v1280
        %v1293 = vpack.c.b16 %v1283, %v1282
        %v1294 = vpack.c.b16 %v1285, %v1284
        %v1295 = vpack.c.b16 %v1287, %v1286
        %1304 = vmatprep.subr.bf16.mxu0 0
        %1305 = vmatpush1.bf16.msra.mxu0 %v1288
        %1306 = vmatprep.subr.bf16.mxu0 0
        %1307 = vmatpush1.bf16.msra.mxu0 %v1289
        %1308 = vmatprep.subr.bf16.mxu0 0
        %1309 = vmatpush1.bf16.msra.mxu0 %v1290
        %1310 = vmatprep.subr.bf16.mxu0 0
        %1311 = vmatpush1.bf16.msra.mxu0 %v1291
        %1312 = vmatprep.subr.bf16.mxu0 0
        %1313 = vmatpush1.bf16.msra.mxu0 %v1292
        %1314 = vmatprep.subr.bf16.mxu0 0
        %1315 = vmatpush1.bf16.msra.mxu0 %v1293
        %1316 = vmatprep.subr.bf16.mxu0 0
        %1317 = vmatpush1.bf16.msra.mxu0 %v1294
        %1318 = vmatprep.subr.bf16.mxu0 0
        %1319 = vmatpush1.bf16.msra.mxu0 %v1295
        %1320 = vmatprep.subr.bf16.mxu0 0
        %1321 = vmatpush1.bf16.msra.mxu0 0
        %1322 = vmatprep.subr.bf16.mxu0 0
        %1323 = vmatpush1.bf16.msra.mxu0 0
        %1324 = vmatprep.subr.bf16.mxu0 0
        %1325 = vmatpush1.bf16.msra.mxu0 0
        %1326 = vmatprep.subr.bf16.mxu0 0
        %1327 = vmatpush1.bf16.msra.mxu0 0
        %1328 = vmatprep.subr.bf16.mxu0 0
        %1329 = vmatpush1.bf16.msra.mxu0 0
        %1330 = vmatprep.subr.bf16.mxu0 0
        %1331 = vmatpush1.bf16.msra.mxu0 0
        %1332 = vmatprep.subr.bf16.mxu0 0
        %1333 = vmatpush1.bf16.msra.mxu0 0
        %1334 = vmatprep.subr.bf16.mxu0 0
        %1335 = vmatpush1.bf16.msra.mxu0 0
        %1336 = vmatprep.mubr.bf16.mxu0 0
        %1337 = vmatmul.mubr.bf16.gmra.mrb[0].mxu0 %v1242
        %v1338 = vpop.f32.mrb[0].mxu0
        %v1339 = vadd.f32 0.0, %v1338
        %v1340 = vpop.f32.mrb[0].mxu0
        %v1341 = vpop.f32.mrb[0].mxu0
        %v1342 = vadd.f32 0.0, %v1341
        %v1343 = vpop.f32.mrb[0].mxu0
        %1344 = vmatprep.mubr.bf16.mxu0 0
        %1345 = vmatmul.mubr.bf16.gmra.mrb[0].mxu0 %v1244
        %v1346 = vpop.f32.mrb[0].mxu0
        %v1347 = vadd.f32 0.0, %v1346
        %v1348 = vpop.f32.mrb[0].mxu0
        %v1349 = vpop.f32.mrb[0].mxu0
        %v1350 = vadd.f32 0.0, %v1349
        %v1351 = vpop.f32.mrb[0].mxu0
        %1352 = vmatprep.mubr.bf16.mxu0 0
        %1353 = vmatmul.mubr.bf16.gmra.mrb[0].mxu0 %v1246
        %v1354 = vpop.f32.mrb[0].mxu0
        %v1355 = vadd.f32 0.0, %v1354
        %v1356 = vpop.f32.mrb[0].mxu0
        %v1357 = vpop.f32.mrb[0].mxu0
        %v1358 = vadd.f32 0.0, %v1357
        %v1359 = vpop.f32.mrb[0].mxu0
        %1360 = vmatprep.mubr.bf16.mxu0 0
        %1361 = vmatmul.mubr.bf16.gmra.mrb[0].mxu0 %v1248
        %v1362 = vpop.f32.mrb[0].mxu0
        %v1363 = vadd.f32 0.0, %v1362
        %v1364 = vpop.f32.mrb[0].mxu0
        %v1365 = vpop.f32.mrb[0].mxu0
        %v1366 = vadd.f32 0.0, %v1365
        %v1367 = vpop.f32.mrb[0].mxu0
        %1368 = vmatprep.mubr.bf16.mxu0 0
        %1369 = vmatmul.mubr.bf16.gmra.mrb[0].mxu0 %v1250
        %v1370 = vpop.f32.mrb[0].mxu0
        %v1371 = vadd.f32 0.0, %v1370
        %v1372 = vpop.f32.mrb[0].mxu0
        %v1373 = vpop.f32.mrb[0].mxu0
        %v1374 = vadd.f32 0.0, %v1373
        %v1375 = vpop.f32.mrb[0].mxu0
        %1376 = vdwg.mxu0
        %v1377 = vadd.f32 %v1205, %v1339
        %v1378 = vadd.f32 %v1206, %v1342
        %v1379 = vadd.f32 %v1207, %v1347
        %v1380 = vadd.f32 %v1208, %v1350
        %v1381 = vadd.f32 %v1209, %v1355
        %v1382 = vadd.f32 %v1210, %v1358
        %v1383 = vadd.f32 %v1211, %v1363
        %v1384 = vadd.f32 %v1212, %v1366
        %v1385 = vadd.f32 %v1213, %v1371
        %v1386 = vadd.f32 %v1214, %v1374
        %v1387 = vld [vmem:[%s213 + $0x8] sm:$0xc]
        %v1388 = vld [vmem:[%s213 + $0xc] sm:$0xf]
        %v1389 = vld [vmem:[%s213 + $0x10] sm:$0xf]
        %v1390 = vld [vmem:[%s213 + $0x14] sm:$0xf]
        %v1391 = vld [vmem:[%s213 + $0x18] sm:$0xf]
        %v1392 = vld [vmem:[%s213 + $0x1c] sm:$0xf]
        %v1393 = vld [vmem:[%s213 + $0x20] sm:$0xf]
        %v1394 = vld [vmem:[%s213 + $0x24] sm:$0xf]
        %v1395 = vld [vmem:[%s213 + $0x28] sm:$0xf]
        %v1396 = vld [vmem:[%s213 + $0x2c] sm:$0xf]
        %v1397 = vld [vmem:[%s213 + $0x30] sm:$0x3]
        %s1398 = sadd.s32 %s257, 6
        %s1399 = smul.u32 %s1398, 16
        %s1400 = smul.addr %s1399, 4
        %s1401 = scalar_lea.vmem [#allocation6], %s1400
        %v1402 = vld [vmem:[%s1401] sm:$0xf]
        %v1403 = vld [vmem:[%s1401 + $0x4] sm:$0xf]
        %v1404 = vld [vmem:[%s1401 + $0x8] sm:$0xf]
        %v1405 = vld [vmem:[%s1401 + $0xc] sm:$0xf]
        %v1406 = vld [vmem:[%s1401 + $0x10] sm:$0xf]
        %v1407 = vld [vmem:[%s1401 + $0x14] sm:$0xf]
        %v1408 = vld [vmem:[%s1401 + $0x18] sm:$0xf]
        %v1409 = vld [vmem:[%s1401 + $0x1c] sm:$0xf]
        %v1410 = vld [vmem:[%s1401 + $0x20] sm:$0xf]
        %v1411 = vld [vmem:[%s1401 + $0x24] sm:$0xf]
        %v1412 = vld [vmem:[%s1401 + $0x28] sm:$0xf]
        %v1413 = vld [vmem:[%s1401 + $0x2c] sm:$0xf]
        %v1414 = vld [vmem:[%s1401 + $0x30] sm:$0xf]
        %v1415 = vld [vmem:[%s1401 + $0x34] sm:$0xf]
        %v1416 = vld [vmem:[%s1401 + $0x38] sm:$0xf]
        %v1417 = vld [vmem:[%s1401 + $0x3c] sm:$0xf]
        %v1429 = vunpack.c.l.b16 %v1387
        %v1430 = vunpack.c.l.b16 %v1388
        %v1431 = vunpack.c.l.b16 %v1389
        %v1432 = vunpack.c.l.b16 %v1390
        %v1433 = vunpack.c.l.b16 %v1391
        %v1434 = vunpack.c.l.b16 %v1392
        %v1435 = vunpack.c.l.b16 %v1393
        %v1436 = vunpack.c.l.b16 %v1394
        %v1437 = vunpack.c.l.b16 %v1395
        %v1438 = vunpack.c.l.b16 %v1396
        %v1439 = vunpack.c.l.b16 %v1397
        %v1440 = vpack.c.b16 %v1430, %v1429
        %v1441 = vpack.c.b16 %v1432, %v1431
        %v1442 = vpack.c.b16 %v1434, %v1433
        %v1443 = vpack.c.b16 %v1436, %v1435
        %v1444 = vpack.c.b16 %v1438, %v1437
        %v1445 = vpack.c.b16 %v1439, %v1439
        %v1446 = vrot.slane %v1440, 2
        %v1447 = vrot.slane %v1441, 2
        %v1448 = vsel %vm1239, %v1446, %v1447
        %v1449 = vrot.slane %v1442, 2
        %v1450 = vsel %vm1239, %v1447, %v1449
        %v1451 = vrot.slane %v1443, 2
        %v1452 = vsel %vm1239, %v1449, %v1451
        %v1453 = vrot.slane %v1444, 2
        %v1454 = vsel %vm1239, %v1451, %v1453
        %v1455 = vrot.slane %v1445, 2
        %v1456 = vsel %vm1239, %v1453, %v1455
        %v1478 = vunpack.c.l.b16 %v1402
        %v1479 = vunpack.c.l.b16 %v1403
        %v1480 = vunpack.c.l.b16 %v1404
        %v1481 = vunpack.c.l.b16 %v1405
        %v1482 = vunpack.c.l.b16 %v1406
        %v1483 = vunpack.c.l.b16 %v1407
        %v1484 = vunpack.c.l.b16 %v1408
        %v1485 = vunpack.c.l.b16 %v1409
        %v1486 = vunpack.c.l.b16 %v1410
        %v1487 = vunpack.c.l.b16 %v1411
        %v1488 = vunpack.c.l.b16 %v1412
        %v1489 = vunpack.c.l.b16 %v1413
        %v1490 = vunpack.c.l.b16 %v1414
        %v1491 = vunpack.c.l.b16 %v1415
        %v1492 = vunpack.c.l.b16 %v1416
        %v1493 = vunpack.c.l.b16 %v1417
        %v1494 = vpack.c.b16 %v1479, %v1478
        %v1495 = vpack.c.b16 %v1481, %v1480
        %v1496 = vpack.c.b16 %v1483, %v1482
        %v1497 = vpack.c.b16 %v1485, %v1484
        %v1498 = vpack.c.b16 %v1487, %v1486
        %v1499 = vpack.c.b16 %v1489, %v1488
        %v1500 = vpack.c.b16 %v1491, %v1490
        %v1501 = vpack.c.b16 %v1493, %v1492
        %1510 = vmatprep.subr.bf16.mxu0 0
        %1511 = vmatpush1.bf16.msra.mxu0 %v1494
        %1512 = vmatprep.subr.bf16.mxu0 0
        %1513 = vmatpush1.bf16.msra.mxu0 %v1495
        %1514 = vmatprep.subr.bf16.mxu0 0
        %1515 = vmatpush1.bf16.msra.mxu0 %v1496
        %1516 = vmatprep.subr.bf16.mxu0 0
        %1517 = vmatpush1.bf16.msra.mxu0 %v1497
        %1518 = vmatprep.subr.bf16.mxu0 0
        %1519 = vmatpush1.bf16.msra.mxu0 %v1498
        %1520 = vmatprep.subr.bf16.mxu0 0
        %1521 = vmatpush1.bf16.msra.mxu0 %v1499
        %1522 = vmatprep.subr.bf16.mxu0 0
        %1523 = vmatpush1.bf16.msra.mxu0 %v1500
        %1524 = vmatprep.subr.bf16.mxu0 0
        %1525 = vmatpush1.bf16.msra.mxu0 %v1501
        %1526 = vmatprep.subr.bf16.mxu0 0
        %1527 = vmatpush1.bf16.msra.mxu0 0
        %1528 = vmatprep.subr.bf16.mxu0 0
        %1529 = vmatpush1.bf16.msra.mxu0 0
        %1530 = vmatprep.subr.bf16.mxu0 0
        %1531 = vmatpush1.bf16.msra.mxu0 0
        %1532 = vmatprep.subr.bf16.mxu0 0
        %1533 = vmatpush1.bf16.msra.mxu0 0
        %1534 = vmatprep.subr.bf16.mxu0 0
        %1535 = vmatpush1.bf16.msra.mxu0 0
        %1536 = vmatprep.subr.bf16.mxu0 0
        %1537 = vmatpush1.bf16.msra.mxu0 0
        %1538 = vmatprep.subr.bf16.mxu0 0
        %1539 = vmatpush1.bf16.msra.mxu0 0
        %1540 = vmatprep.subr.bf16.mxu0 0
        %1541 = vmatpush1.bf16.msra.mxu0 0
        %1542 = vmatprep.mubr.bf16.mxu0 0
        %1543 = vmatmul.mubr.bf16.gmra.mrb[0].mxu0 %v1448
        %v1544 = vpop.f32.mrb[0].mxu0
        %v1545 = vadd.f32 0.0, %v1544
        %v1546 = vpop.f32.mrb[0].mxu0
        %v1547 = vpop.f32.mrb[0].mxu0
        %v1548 = vadd.f32 0.0, %v1547
        %v1549 = vpop.f32.mrb[0].mxu0
        %1550 = vmatprep.mubr.bf16.mxu0 0
        %1551 = vmatmul.mubr.bf16.gmra.mrb[0].mxu0 %v1450
        %v1552 = vpop.f32.mrb[0].mxu0
        %v1553 = vadd.f32 0.0, %v1552
        %v1554 = vpop.f32.mrb[0].mxu0
        %v1555 = vpop.f32.mrb[0].mxu0
        %v1556 = vadd.f32 0.0, %v1555
        %v1557 = vpop.f32.mrb[0].mxu0
        %1558 = vmatprep.mubr.bf16.mxu0 0
        %1559 = vmatmul.mubr.bf16.gmra.mrb[0].mxu0 %v1452
        %v1560 = vpop.f32.mrb[0].mxu0
        %v1561 = vadd.f32 0.0, %v1560
        %v1562 = vpop.f32.mrb[0].mxu0
        %v1563 = vpop.f32.mrb[0].mxu0
        %v1564 = vadd.f32 0.0, %v1563
        %v1565 = vpop.f32.mrb[0].mxu0
        %1566 = vmatprep.mubr.bf16.mxu0 0
        %1567 = vmatmul.mubr.bf16.gmra.mrb[0].mxu0 %v1454
        %v1568 = vpop.f32.mrb[0].mxu0
        %v1569 = vadd.f32 0.0, %v1568
        %v1570 = vpop.f32.mrb[0].mxu0
        %v1571 = vpop.f32.mrb[0].mxu0
        %v1572 = vadd.f32 0.0, %v1571
        %v1573 = vpop.f32.mrb[0].mxu0
        %1574 = vmatprep.mubr.bf16.mxu0 0
        %1575 = vmatmul.mubr.bf16.gmra.mrb[0].mxu0 %v1456
        %v1576 = vpop.f32.mrb[0].mxu0
        %v1577 = vadd.f32 0.0, %v1576
        %v1578 = vpop.f32.mrb[0].mxu0
        %v1579 = vpop.f32.mrb[0].mxu0
        %v1580 = vadd.f32 0.0, %v1579
        %v1581 = vpop.f32.mrb[0].mxu0
        %1582 = vdwg.mxu0
        %v1583 = vadd.f32 %v1377, %v1545
        %v1584 = vadd.f32 %v1378, %v1548
        %v1585 = vadd.f32 %v1379, %v1553
        %v1586 = vadd.f32 %v1380, %v1556
        %v1587 = vadd.f32 %v1381, %v1561
        %v1588 = vadd.f32 %v1382, %v1564
        %v1589 = vadd.f32 %v1383, %v1569
        %v1590 = vadd.f32 %v1384, %v1572
        %v1591 = vadd.f32 %v1385, %v1577
        %v1592 = vadd.f32 %v1386, %v1580
        %v1593 = vld [vmem:[%s213 + $0x30] sm:$0x7]
        %s1594 = sadd.s32 %s257, 7
        %s1595 = smul.u32 %s1594, 16
        %s1596 = smul.addr %s1595, 4
        %s1597 = scalar_lea.vmem [#allocation6], %s1596
        %v1598 = vld [vmem:[%s1597] sm:$0xf]
        %v1599 = vld [vmem:[%s1597 + $0x4] sm:$0xf]
        %v1600 = vld [vmem:[%s1597 + $0x8] sm:$0xf]
        %v1601 = vld [vmem:[%s1597 + $0xc] sm:$0xf]
        %v1602 = vld [vmem:[%s1597 + $0x10] sm:$0xf]
        %v1603 = vld [vmem:[%s1597 + $0x14] sm:$0xf]
        %v1604 = vld [vmem:[%s1597 + $0x18] sm:$0xf]
        %v1605 = vld [vmem:[%s1597 + $0x1c] sm:$0xf]
        %v1606 = vld [vmem:[%s1597 + $0x20] sm:$0xf]
        %v1607 = vld [vmem:[%s1597 + $0x24] sm:$0xf]
        %v1608 = vld [vmem:[%s1597 + $0x28] sm:$0xf]
        %v1609 = vld [vmem:[%s1597 + $0x2c] sm:$0xf]
        %v1610 = vld [vmem:[%s1597 + $0x30] sm:$0xf]
        %v1611 = vld [vmem:[%s1597 + $0x34] sm:$0xf]
        %v1612 = vld [vmem:[%s1597 + $0x38] sm:$0xf]
        %v1613 = vld [vmem:[%s1597 + $0x3c] sm:$0xf]
        %v1615 = vunpack.c.l.b16 %v1593
        %v1616 = vpack.c.b16 %v1615, %v1615
        %vm1617 = vsmask.f32 5376
        %v1619 = vshrl.u32 %v1440, 16
        %v1621 = vrot.slane %v1619, 2
        %v1622 = vshll.u32 %v1440, 16
        %v1624 = vrot.slane %v1622, 3
        %v1625 = vor.u32 %v1621, %v1624
        %v1627 = vshrl.u32 %v1441, 16
        %v1629 = vrot.slane %v1627, 2
        %v1630 = vshll.u32 %v1441, 16
        %v1632 = vrot.slane %v1630, 3
        %v1633 = vor.u32 %v1629, %v1632
        %v1634 = vsel %vm1617, %v1625, %v1633
        %v1636 = vshrl.u32 %v1442, 16
        %v1638 = vrot.slane %v1636, 2
        %v1639 = vshll.u32 %v1442, 16
        %v1641 = vrot.slane %v1639, 3
        %v1642 = vor.u32 %v1638, %v1641
        %v1643 = vsel %vm1617, %v1633, %v1642
        %v1645 = vshrl.u32 %v1443, 16
        %v1647 = vrot.slane %v1645, 2
        %v1648 = vshll.u32 %v1443, 16
        %v1650 = vrot.slane %v1648, 3
        %v1651 = vor.u32 %v1647, %v1650
        %v1652 = vsel %vm1617, %v1642, %v1651
        %v1654 = vshrl.u32 %v1444, 16
        %v1656 = vrot.slane %v1654, 2
        %v1657 = vshll.u32 %v1444, 16
        %v1659 = vrot.slane %v1657, 3
        %v1660 = vor.u32 %v1656, %v1659
        %v1661 = vsel %vm1617, %v1651, %v1660
        %v1663 = vshrl.u32 %v1616, 16
        %v1665 = vrot.slane %v1663, 2
        %v1666 = vshll.u32 %v1616, 16
        %v1668 = vrot.slane %v1666, 3
        %v1669 = vor.u32 %v1665, %v1668
        %v1670 = vsel %vm1617, %v1660, %v1669
        %v1692 = vunpack.c.l.b16 %v1598
        %v1693 = vunpack.c.l.b16 %v1599
        %v1694 = vunpack.c.l.b16 %v1600
        %v1695 = vunpack.c.l.b16 %v1601
        %v1696 = vunpack.c.l.b16 %v1602
        %v1697 = vunpack.c.l.b16 %v1603
        %v1698 = vunpack.c.l.b16 %v1604
        %v1699 = vunpack.c.l.b16 %v1605
        %v1700 = vunpack.c.l.b16 %v1606
        %v1701 = vunpack.c.l.b16 %v1607
        %v1702 = vunpack.c.l.b16 %v1608
        %v1703 = vunpack.c.l.b16 %v1609
        %v1704 = vunpack.c.l.b16 %v1610
        %v1705 = vunpack.c.l.b16 %v1611
        %v1706 = vunpack.c.l.b16 %v1612
        %v1707 = vunpack.c.l.b16 %v1613
        %v1708 = vpack.c.b16 %v1693, %v1692
        %v1709 = vpack.c.b16 %v1695, %v1694
        %v1710 = vpack.c.b16 %v1697, %v1696
        %v1711 = vpack.c.b16 %v1699, %v1698
        %v1712 = vpack.c.b16 %v1701, %v1700
        %v1713 = vpack.c.b16 %v1703, %v1702
        %v1714 = vpack.c.b16 %v1705, %v1704
        %v1715 = vpack.c.b16 %v1707, %v1706
        %1724 = vmatprep.subr.bf16.mxu0 0
        %1725 = vmatpush1.bf16.msra.mxu0 %v1708
        %1726 = vmatprep.subr.bf16.mxu0 0
        %1727 = vmatpush1.bf16.msra.mxu0 %v1709
        %1728 = vmatprep.subr.bf16.mxu0 0
        %1729 = vmatpush1.bf16.msra.mxu0 %v1710
        %1730 = vmatprep.subr.bf16.mxu0 0
        %1731 = vmatpush1.bf16.msra.mxu0 %v1711
        %1732 = vmatprep.subr.bf16.mxu0 0
        %1733 = vmatpush1.bf16.msra.mxu0 %v1712
        %1734 = vmatprep.subr.bf16.mxu0 0
        %1735 = vmatpush1.bf16.msra.mxu0 %v1713
        %1736 = vmatprep.subr.bf16.mxu0 0
        %1737 = vmatpush1.bf16.msra.mxu0 %v1714
        %1738 = vmatprep.subr.bf16.mxu0 0
        %1739 = vmatpush1.bf16.msra.mxu0 %v1715
        %1740 = vmatprep.subr.bf16.mxu0 0
        %1741 = vmatpush1.bf16.msra.mxu0 0
        %1742 = vmatprep.subr.bf16.mxu0 0
        %1743 = vmatpush1.bf16.msra.mxu0 0
        %1744 = vmatprep.subr.bf16.mxu0 0
        %1745 = vmatpush1.bf16.msra.mxu0 0
        %1746 = vmatprep.subr.bf16.mxu0 0
        %1747 = vmatpush1.bf16.msra.mxu0 0
        %1748 = vmatprep.subr.bf16.mxu0 0
        %1749 = vmatpush1.bf16.msra.mxu0 0
        %1750 = vmatprep.subr.bf16.mxu0 0
        %1751 = vmatpush1.bf16.msra.mxu0 0
        %1752 = vmatprep.subr.bf16.mxu0 0
        %1753 = vmatpush1.bf16.msra.mxu0 0
        %1754 = vmatprep.subr.bf16.mxu0 0
        %1755 = vmatpush1.bf16.msra.mxu0 0
        %1756 = vmatprep.mubr.bf16.mxu0 0
        %1757 = vmatmul.mubr.bf16.gmra.mrb[0].mxu0 %v1634
        %v1758 = vpop.f32.mrb[0].mxu0
        %v1759 = vadd.f32 0.0, %v1758
        %v1760 = vpop.f32.mrb[0].mxu0
        %v1761 = vpop.f32.mrb[0].mxu0
        %v1762 = vadd.f32 0.0, %v1761
        %v1763 = vpop.f32.mrb[0].mxu0
        %1764 = vmatprep.mubr.bf16.mxu0 0
        %1765 = vmatmul.mubr.bf16.gmra.mrb[0].mxu0 %v1643
        %v1766 = vpop.f32.mrb[0].mxu0
        %v1767 = vadd.f32 0.0, %v1766
        %v1768 = vpop.f32.mrb[0].mxu0
        %v1769 = vpop.f32.mrb[0].mxu0
        %v1770 = vadd.f32 0.0, %v1769
        %v1771 = vpop.f32.mrb[0].mxu0
        %1772 = vmatprep.mubr.bf16.mxu0 0
        %1773 = vmatmul.mubr.bf16.gmra.mrb[0].mxu0 %v1652
        %v1774 = vpop.f32.mrb[0].mxu0
        %v1775 = vadd.f32 0.0, %v1774
        %v1776 = vpop.f32.mrb[0].mxu0
        %v1777 = vpop.f32.mrb[0].mxu0
        %v1778 = vadd.f32 0.0, %v1777
        %v1779 = vpop.f32.mrb[0].mxu0
        %1780 = vmatprep.mubr.bf16.mxu0 0
        %1781 = vmatmul.mubr.bf16.gmra.mrb[0].mxu0 %v1661
        %v1782 = vpop.f32.mrb[0].mxu0
        %v1783 = vadd.f32 0.0, %v1782
        %v1784 = vpop.f32.mrb[0].mxu0
        %v1785 = vpop.f32.mrb[0].mxu0
        %v1786 = vadd.f32 0.0, %v1785
        %v1787 = vpop.f32.mrb[0].mxu0
        %1788 = vmatprep.mubr.bf16.mxu0 0
        %1789 = vmatmul.mubr.bf16.gmra.mrb[0].mxu0 %v1670
        %v1790 = vpop.f32.mrb[0].mxu0
        %v1791 = vadd.f32 0.0, %v1790
        %v1792 = vpop.f32.mrb[0].mxu0
        %v1793 = vpop.f32.mrb[0].mxu0
        %v1794 = vadd.f32 0.0, %v1793
        %v1795 = vpop.f32.mrb[0].mxu0
        %1796 = vdwg.mxu0
        %v1797 = vadd.f32 %v1583, %v1759
        %v1798 = vadd.f32 %v1584, %v1762
        %v1799 = vadd.f32 %v1585, %v1767
        %v1800 = vadd.f32 %v1586, %v1770
        %v1801 = vadd.f32 %v1587, %v1775
        %v1802 = vadd.f32 %v1588, %v1778
        %v1803 = vadd.f32 %v1589, %v1783
        %v1804 = vadd.f32 %v1590, %v1786
        %v1805 = vadd.f32 %v1591, %v1791
        %v1806 = vadd.f32 %v1592, %v1794
        %v1807 = vld [vmem:[%s213 + $0x8] sm:$0x8]
        %s1808 = sadd.s32 %s257, 8
        %s1809 = smul.u32 %s1808, 16
        %s1810 = smul.addr %s1809, 4
        %s1811 = scalar_lea.vmem [#allocation6], %s1810
        %v1812 = vld [vmem:[%s1811] sm:$0xf]
        %v1813 = vld [vmem:[%s1811 + $0x4] sm:$0xf]
        %v1814 = vld [vmem:[%s1811 + $0x8] sm:$0xf]
        %v1815 = vld [vmem:[%s1811 + $0xc] sm:$0xf]
        %v1816 = vld [vmem:[%s1811 + $0x10] sm:$0xf]
        %v1817 = vld [vmem:[%s1811 + $0x14] sm:$0xf]
        %v1818 = vld [vmem:[%s1811 + $0x18] sm:$0xf]
        %v1819 = vld [vmem:[%s1811 + $0x1c] sm:$0xf]
        %v1820 = vld [vmem:[%s1811 + $0x20] sm:$0xf]
        %v1821 = vld [vmem:[%s1811 + $0x24] sm:$0xf]
        %v1822 = vld [vmem:[%s1811 + $0x28] sm:$0xf]
        %v1823 = vld [vmem:[%s1811 + $0x2c] sm:$0xf]
        %v1824 = vld [vmem:[%s1811 + $0x30] sm:$0xf]
        %v1825 = vld [vmem:[%s1811 + $0x34] sm:$0xf]
        %v1826 = vld [vmem:[%s1811 + $0x38] sm:$0xf]
        %v1827 = vld [vmem:[%s1811 + $0x3c] sm:$0xf]
        %v1829 = vunpack.c.l.b16 %v1807
        %v1830 = vpack.c.b16 %v1430, %v1829
        %vm1831 = vcmask 1044480
        %v1832 = vrot.slane %v1830, 3
        %v1833 = vrot.slane %v1441, 3
        %v1834 = vsel %vm1831, %v1832, %v1833
        %v1835 = vrot.slane %v1442, 3
        %v1836 = vsel %vm1831, %v1833, %v1835
        %v1837 = vrot.slane %v1443, 3
        %v1838 = vsel %vm1831, %v1835, %v1837
        %v1839 = vrot.slane %v1444, 3
        %v1840 = vsel %vm1831, %v1837, %v1839
        %v1841 = vrot.slane %v1616, 3
        %v1842 = vsel %vm1831, %v1839, %v1841
        %v1864 = vunpack.c.l.b16 %v1812
        %v1865 = vunpack.c.l.b16 %v1813
        %v1866 = vunpack.c.l.b16 %v1814
        %v1867 = vunpack.c.l.b16 %v1815
        %v1868 = vunpack.c.l.b16 %v1816
        %v1869 = vunpack.c.l.b16 %v1817
        %v1870 = vunpack.c.l.b16 %v1818
        %v1871 = vunpack.c.l.b16 %v1819
        %v1872 = vunpack.c.l.b16 %v1820
        %v1873 = vunpack.c.l.b16 %v1821
        %v1874 = vunpack.c.l.b16 %v1822
        %v1875 = vunpack.c.l.b16 %v1823
        %v1876 = vunpack.c.l.b16 %v1824
        %v1877 = vunpack.c.l.b16 %v1825
        %v1878 = vunpack.c.l.b16 %v1826
        %v1879 = vunpack.c.l.b16 %v1827
        %v1880 = vpack.c.b16 %v1865, %v1864
        %v1881 = vpack.c.b16 %v1867, %v1866
        %v1882 = vpack.c.b16 %v1869, %v1868
        %v1883 = vpack.c.b16 %v1871, %v1870
        %v1884 = vpack.c.b16 %v1873, %v1872
        %v1885 = vpack.c.b16 %v1875, %v1874
        %v1886 = vpack.c.b16 %v1877, %v1876
        %v1887 = vpack.c.b16 %v1879, %v1878
        %1896 = vmatprep.subr.bf16.mxu0 0
        %1897 = vmatpush1.bf16.msra.mxu0 %v1880
        %1898 = vmatprep.subr.bf16.mxu0 0
        %1899 = vmatpush1.bf16.msra.mxu0 %v1881
        %1900 = vmatprep.subr.bf16.mxu0 0
        %1901 = vmatpush1.bf16.msra.mxu0 %v1882
        %1902 = vmatprep.subr.bf16.mxu0 0
        %1903 = vmatpush1.bf16.msra.mxu0 %v1883
        %1904 = vmatprep.subr.bf16.mxu0 0
        %1905 = vmatpush1.bf16.msra.mxu0 %v1884
        %1906 = vmatprep.subr.bf16.mxu0 0
        %1907 = vmatpush1.bf16.msra.mxu0 %v1885
        %1908 = vmatprep.subr.bf16.mxu0 0
        %1909 = vmatpush1.bf16.msra.mxu0 %v1886
        %1910 = vmatprep.subr.bf16.mxu0 0
        %1911 = vmatpush1.bf16.msra.mxu0 %v1887
        %1912 = vmatprep.subr.bf16.mxu0 0
        %1913 = vmatpush1.bf16.msra.mxu0 0
        %1914 = vmatprep.subr.bf16.mxu0 0
        %1915 = vmatpush1.bf16.msra.mxu0 0
        %1916 = vmatprep.subr.bf16.mxu0 0
        %1917 = vmatpush1.bf16.msra.mxu0 0
        %1918 = vmatprep.subr.bf16.mxu0 0
        %1919 = vmatpush1.bf16.msra.mxu0 0
        %1920 = vmatprep.subr.bf16.mxu0 0
        %1921 = vmatpush1.bf16.msra.mxu0 0
        %1922 = vmatprep.subr.bf16.mxu0 0
        %1923 = vmatpush1.bf16.msra.mxu0 0
        %1924 = vmatprep.subr.bf16.mxu0 0
        %1925 = vmatpush1.bf16.msra.mxu0 0
        %1926 = vmatprep.subr.bf16.mxu0 0
        %1927 = vmatpush1.bf16.msra.mxu0 0
        %1928 = vmatprep.mubr.bf16.mxu0 0
        %1929 = vmatmul.mubr.bf16.gmra.mrb[0].mxu0 %v1834
        %v1930 = vpop.f32.mrb[0].mxu0
        %v1931 = vadd.f32 0.0, %v1930
        %v1932 = vpop.f32.mrb[0].mxu0
        %v1933 = vpop.f32.mrb[0].mxu0
        %v1934 = vadd.f32 0.0, %v1933
        %v1935 = vpop.f32.mrb[0].mxu0
        %1936 = vmatprep.mubr.bf16.mxu0 0
        %1937 = vmatmul.mubr.bf16.gmra.mrb[0].mxu0 %v1836
        %v1938 = vpop.f32.mrb[0].mxu0
        %v1939 = vadd.f32 0.0, %v1938
        %v1940 = vpop.f32.mrb[0].mxu0
        %v1941 = vpop.f32.mrb[0].mxu0
        %v1942 = vadd.f32 0.0, %v1941
        %v1943 = vpop.f32.mrb[0].mxu0
        %1944 = vmatprep.mubr.bf16.mxu0 0
        %1945 = vmatmul.mubr.bf16.gmra.mrb[0].mxu0 %v1838
        %v1946 = vpop.f32.mrb[0].mxu0
        %v1947 = vadd.f32 0.0, %v1946
        %v1948 = vpop.f32.mrb[0].mxu0
        %v1949 = vpop.f32.mrb[0].mxu0
        %v1950 = vadd.f32 0.0, %v1949
        %v1951 = vpop.f32.mrb[0].mxu0
        %1952 = vmatprep.mubr.bf16.mxu0 0
        %1953 = vmatmul.mubr.bf16.gmra.mrb[0].mxu0 %v1840
        %v1954 = vpop.f32.mrb[0].mxu0
        %v1955 = vadd.f32 0.0, %v1954
        %v1956 = vpop.f32.mrb[0].mxu0
        %v1957 = vpop.f32.mrb[0].mxu0
        %v1958 = vadd.f32 0.0, %v1957
        %v1959 = vpop.f32.mrb[0].mxu0
        %1960 = vmatprep.mubr.bf16.mxu0 0
        %1961 = vmatmul.mubr.bf16.gmra.mrb[0].mxu0 %v1842
        %v1962 = vpop.f32.mrb[0].mxu0
        %v1963 = vadd.f32 0.0, %v1962
        %v1964 = vpop.f32.mrb[0].mxu0
        %v1965 = vpop.f32.mrb[0].mxu0
        %v1966 = vadd.f32 0.0, %v1965
        %v1967 = vpop.f32.mrb[0].mxu0
        %1968 = vdwg.mxu0
        %v1969 = vadd.f32 %v1797, %v1931
        %v1970 = vadd.f32 %v1798, %v1934
        %v1971 = vadd.f32 %v1799, %v1939
        %v1972 = vadd.f32 %v1800, %v1942
        %v1973 = vadd.f32 %v1801, %v1947
        %v1974 = vadd.f32 %v1802, %v1950
        %v1975 = vadd.f32 %v1803, %v1955
        %v1976 = vadd.f32 %v1804, %v1958
        %v1977 = vadd.f32 %v1805, %v1963
        %v1978 = vadd.f32 %v1806, %v1966
        %p1979 = scmp.eq.s32.totalorder %s32, 0
        // Predicated region
        $region37: #{basic_block_forward.4} parent=27 // pred_check
          %p1980 = pneg %p1979
        $region38: #{basic_block_forward.4} parent=27 // pred_check_branch
          %1982 = sbr.rel (%p1980) target = $region40
        $region39: #{basic_block_forward.4} parent=27 // pred_region
          %1983 = vst [vmem:[#allocation2] sm:$0xff] %v1969
          %1984 = vst [vmem:[#allocation2 + $0x8] sm:$0xff] %v1970
          %1985 = vst [vmem:[#allocation2 + $0x10] sm:$0xff] %v1971
          %1986 = vst [vmem:[#allocation2 + $0x18] sm:$0xff] %v1972
          %1987 = vst [vmem:[#allocation2 + $0x20] sm:$0xff] %v1973
          %1988 = vst [vmem:[#allocation2 + $0x28] sm:$0xff] %v1974
          %1989 = vst [vmem:[#allocation2 + $0x30] sm:$0xff] %v1975
          %1990 = vst [vmem:[#allocation2 + $0x38] sm:$0xff] %v1976
          %1991 = vst [vmem:[#allocation2 + $0x40] sm:$0xff] %v1977
          %1992 = vst [vmem:[#allocation2 + $0x48] sm:$0xff] %v1978
        $region40: #{basic_block_forward.4} parent=27 // pred_fallthru
          _
        %p1993 = scmp.gt.s32.totalorder %s32, 0
        %p1994 = scmp.lt.s32.totalorder %s32, 2
        %p1995 = pnand %p1993, %p1994
        %p1996 = pneg %p1995
        // Predicated region
        $region41: #{basic_block_forward.4} parent=27 // pred_check
          _
        $region42: #{basic_block_forward.4} parent=27 // pred_check_branch
          %1998 = sbr.rel (%p1995) target = $region44
        $region43: #{basic_block_forward.4} parent=27 // pred_region
          %v1999 = vld [vmem:[#allocation2] sm:$0xff]
          %v2000 = vld [vmem:[#allocation2 + $0x8] sm:$0xff]
          %v2001 = vld [vmem:[#allocation2 + $0x10] sm:$0xff]
          %v2002 = vld [vmem:[#allocation2 + $0x18] sm:$0xff]
          %v2003 = vld [vmem:[#allocation2 + $0x20] sm:$0xff]
          %v2004 = vld [vmem:[#allocation2 + $0x28] sm:$0xff]
          %v2005 = vld [vmem:[#allocation2 + $0x30] sm:$0xff]
          %v2006 = vld [vmem:[#allocation2 + $0x38] sm:$0xff]
          %v2007 = vld [vmem:[#allocation2 + $0x40] sm:$0xff]
          %v2008 = vld [vmem:[#allocation2 + $0x48] sm:$0xff]
          %v2009 = vadd.f32 %v1999, %v1969
          %v2010 = vadd.f32 %v2000, %v1970
          %v2011 = vadd.f32 %v2001, %v1971
          %v2012 = vadd.f32 %v2002, %v1972
          %v2013 = vadd.f32 %v2003, %v1973
          %v2014 = vadd.f32 %v2004, %v1974
          %v2015 = vadd.f32 %v2005, %v1975
          %v2016 = vadd.f32 %v2006, %v1976
          %v2017 = vadd.f32 %v2007, %v1977
          %v2018 = vadd.f32 %v2008, %v1978
          %2019 = vst [vmem:[#allocation2] sm:$0xff] %v2009
          %2020 = vst [vmem:[#allocation2 + $0x8] sm:$0xff] %v2010
          %2021 = vst [vmem:[#allocation2 + $0x10] sm:$0xff] %v2011
          %2022 = vst [vmem:[#allocation2 + $0x18] sm:$0xff] %v2012
          %2023 = vst [vmem:[#allocation2 + $0x20] sm:$0xff] %v2013
          %2024 = vst [vmem:[#allocation2 + $0x28] sm:$0xff] %v2014
          %2025 = vst [vmem:[#allocation2 + $0x30] sm:$0xff] %v2015
          %2026 = vst [vmem:[#allocation2 + $0x38] sm:$0xff] %v2016
          %2027 = vst [vmem:[#allocation2 + $0x40] sm:$0xff] %v2017
          %2028 = vst [vmem:[#allocation2 + $0x48] sm:$0xff] %v2018
        $region44: #{basic_block_forward.4} parent=27 // pred_fallthru
          _
        %p2029 = scmp.eq.s32.totalorder %s32, 2
        // Predicated region
        $region45: #{basic_block_forward.4} parent=27 // pred_check
          %p2030 = pneg %p2029
        $region46: #{basic_block_forward.4} parent=27 // pred_check_branch
          %2032 = sbr.rel (%p2030) target = $region48
        $region47: #{basic_block_forward.4} parent=27 // pred_region
          %v2033 = vld [vmem:[#allocation2] sm:$0xff]
          %v2034 = vld [vmem:[#allocation2 + $0x8] sm:$0xff]
          %v2035 = vld [vmem:[#allocation2 + $0x10] sm:$0xff]
          %v2036 = vld [vmem:[#allocation2 + $0x18] sm:$0xff]
          %v2037 = vld [vmem:[#allocation2 + $0x20] sm:$0xff]
          %v2038 = vld [vmem:[#allocation2 + $0x28] sm:$0xff]
          %v2039 = vld [vmem:[#allocation2 + $0x30] sm:$0xff]
          %v2040 = vld [vmem:[#allocation2 + $0x38] sm:$0xff]
          %v2041 = vld [vmem:[#allocation2 + $0x40] sm:$0xff]
          %v2042 = vld [vmem:[#allocation2 + $0x48] sm:$0xff]
          %v2043 = vadd.f32 %v2033, %v1969
          %v2044 = vadd.f32 %v2034, %v1970
          %v2045 = vadd.f32 %v2035, %v1971
          %v2046 = vadd.f32 %v2036, %v1972
          %v2047 = vadd.f32 %v2037, %v1973
          %v2048 = vadd.f32 %v2038, %v1974
          %v2049 = vadd.f32 %v2039, %v1975
          %v2050 = vadd.f32 %v2040, %v1976
          %v2051 = vadd.f32 %v2041, %v1977
          %v2052 = vadd.f32 %v2042, %v1978
          %v2053 = vlaneseq
          %v2054 = vshrl.u32 %v2053, 7
          %v2055 = vadd.s32 %v2054, 8
          %v2056 = vadd.s32 %v2054, 16
          %v2057 = vadd.s32 %v2054, 24
          %v2058 = vadd.s32 %v2054, 32
          %v2059 = vadd.s32 %v2054, 40
          %v2060 = vadd.s32 %v2054, 48
          %v2061 = vadd.s32 %v2054, 56
          %v2062 = vadd.s32 %v2054, 64
          %v2063 = vadd.s32 %v2054, 72
          %vm2064 = vcmp.lt.s32.totalorder %v2054, 0
          %v2065 = vsub.s32 0, %v2054
          %v2066 = vsel %vm2064, %v2065, %v2054
          %v2067 = vmul.u32.u64.compose %v2066, 3435973837
          %v2068 = vextract.low.u32 %v2067
          %v2069 = vextract.high.u32 %v2067
          %v2070 = vshrl.u32 %v2069, 3
          %v2071 = vmul.u32 %v2070, 10
          %v2072 = vsub.s32 %v2066, %v2071
          %v2073 = vsub.s32 0, %v2072
          %v2074 = vsel %vm2064, %v2073, %v2072
          %vm2075 = vcmp.lt.s32.totalorder %v2055, 0
          %v2076 = vsub.s32 0, %v2055
          %v2077 = vsel %vm2075, %v2076, %v2055
          %v2078 = vmul.u32.u64.compose %v2077, 3435973837
          %v2079 = vextract.low.u32 %v2078
          %v2080 = vextract.high.u32 %v2078
          %v2081 = vshrl.u32 %v2080, 3
          %v2082 = vmul.u32 %v2081, 10
          %v2083 = vsub.s32 %v2077, %v2082
          %v2084 = vsub.s32 0, %v2083
          %v2085 = vsel %vm2075, %v2084, %v2083
          %vm2086 = vcmp.lt.s32.totalorder %v2056, 0
          %v2087 = vsub.s32 0, %v2056
          %v2088 = vsel %vm2086, %v2087, %v2056
          %v2089 = vmul.u32.u64.compose %v2088, 3435973837
          %v2090 = vextract.low.u32 %v2089
          %v2091 = vextract.high.u32 %v2089
          %v2092 = vshrl.u32 %v2091, 3
          %v2093 = vmul.u32 %v2092, 10
          %v2094 = vsub.s32 %v2088, %v2093
          %v2095 = vsub.s32 0, %v2094
          %v2096 = vsel %vm2086, %v2095, %v2094
          %vm2097 = vcmp.lt.s32.totalorder %v2057, 0
          %v2098 = vsub.s32 0, %v2057
          %v2099 = vsel %vm2097, %v2098, %v2057
          %v2100 = vmul.u32.u64.compose %v2099, 3435973837
          %v2101 = vextract.low.u32 %v2100
          %v2102 = vextract.high.u32 %v2100
          %v2103 = vshrl.u32 %v2102, 3
          %v2104 = vmul.u32 %v2103, 10
          %v2105 = vsub.s32 %v2099, %v2104
          %v2106 = vsub.s32 0, %v2105
          %v2107 = vsel %vm2097, %v2106, %v2105
          %vm2108 = vcmp.lt.s32.totalorder %v2058, 0
          %v2109 = vsub.s32 0, %v2058
          %v2110 = vsel %vm2108, %v2109, %v2058
          %v2111 = vmul.u32.u64.compose %v2110, 3435973837
          %v2112 = vextract.low.u32 %v2111
          %v2113 = vextract.high.u32 %v2111
          %v2114 = vshrl.u32 %v2113, 3
          %v2115 = vmul.u32 %v2114, 10
          %v2116 = vsub.s32 %v2110, %v2115
          %v2117 = vsub.s32 0, %v2116
          %v2118 = vsel %vm2108, %v2117, %v2116
          %vm2119 = vcmp.lt.s32.totalorder %v2059, 0
          %v2120 = vsub.s32 0, %v2059
          %v2121 = vsel %vm2119, %v2120, %v2059
          %v2122 = vmul.u32.u64.compose %v2121, 3435973837
          %v2123 = vextract.low.u32 %v2122
          %v2124 = vextract.high.u32 %v2122
          %v2125 = vshrl.u32 %v2124, 3
          %v2126 = vmul.u32 %v2125, 10
          %v2127 = vsub.s32 %v2121, %v2126
          %v2128 = vsub.s32 0, %v2127
          %v2129 = vsel %vm2119, %v2128, %v2127
          %vm2130 = vcmp.lt.s32.totalorder %v2060, 0
          %v2131 = vsub.s32 0, %v2060
          %v2132 = vsel %vm2130, %v2131, %v2060
          %v2133 = vmul.u32.u64.compose %v2132, 3435973837
          %v2134 = vextract.low.u32 %v2133
          %v2135 = vextract.high.u32 %v2133
          %v2136 = vshrl.u32 %v2135, 3
          %v2137 = vmul.u32 %v2136, 10
          %v2138 = vsub.s32 %v2132, %v2137
          %v2139 = vsub.s32 0, %v2138
          %v2140 = vsel %vm2130, %v2139, %v2138
          %vm2141 = vcmp.lt.s32.totalorder %v2061, 0
          %v2142 = vsub.s32 0, %v2061
          %v2143 = vsel %vm2141, %v2142, %v2061
          %v2144 = vmul.u32.u64.compose %v2143, 3435973837
          %v2145 = vextract.low.u32 %v2144
          %v2146 = vextract.high.u32 %v2144
          %v2147 = vshrl.u32 %v2146, 3
          %v2148 = vmul.u32 %v2147, 10
          %v2149 = vsub.s32 %v2143, %v2148
          %v2150 = vsub.s32 0, %v2149
          %v2151 = vsel %vm2141, %v2150, %v2149
          %vm2152 = vcmp.lt.s32.totalorder %v2062, 0
          %v2153 = vsub.s32 0, %v2062
          %v2154 = vsel %vm2152, %v2153, %v2062
          %v2155 = vmul.u32.u64.compose %v2154, 3435973837
          %v2156 = vextract.low.u32 %v2155
          %v2157 = vextract.high.u32 %v2155
          %v2158 = vshrl.u32 %v2157, 3
          %v2159 = vmul.u32 %v2158, 10
          %v2160 = vsub.s32 %v2154, %v2159
          %v2161 = vsub.s32 0, %v2160
          %v2162 = vsel %vm2152, %v2161, %v2160
          %vm2163 = vcmp.lt.s32.totalorder %v2063, 0
          %v2164 = vsub.s32 0, %v2063
          %v2165 = vsel %vm2163, %v2164, %v2063
          %v2166 = vmul.u32.u64.compose %v2165, 3435973837
          %v2167 = vextract.low.u32 %v2166
          %v2168 = vextract.high.u32 %v2166
          %v2169 = vshrl.u32 %v2168, 3
          %v2170 = vmul.u32 %v2169, 10
          %v2171 = vsub.s32 %v2165, %v2170
          %v2172 = vsub.s32 0, %v2171
          %v2173 = vsel %vm2163, %v2172, %v2171
          %vm2174 = vcmp.ne.s32.totalorder %v2074, 0
          %vm2175 = vcmp.ne.s32.totalorder %v2085, 0
          %vm2176 = vcmp.ne.s32.totalorder %v2096, 0
          %vm2177 = vcmp.ne.s32.totalorder %v2107, 0
          %vm2178 = vcmp.ne.s32.totalorder %v2118, 0
          %vm2179 = vcmp.ne.s32.totalorder %v2129, 0
          %vm2180 = vcmp.ne.s32.totalorder %v2140, 0
          %vm2181 = vcmp.ne.s32.totalorder %v2151, 0
          %vm2182 = vcmp.ne.s32.totalorder %v2162, 0
          %vm2183 = vcmp.ne.s32.totalorder %v2173, 0
          %vm2184 = vcmp.lt.s32.totalorder %v2074, 0
          %vm2185 = vcmp.lt.s32.totalorder %v2085, 0
          %vm2186 = vcmp.lt.s32.totalorder %v2096, 0
          %vm2187 = vcmp.lt.s32.totalorder %v2107, 0
          %vm2188 = vcmp.lt.s32.totalorder %v2118, 0
          %vm2189 = vcmp.lt.s32.totalorder %v2129, 0
          %vm2190 = vcmp.lt.s32.totalorder %v2140, 0
          %vm2191 = vcmp.lt.s32.totalorder %v2151, 0
          %vm2192 = vcmp.lt.s32.totalorder %v2162, 0
          %vm2193 = vcmp.lt.s32.totalorder %v2173, 0
          %vm2194 = vmand %vm2184, %vm2174
          %vm2195 = vmand %vm2185, %vm2175
          %vm2196 = vmand %vm2186, %vm2176
          %vm2197 = vmand %vm2187, %vm2177
          %vm2198 = vmand %vm2188, %vm2178
          %vm2199 = vmand %vm2189, %vm2179
          %vm2200 = vmand %vm2190, %vm2180
          %vm2201 = vmand %vm2191, %vm2181
          %vm2202 = vmand %vm2192, %vm2182
          %vm2203 = vmand %vm2193, %vm2183
          %v2204 = vadd.s32 %v2074, 10
          %v2205 = vadd.s32 %v2085, 10
          %v2206 = vadd.s32 %v2096, 10
          %v2207 = vadd.s32 %v2107, 10
          %v2208 = vadd.s32 %v2118, 10
          %v2209 = vadd.s32 %v2129, 10
          %v2210 = vadd.s32 %v2140, 10
          %v2211 = vadd.s32 %v2151, 10
          %v2212 = vadd.s32 %v2162, 10
          %v2213 = vadd.s32 %v2173, 10
          %v2214 = vsel %vm2194, %v2204, %v2074
          %v2215 = vsel %vm2195, %v2205, %v2085
          %v2216 = vsel %vm2196, %v2206, %v2096
          %v2217 = vsel %vm2197, %v2207, %v2107
          %v2218 = vsel %vm2198, %v2208, %v2118
          %v2219 = vsel %vm2199, %v2209, %v2129
          %v2220 = vsel %vm2200, %v2210, %v2140
          %v2221 = vsel %vm2201, %v2211, %v2151
          %v2222 = vsel %vm2202, %v2212, %v2162
          %v2223 = vsel %vm2203, %v2213, %v2173
          %vm2224 = vcmp.lt.s32.totalorder %v2214, 8
          %vm2225 = vcmp.lt.s32.totalorder %v2215, 8
          %vm2226 = vcmp.lt.s32.totalorder %v2216, 8
          %vm2227 = vcmp.lt.s32.totalorder %v2217, 8
          %vm2228 = vcmp.lt.s32.totalorder %v2218, 8
          %vm2229 = vcmp.lt.s32.totalorder %v2219, 8
          %vm2230 = vcmp.lt.s32.totalorder %v2220, 8
          %vm2231 = vcmp.lt.s32.totalorder %v2221, 8
          %vm2232 = vcmp.lt.s32.totalorder %v2222, 8
          %vm2233 = vcmp.lt.s32.totalorder %v2223, 8
          %v2234 = vsel %vm2224, 1, 0
          %v2235 = vsel %vm2225, 1, 0
          %v2236 = vsel %vm2226, 1, 0
          %v2237 = vsel %vm2227, 1, 0
          %v2238 = vsel %vm2228, 1, 0
          %v2239 = vsel %vm2229, 1, 0
          %v2240 = vsel %vm2230, 1, 0
          %v2241 = vsel %vm2231, 1, 0
          %v2242 = vsel %vm2232, 1, 0
          %v2243 = vsel %vm2233, 1, 0
          %v2244 = vcvt.s32.f32 %v2234
          %v2245 = vcvt.s32.f32 %v2235
          %v2246 = vcvt.s32.f32 %v2236
          %v2247 = vcvt.s32.f32 %v2237
          %v2248 = vcvt.s32.f32 %v2238
          %v2249 = vcvt.s32.f32 %v2239
          %v2250 = vcvt.s32.f32 %v2240
          %v2251 = vcvt.s32.f32 %v2241
          %v2252 = vcvt.s32.f32 %v2242
          %v2253 = vcvt.s32.f32 %v2243
          %v2254 = vmul.f32 %v2043, %v2244
          %v2255 = vmul.f32 %v2044, %v2245
          %v2256 = vmul.f32 %v2045, %v2246
          %v2257 = vmul.f32 %v2046, %v2247
          %v2258 = vmul.f32 %v2047, %v2248
          %v2259 = vmul.f32 %v2048, %v2249
          %v2260 = vmul.f32 %v2049, %v2250
          %v2261 = vmul.f32 %v2050, %v2251
          %v2262 = vmul.f32 %v2051, %v2252
          %v2263 = vmul.f32 %v2052, %v2253
          %v2264 = vadd.f32 %v2254, %v2255
          %v2265 = vadd.f32 %v2264, %v2256
          %v2266 = vadd.f32 %v2265, %v2257
          %v2267 = vadd.f32 %v2266, %v2258
          %v2268 = vadd.f32 %v2267, %v2259
          %v2269 = vadd.f32 %v2268, %v2260
          %v2270 = vadd.f32 %v2269, %v2261
          %v2271 = vadd.f32 %v2270, %v2262
          %v2272 = vadd.f32 %v2271, %v2263
          %v2273 = vrot.slane %v2272, 4
          %v2274 = vadd.f32 %v2272, %v2273
          %v2275 = vrot.slane %v2274, 2
          %v2276 = vadd.f32 %v2274, %v2275
          %v2277 = vrot.slane %v2276, 1
          %v2278 = vadd.f32 %v2276, %v2277
          %v2279 = vmul.f32 %v2254, %v2043
          %v2280 = vmul.f32 %v2255, %v2044
          %v2281 = vmul.f32 %v2256, %v2045
          %v2282 = vmul.f32 %v2257, %v2046
          %v2283 = vmul.f32 %v2258, %v2047
          %v2284 = vmul.f32 %v2259, %v2048
          %v2285 = vmul.f32 %v2260, %v2049
          %v2286 = vmul.f32 %v2261, %v2050
          %v2287 = vmul.f32 %v2262, %v2051
          %v2288 = vmul.f32 %v2263, %v2052
          %v2289 = vadd.f32 %v2279, %v2280
          %v2290 = vadd.f32 %v2289, %v2281
          %v2291 = vadd.f32 %v2290, %v2282
          %v2292 = vadd.f32 %v2291, %v2283
          %v2293 = vadd.f32 %v2292, %v2284
          %v2294 = vadd.f32 %v2293, %v2285
          %v2295 = vadd.f32 %v2294, %v2286
          %v2296 = vadd.f32 %v2295, %v2287
          %v2297 = vadd.f32 %v2296, %v2288
          %v2298 = vrot.slane %v2297, 4
          %v2299 = vadd.f32 %v2297, %v2298
          %v2300 = vrot.slane %v2299, 2
          %v2301 = vadd.f32 %v2299, %v2300
          %v2302 = vrot.slane %v2301, 1
          %v2303 = vadd.f32 %v2301, %v2302
          %vm2304 = vcmask 1040384
          %v2305 = vsel %vm2304, %v2278, %v2303
          %2306 = vst [vmem:[%s244] sm:$0x3] %v2305
          %v2307 = vpack.c.bf16 %v2044, %v2043
          %v2308 = vpack.c.bf16 %v2046, %v2045
          %v2309 = vpack.c.bf16 %v2048, %v2047
          %v2310 = vpack.c.bf16 %v2050, %v2049
          %v2311 = vpack.c.bf16 %v2052, %v2051
          %v2317 = vunpack.c.l.b16 %v2307
          %v2318 = vunpack.c.h.b16 %v2307
          %v2319 = vunpack.c.l.b16 %v2308
          %v2320 = vunpack.c.h.b16 %v2308
          %v2321 = vunpack.c.l.b16 %v2309
          %v2322 = vunpack.c.h.b16 %v2309
          %v2323 = vunpack.c.l.b16 %v2310
          %v2324 = vunpack.c.h.b16 %v2310
          %v2325 = vunpack.c.l.b16 %v2311
          %v2326 = vunpack.c.h.b16 %v2311
          %v2327 = vpack.c.b16 %v2317, %v2317
          %v2328 = vpack.c.b16 %v2318, %v2318
          %v2329 = vpack.c.b16 %v2319, %v2319
          %v2330 = vpack.c.b16 %v2320, %v2320
          %v2331 = vpack.c.b16 %v2321, %v2321
          %v2332 = vpack.c.b16 %v2322, %v2322
          %v2333 = vpack.c.b16 %v2323, %v2323
          %v2334 = vpack.c.b16 %v2324, %v2324
          %v2335 = vpack.c.b16 %v2325, %v2325
          %v2336 = vpack.c.b16 %v2326, %v2326
          %2347 = vst [vmem:[%s237] sm:$0xf] %v2327
          %2348 = vst [vmem:[%s237 + $0x4] sm:$0xf] %v2328
          %2349 = vst [vmem:[%s237 + $0x8] sm:$0xf] %v2329
          %2350 = vst [vmem:[%s237 + $0xc] sm:$0xf] %v2330
          %2351 = vst [vmem:[%s237 + $0x10] sm:$0xf] %v2331
          %2352 = vst [vmem:[%s237 + $0x14] sm:$0xf] %v2332
          %2353 = vst [vmem:[%s237 + $0x18] sm:$0xf] %v2333
          %2354 = vst [vmem:[%s237 + $0x1c] sm:$0xf] %v2334
          %2355 = vst [vmem:[%s237 + $0x20] sm:$0xf] %v2335
          %2356 = vst [vmem:[%s237 + $0x24] sm:$0xf] %v2336
        $region48: #{basic_block_forward.4} parent=27 // pred_fallthru
          _
        %s2357 = sand.u32 %s105, 1
        %s2358 = scalar_lea.sflag [#allocation5], %s2357
        %s2359 = sand.u32 %s105, 1
        %s2360 = smul.addr %s2359, 40
        %s2361 = scalar_lea.vmem [#allocation8], %s2360
        %s2362 = sand.u32 %s133, 1
        %s2363 = scalar_lea.sflag [#allocation10], %s2362
        %s2364 = sand.u32 %s133, 1
        %s2365 = smul.addr %s2364, 2
        %s2366 = scalar_lea.vmem [#allocation9], %s2365
        // Predicated region
        $region49: #{basic_block_forward.4} parent=27 // pred_check
          %p2367 = pneg %p115
        $region50: #{basic_block_forward.4} parent=27 // pred_check_branch
          %2369 = sbr.rel (%p2367) target = $region52
        $region51: #{basic_block_forward.4} parent=27 // pred_region
          %s2371 = ssub.s32 640, 640
          %2372 = vsyncadd %s2358, %s2371
          %s2373 = smul.addr %s31, 10
          %s2374 = smul.addr %s30, 80
          %s2375 = sadd.s32 %s2373, %s2374
          %s2376 = smul.addr %s2375, 64
          %s2377 = scalar_lea.hbm %s2, %s2376
          %s2378 = sshll.u32 %s2361, 4
          %s2379 = int_to_ptr.vmem [resolvable:$true] %s2378
          %2384 = dma.vmem_to_hbm [thread:$0]  %s2379, 640, %s2377, %s2358, 64, 64, 4
        $region52: #{basic_block_forward.4} parent=27 // pred_fallthru
          _
        // Predicated region
        $region53: #{basic_block_forward.4} parent=27 // pred_check
          %p2385 = pneg %p143
        $region54: #{basic_block_forward.4} parent=27 // pred_check_branch
          %2387 = sbr.rel (%p2385) target = $region56
        $region55: #{basic_block_forward.4} parent=27 // pred_region
          %s2389 = ssub.s32 32, 32
          %2390 = vsyncadd %s2363, %s2389
          %s2391 = smul.addr %s30, 8
          %s2392 = sadd.s32 %s31, %s2391
          %s2393 = smul.addr %s2392, 32
          %s2394 = scalar_lea.hbm %s3, %s2393
          %s2396 = sshll.u32 %s2366, 4
          %s2397 = int_to_ptr.vmem [resolvable:$true] %s2396
          %2399 = dma.vmem_to_hbm [thread:$0]  %s2397, 32, %s2394, %s2363
        $region56: #{basic_block_forward.4} parent=27 // pred_fallthru
          _
      $region28: #{basic_block_forward.4} parent=5 // pred_fallthru
        _
      %p2400 = scmp.le.s32.totalorder 2, %s20
      // Predicated region
      $region57: #{basic_block_forward.4} parent=5 // pred_check
        %p2401 = pneg %p2400
      $region58: #{basic_block_forward.4} parent=5 // pred_check_branch
        %2403 = sbr.rel (%p2401) target = $region60
      $region59: #{basic_block_forward.4} parent=5 // pred_region
        %s2404 = ssub.s32 %s20, 2
        // Predicated region
        $region61: #{basic_block_forward.4} parent=59 // pred_check
          %p2405 = pneg %p121
        $region62: #{basic_block_forward.4} parent=59 // pred_check_branch
          %2407 = sbr.rel (%p2405) target = $region64
        $region63: #{basic_block_forward.4} parent=59 // pred_region
          %s2408 = sand.u32 %s106, 1
          %s2409 = scalar_lea.sflag [#allocation5], %s2408
          %s2410 = sand.u32 %s106, 1
          %s2411 = smul.addr %s2410, 40
          %s2412 = scalar_lea.vmem [#allocation8], %s2411
          %2413 = dma.done %s2409, 640
        $region64: #{basic_block_forward.4} parent=59 // pred_fallthru
          _
        // Predicated region
        $region65: #{basic_block_forward.4} parent=59 // pred_check
          %p2414 = pneg %p149
        $region66: #{basic_block_forward.4} parent=59 // pred_check_branch
          %2416 = sbr.rel (%p2414) target = $region68
        $region67: #{basic_block_forward.4} parent=59 // pred_region
          %s2417 = sand.u32 %s134, 1
          %s2418 = scalar_lea.sflag [#allocation10], %s2417
          %s2419 = sand.u32 %s134, 1
          %s2420 = smul.addr %s2419, 2
          %s2421 = scalar_lea.vmem [#allocation9], %s2420
          %2422 = dma.done %s2418, 32
        $region68: #{basic_block_forward.4} parent=59 // pred_fallthru
          _
      $region60: #{basic_block_forward.4} parent=5 // pred_fallthru
        _
    $region6: #{basic_block_forward.4} parent=1 // loop_footer
      %s24 = sadd.s32 1, %s20
    $region7: #{basic_block_forward.4} parent=1 // loop_footer_branch
      %19 = sbr.rel target = $region3
    $region8: #{basic_block_forward.4} parent=1 // loop_exit
      _
    %2423 = vsyncpa [#allocation4], 1
    %s2424 = scalar_lea.sflag [#allocation4], 1
    %2425 = vsyncpa %s2424, 1
    %2426 = vsyncpa [#allocation7], 1
    %2427 = vsyncpa [#allocation5], 1
    %s2428 = scalar_lea.sflag [#allocation5], 1
    %2429 = vsyncpa %s2428, 1
    %2430 = vsyncpa [#allocation10], 1
    %s2431 = scalar_lea.sflag [#allocation10], 1
    %2432 = vsyncpa %s2431, 1

// kernel: basic_block_forward.7
$region0: #{basic_block_forward.7}
  #allocation0 [shape = 'u32[]', space=smem, size = 0x4, offset = 0x4, fixed_abs, tag = 'smem constant byte address 0x4 - core index']
  #allocation1 [shape = 'u32[144,128]{1,0:T(1,128)}', space=vmem, size = 0x12000, scoped, tag = 'internal scratch']
  %s0 = inlined_call_operand.hbm [shape: bf16[2,8,80,128], index: 0, kind: input, shape index: {}]
  %s1 = inlined_call_operand.hbm [shape: f32[1,128], index: 1, kind: input, shape index: {}]
  %s2 = inlined_call_operand.hbm [shape: f32[1,128], index: 2, kind: input, shape index: {}]
  %s3 = inlined_call_operand.hbm [shape: bf16[2,8,80,128], index: 3, kind: input, shape index: {}]
  %s4 = inlined_call_operand.hbm [shape: f32[2,8,80,128], index: 4, kind: output, shape index: {}]
  %s5 = sld [smem:[#allocation0]]
  $region65: #{basic_block_forward.7} parent=0
    _
  %s7 = ssub.s32 1, %s5
  %s8 = scalar_select 0, %s7, %s5
  $region1: #{basic_block_forward.7} parent=0
    #allocation2 [shape = 'u8[40960]{0}', space=vmem, size = 0xa000, scoped, tag = 'input window, operand 0']
    #allocation3 [shape = 's32[2]{0}', space=sflag, size = 0x8, scoped, tag = 'scoped memory for basic_block_forward.7']
    #allocation4 [shape = 's32[2]{0}', space=sflag, size = 0x8, scoped, tag = 'scoped memory for basic_block_forward.7']
    #allocation5 [shape = 'u8[512]{0}', space=vmem, size = 0x400, scoped, tag = 'input window, operand 1, single buffered']
    #allocation6 [shape = 's32[1]{0}', space=sflag, size = 0x4, scoped, tag = 'scoped memory for basic_block_forward.7']
    #allocation7 [shape = 'u8[512]{0}', space=vmem, size = 0x400, scoped, tag = 'input window, operand 2, single buffered']
    #allocation8 [shape = 'u8[40960]{0}', space=vmem, size = 0xa000, scoped, tag = 'input window, operand 3']
    #allocation9 [shape = 's32[2]{0}', space=sflag, size = 0x8, scoped, tag = 'scoped memory for basic_block_forward.7']
    #allocation10 [shape = 'u8[81920]{0}', space=vmem, size = 0x14000, scoped, tag = 'output window, operand 0']
    %9 = vsyncpa [#allocation3], 0
    %s10 = scalar_lea.sflag [#allocation3], 1
    %11 = vsyncpa %s10, 0
    %12 = vsyncpa [#allocation6], 0
    %13 = vsyncpa [#allocation9], 0
    %s14 = scalar_lea.sflag [#allocation9], 1
    %15 = vsyncpa %s14, 0
    %16 = vsyncpa [#allocation4], 0
    %s17 = scalar_lea.sflag [#allocation4], 1
    %18 = vsyncpa %s17, 0
    loop: start=0, step=1, limit=18
    $region2: #{basic_block_forward.7} parent=1 // loop_pre_header
      _
    $region3: #{basic_block_forward.7} parent=1 // loop_header
      %s20 = sphi 0, %s24
      %p21 = scmp.ge.s32.totalorder %s20, 18
      %s27 = sphi 0, %s39
      %s28 = sphi 0, %s35
      %s29 = sphi 0, %s27
      %s30 = sphi 0, %s28
      %s31 = sphi 0, %s29
      %s32 = sphi 0, %s30
      %s44 = sphi 0, %s46
      %s47 = sphi 0, %s44
      %s48 = sphi 0, %s47
      %s64 = sphi 0, %s48
      %s68 = sphi 0, %s68
      %s70 = sphi 0, %s68
      %s71 = sphi 0, %s70
      %s85 = sphi 0, %s71
      %s89 = sphi 0, %s89
      %s91 = sphi 0, %s89
      %s92 = sphi 0, %s91
      %s106 = sphi 0, %s92
      %s114 = sphi 0, %s116
      %s117 = sphi 0, %s114
      %s118 = sphi 0, %s117
      %s134 = sphi 0, %s118
      %s142 = sphi 0, %s144
      %s145 = sphi 0, %s142
      %s146 = sphi 0, %s145
      %s162 = sphi 0, %s146
    $region4: #{basic_block_forward.7} parent=1 // loop_header_branch
      %23 = sbr.rel (%p21) target = $region8
    $region5: #{basic_block_forward.7} parent=1 // loop_body
      %s25 = ssub.s32 %s20, 1
      %s26 = ssub.s32 %s20, 2
      %s33 = sadd.s32 1, %s28
      %p34 = scmp.ge.s32.totalorder %s33, 8
      %s35 = scalar_select %p34, 0, %s33
      %s36 = sadd.s32 1, %s27
      %s37 = scalar_select %p34, %s36, %s27
      %p38 = scmp.ge.s32.totalorder %s37, 2
      %s39 = scalar_select %p38, 0, %s37
      %s40 = ssub.s32 %s27, %s39
      %s41 = ssub.s32 %s28, %s35
      %s42 = sor.u32 %s40, %s41
      %p43 = scmp.eq.s32.totalorder %s42, 0
      %s45 = sadd.s32 %s44, 1
      %s46 = scalar_select %p43, %s44, %s45
      %p49 = pneg %p43
      %p50 = scmp.eq.s32.totalorder %s20, 15
      %p51 = por %p49, %p50
      %p52 = scmp.ne.s32.totalorder %s44, %s47
      %p53 = scmp.eq.s32.totalorder %s20, 0
      %p54 = por %p52, %p53
      %p55 = scmp.ne.s32.totalorder %s44, %s47
      %p56 = scmp.eq.s32.totalorder %s25, 15
      %p57 = por %p55, %p56
      %p58 = scmp.ne.s32.totalorder %s47, %s48
      %p59 = scmp.eq.s32.totalorder %s25, 0
      %p60 = por %p58, %p59
      %p61 = scmp.ne.s32.totalorder %s47, %s48
      %p62 = scmp.eq.s32.totalorder %s26, 15
      %p63 = por %p61, %p62
      %p65 = scmp.ne.s32.totalorder %s48, %s64
      %p66 = scmp.eq.s32.totalorder %s26, 0
      %p67 = por %p65, %p66
      %s69 = sadd.s32 %s68, 1
      %p72 = scmp.eq.s32.totalorder %s20, 15
      %p73 = scmp.ne.s32.totalorder %s68, %s70
      %p74 = scmp.eq.s32.totalorder %s20, 0
      %p75 = por %p73, %p74
      %p76 = scmp.ne.s32.totalorder %s68, %s70
      %p77 = scmp.eq.s32.totalorder %s25, 15
      %p78 = por %p76, %p77
      %p79 = scmp.ne.s32.totalorder %s70, %s71
      %p80 = scmp.eq.s32.totalorder %s25, 0
      %p81 = por %p79, %p80
      %p82 = scmp.ne.s32.totalorder %s70, %s71
      %p83 = scmp.eq.s32.totalorder %s26, 15
      %p84 = por %p82, %p83
      %p86 = scmp.ne.s32.totalorder %s71, %s85
      %p87 = scmp.eq.s32.totalorder %s26, 0
      %p88 = por %p86, %p87
      %s90 = sadd.s32 %s89, 1
      %p93 = scmp.eq.s32.totalorder %s20, 15
      %p94 = scmp.ne.s32.totalorder %s89, %s91
      %p95 = scmp.eq.s32.totalorder %s20, 0
      %p96 = por %p94, %p95
      %p97 = scmp.ne.s32.totalorder %s89, %s91
      %p98 = scmp.eq.s32.totalorder %s25, 15
      %p99 = por %p97, %p98
      %p100 = scmp.ne.s32.totalorder %s91, %s92
      %p101 = scmp.eq.s32.totalorder %s25, 0
      %p102 = por %p100, %p101
      %p103 = scmp.ne.s32.totalorder %s91, %s92
      %p104 = scmp.eq.s32.totalorder %s26, 15
      %p105 = por %p103, %p104
      %p107 = scmp.ne.s32.totalorder %s92, %s106
      %p108 = scmp.eq.s32.totalorder %s26, 0
      %p109 = por %p107, %p108
      %s110 = ssub.s32 %s27, %s39
      %s111 = ssub.s32 %s28, %s35
      %s112 = sor.u32 %s110, %s111
      %p113 = scmp.eq.s32.totalorder %s112, 0
      %s115 = sadd.s32 %s114, 1
      %s116 = scalar_select %p113, %s114, %s115
      %p119 = pneg %p113
      %p120 = scmp.eq.s32.totalorder %s20, 15
      %p121 = por %p119, %p120
      %p122 = scmp.ne.s32.totalorder %s114, %s117
      %p123 = scmp.eq.s32.totalorder %s20, 0
      %p124 = por %p122, %p123
      %p125 = scmp.ne.s32.totalorder %s114, %s117
      %p126 = scmp.eq.s32.totalorder %s25, 15
      %p127 = por %p125, %p126
      %p128 = scmp.ne.s32.totalorder %s117, %s118
      %p129 = scmp.eq.s32.totalorder %s25, 0
      %p130 = por %p128, %p129
      %p131 = scmp.ne.s32.totalorder %s117, %s118
      %p132 = scmp.eq.s32.totalorder %s26, 15
      %p133 = por %p131, %p132
      %p135 = scmp.ne.s32.totalorder %s118, %s134
      %p136 = scmp.eq.s32.totalorder %s26, 0
      %p137 = por %p135, %p136
      %s138 = ssub.s32 %s27, %s39
      %s139 = ssub.s32 %s28, %s35
      %s140 = sor.u32 %s138, %s139
      %p141 = scmp.eq.s32.totalorder %s140, 0
      %s143 = sadd.s32 %s142, 1
      %s144 = scalar_select %p141, %s142, %s143
      %p147 = pneg %p141
      %p148 = scmp.eq.s32.totalorder %s20, 15
      %p149 = por %p147, %p148
      %p150 = scmp.ne.s32.totalorder %s142, %s145
      %p151 = scmp.eq.s32.totalorder %s20, 0
      %p152 = por %p150, %p151
      %p153 = scmp.ne.s32.totalorder %s142, %s145
      %p154 = scmp.eq.s32.totalorder %s25, 15
      %p155 = por %p153, %p154
      %p156 = scmp.ne.s32.totalorder %s145, %s146
      %p157 = scmp.eq.s32.totalorder %s25, 0
      %p158 = por %p156, %p157
      %p159 = scmp.ne.s32.totalorder %s145, %s146
      %p160 = scmp.eq.s32.totalorder %s26, 15
      %p161 = por %p159, %p160
      %p163 = scmp.ne.s32.totalorder %s146, %s162
      %p164 = scmp.eq.s32.totalorder %s26, 0
      %p165 = por %p163, %p164
      %p166 = scmp.le.s32.totalorder 1, %s20
      %p167 = scmp.lt.s32.totalorder %s20, 17
      %p168 = pnand %p166, %p167
      %p169 = pneg %p168
      // Predicated region
      $region9: #{basic_block_forward.7} parent=5 // pred_check
        _
      $region10: #{basic_block_forward.7} parent=5 // pred_check_branch
        %171 = sbr.rel (%p168) target = $region12
      $region11: #{basic_block_forward.7} parent=5 // pred_region
        %s172 = ssub.s32 %s20, 1
        // Predicated region
        $region13: #{basic_block_forward.7} parent=11 // pred_check
          %p173 = pneg %p81
        $region14: #{basic_block_forward.7} parent=11 // pred_check_branch
          %175 = sbr.rel (%p173) target = $region16
        $region15: #{basic_block_forward.7} parent=11 // pred_region
          %s177 = ssub.s32 16, 16
          %178 = vsyncadd [#allocation6], %s177
          %s180 = sshll.u32 [#allocation5], 4
          %s181 = int_to_ptr.vmem [resolvable:$true] %s180
          %183 = dma.hbm_to_vmem [thread:$0]  %s1, 16, %s181, [#allocation6]
        $region16: #{basic_block_forward.7} parent=11 // pred_fallthru
          _
        // Predicated region
        $region17: #{basic_block_forward.7} parent=11 // pred_check
          %p184 = pneg %p102
        $region18: #{basic_block_forward.7} parent=11 // pred_check_branch
          %186 = sbr.rel (%p184) target = $region20
        $region19: #{basic_block_forward.7} parent=11 // pred_region
          %s188 = ssub.s32 16, 16
          %189 = vsyncadd [#allocation6], %s188
          %s191 = sshll.u32 [#allocation7], 4
          %s192 = int_to_ptr.vmem [resolvable:$true] %s191
          %194 = dma.hbm_to_vmem [thread:$0]  %s2, 16, %s192, [#allocation6]
        $region20: #{basic_block_forward.7} parent=11 // pred_fallthru
          _
      $region12: #{basic_block_forward.7} parent=5 // pred_fallthru
        _
      %p195 = scmp.lt.s32.totalorder %s20, 16
      // Predicated region
      $region21: #{basic_block_forward.7} parent=5 // pred_check
        %p196 = pneg %p195
      $region22: #{basic_block_forward.7} parent=5 // pred_check_branch
        %198 = sbr.rel (%p196) target = $region24
      $region23: #{basic_block_forward.7} parent=5 // pred_region
        // Predicated region
        $region25: #{basic_block_forward.7} parent=23 // pred_check
          %p199 = pneg %p54
        $region26: #{basic_block_forward.7} parent=23 // pred_check_branch
          %201 = sbr.rel (%p199) target = $region28
        $region27: #{basic_block_forward.7} parent=23 // pred_region
          %s202 = sand.u32 %s44, 1
          %s203 = scalar_lea.sflag [#allocation3], %s202
          %s204 = sand.u32 %s44, 1
          %s205 = smul.addr %s204, 40
          %s206 = scalar_lea.vmem [#allocation2], %s205
          %s208 = ssub.s32 640, 640
          %209 = vsyncadd %s203, %s208
          %s210 = smul.addr %s28, 10
          %s211 = smul.addr %s27, 80
          %s212 = sadd.s32 %s210, %s211
          %s213 = smul.addr %s212, 64
          %s214 = scalar_lea.hbm %s0, %s213
          %s215 = sshll.u32 %s206, 4
          %s216 = int_to_ptr.vmem [resolvable:$true] %s215
          %221 = dma.hbm_to_vmem [thread:$0]  %s214, 640, %s216, %s203, 64, 64, 4
        $region28: #{basic_block_forward.7} parent=23 // pred_fallthru
          _
        // Predicated region
        $region29: #{basic_block_forward.7} parent=23 // pred_check
          %p222 = pneg %p124
        $region30: #{basic_block_forward.7} parent=23 // pred_check_branch
          %224 = sbr.rel (%p222) target = $region32
        $region31: #{basic_block_forward.7} parent=23 // pred_region
          %s225 = sand.u32 %s114, 1
          %s226 = scalar_lea.sflag [#allocation9], %s225
          %s227 = sand.u32 %s114, 1
          %s228 = smul.addr %s227, 40
          %s229 = scalar_lea.vmem [#allocation8], %s228
          %s231 = ssub.s32 640, 640
          %232 = vsyncadd %s226, %s231
          %s233 = smul.addr %s28, 10
          %s234 = smul.addr %s27, 80
          %s235 = sadd.s32 %s233, %s234
          %s236 = smul.addr %s235, 64
          %s237 = scalar_lea.hbm %s3, %s236
          %s238 = sshll.u32 %s229, 4
          %s239 = int_to_ptr.vmem [resolvable:$true] %s238
          %244 = dma.hbm_to_vmem [thread:$0]  %s237, 640, %s239, %s226, 64, 64, 4
        $region32: #{basic_block_forward.7} parent=23 // pred_fallthru
          _
      $region24: #{basic_block_forward.7} parent=5 // pred_fallthru
        _
      %p245 = scmp.le.s32.totalorder 1, %s20
      %p246 = scmp.lt.s32.totalorder %s20, 17
      %p247 = pnand %p245, %p246
      %p248 = pneg %p247
      // Predicated region
      $region33: #{basic_block_forward.7} parent=5 // pred_check
        _
      $region34: #{basic_block_forward.7} parent=5 // pred_check_branch
        %250 = sbr.rel (%p247) target = $region36
      $region35: #{basic_block_forward.7} parent=5 // pred_region
        %s251 = ssub.s32 %s20, 1
        %s252 = sand.u32 %s47, 1
        %s253 = scalar_lea.sflag [#allocation3], %s252
        %s254 = sand.u32 %s47, 1
        %s255 = smul.addr %s254, 40
        %s256 = scalar_lea.vmem [#allocation2], %s255
        // Predicated region
        $region37: #{basic_block_forward.7} parent=35 // pred_check
          %p257 = pneg %p60
        $region38: #{basic_block_forward.7} parent=35 // pred_check_branch
          %259 = sbr.rel (%p257) target = $region40
        $region39: #{basic_block_forward.7} parent=35 // pred_region
          %260 = dma.done %s253, 640
        $region40: #{basic_block_forward.7} parent=35 // pred_fallthru
          _
        // Predicated region
        $region41: #{basic_block_forward.7} parent=35 // pred_check
          %p261 = pneg %p81
        $region42: #{basic_block_forward.7} parent=35 // pred_check_branch
          %263 = sbr.rel (%p261) target = $region44
        $region43: #{basic_block_forward.7} parent=35 // pred_region
          %264 = dma.done [#allocation6], 16
        $region44: #{basic_block_forward.7} parent=35 // pred_fallthru
          _
        // Predicated region
        $region45: #{basic_block_forward.7} parent=35 // pred_check
          %p265 = pneg %p102
        $region46: #{basic_block_forward.7} parent=35 // pred_check_branch
          %267 = sbr.rel (%p265) target = $region48
        $region47: #{basic_block_forward.7} parent=35 // pred_region
          %268 = dma.done [#allocation6], 16
        $region48: #{basic_block_forward.7} parent=35 // pred_fallthru
          _
        %s269 = sand.u32 %s117, 1
        %s270 = scalar_lea.sflag [#allocation9], %s269
        %s271 = sand.u32 %s117, 1
        %s272 = smul.addr %s271, 40
        %s273 = scalar_lea.vmem [#allocation8], %s272
        // Predicated region
        $region49: #{basic_block_forward.7} parent=35 // pred_check
          %p274 = pneg %p130
        $region50: #{basic_block_forward.7} parent=35 // pred_check_branch
          %276 = sbr.rel (%p274) target = $region52
        $region51: #{basic_block_forward.7} parent=35 // pred_region
          %277 = dma.done %s270, 640
        $region52: #{basic_block_forward.7} parent=35 // pred_fallthru
          _
        %s278 = sand.u32 %s47, 1
        %s279 = scalar_lea.sflag [#allocation3], %s278
        %s280 = sand.u32 %s47, 1
        %s281 = smul.addr %s280, 40
        %s282 = scalar_lea.vmem [#allocation2], %s281
        %p283 = pneg %p60
        %p284 = pneg %p57
        %p285 = pneg %p81
        %p286 = pneg %p78
        %p287 = pneg %p102
        %p288 = pneg %p99
        %s289 = sand.u32 %s117, 1
        %s290 = scalar_lea.sflag [#allocation9], %s289
        %s291 = sand.u32 %s117, 1
        %s292 = smul.addr %s291, 40
        %s293 = scalar_lea.vmem [#allocation8], %s292
        %p294 = pneg %p130
        %p295 = pneg %p127
        %p296 = pneg %p158
        %p297 = pneg %p155
        %s298 = sand.u32 %s145, 1
        %s299 = scalar_lea.sflag [#allocation4], %s298
        %s300 = sand.u32 %s145, 1
        %s301 = smul.addr %s300, 80
        %s302 = scalar_lea.vmem [#allocation10], %s301
        %v303 = vld [vmem:[%s256] sm:$0xf]
        %v304 = vld [vmem:[%s256 + $0x4] sm:$0xf]
        %v305 = vld [vmem:[%s256 + $0x8] sm:$0xf]
        %v306 = vld [vmem:[%s256 + $0xc] sm:$0xf]
        %v307 = vld [vmem:[%s256 + $0x10] sm:$0xf]
        %v308 = vld [vmem:[%s256 + $0x14] sm:$0xf]
        %v309 = vld [vmem:[%s256 + $0x18] sm:$0xf]
        %v310 = vld [vmem:[%s256 + $0x1c] sm:$0xf]
        %v311 = vld [vmem:[%s256 + $0x20] sm:$0xf]
        %v312 = vld [vmem:[%s256 + $0x24] sm:$0xf]
        %v313 = vunpack.c.l.bf16 %v303
        %v314 = vunpack.c.l.bf16 %v304
        %v315 = vunpack.c.l.bf16 %v305
        %v316 = vunpack.c.l.bf16 %v306
        %v317 = vunpack.c.l.bf16 %v307
        %v318 = vunpack.c.l.bf16 %v308
        %v319 = vunpack.c.l.bf16 %v309
        %v320 = vunpack.c.l.bf16 %v310
        %v321 = vunpack.c.l.bf16 %v311
        %v322 = vunpack.c.l.bf16 %v312
        %v323 = vld [vmem:[#allocation5] sm:$0x1]
        %v325 = vlaneseq
        %v326 = vshrl.u32 %v325, 7
        %v327 = vsub.s32 0, %v326
        %v328 = vrot.slane %v323, %v327
        %v330 = vmul.f32 %v313, %v328
        %v331 = vmul.f32 %v314, %v328
        %v332 = vmul.f32 %v315, %v328
        %v333 = vmul.f32 %v316, %v328
        %v334 = vmul.f32 %v317, %v328
        %v335 = vmul.f32 %v318, %v328
        %v336 = vmul.f32 %v319, %v328
        %v337 = vmul.f32 %v320, %v328
        %v338 = vmul.f32 %v321, %v328
        %v339 = vmul.f32 %v322, %v328
        %v340 = vld [vmem:[#allocation7] sm:$0x1]
        %v342 = vlaneseq
        %v343 = vshrl.u32 %v342, 7
        %v344 = vsub.s32 0, %v343
        %v345 = vrot.slane %v340, %v344
        %v347 = vadd.f32 %v330, %v345
        %v348 = vadd.f32 %v331, %v345
        %v349 = vadd.f32 %v332, %v345
        %v350 = vadd.f32 %v333, %v345
        %v351 = vadd.f32 %v334, %v345
        %v352 = vadd.f32 %v335, %v345
        %v353 = vadd.f32 %v336, %v345
        %v354 = vadd.f32 %v337, %v345
        %v355 = vadd.f32 %v338, %v345
        %v356 = vadd.f32 %v339, %v345
        %v357 = vld [vmem:[%s273] sm:$0xf]
        %v358 = vld [vmem:[%s273 + $0x4] sm:$0xf]
        %v359 = vld [vmem:[%s273 + $0x8] sm:$0xf]
        %v360 = vld [vmem:[%s273 + $0xc] sm:$0xf]
        %v361 = vld [vmem:[%s273 + $0x10] sm:$0xf]
        %v362 = vld [vmem:[%s273 + $0x14] sm:$0xf]
        %v363 = vld [vmem:[%s273 + $0x18] sm:$0xf]
        %v364 = vld [vmem:[%s273 + $0x1c] sm:$0xf]
        %v365 = vld [vmem:[%s273 + $0x20] sm:$0xf]
        %v366 = vld [vmem:[%s273 + $0x24] sm:$0xf]
        %v367 = vunpack.c.l.bf16 %v357
        %v368 = vunpack.c.l.bf16 %v358
        %v369 = vunpack.c.l.bf16 %v359
        %v370 = vunpack.c.l.bf16 %v360
        %v371 = vunpack.c.l.bf16 %v361
        %v372 = vunpack.c.l.bf16 %v362
        %v373 = vunpack.c.l.bf16 %v363
        %v374 = vunpack.c.l.bf16 %v364
        %v375 = vunpack.c.l.bf16 %v365
        %v376 = vunpack.c.l.bf16 %v366
        %v377 = vadd.f32 %v347, %v367
        %v378 = vadd.f32 %v348, %v368
        %v379 = vadd.f32 %v349, %v369
        %v380 = vadd.f32 %v350, %v370
        %v381 = vadd.f32 %v351, %v371
        %v382 = vadd.f32 %v352, %v372
        %v383 = vadd.f32 %v353, %v373
        %v384 = vadd.f32 %v354, %v374
        %v385 = vadd.f32 %v355, %v375
        %v386 = vadd.f32 %v356, %v376
        %v387 = vmax.f32 %v377, 0.0
        %v388 = vmax.f32 %v378, 0.0
        %v389 = vmax.f32 %v379, 0.0
        %v390 = vmax.f32 %v380, 0.0
        %v391 = vmax.f32 %v381, 0.0
        %v392 = vmax.f32 %v382, 0.0
        %v393 = vmax.f32 %v383, 0.0
        %v394 = vmax.f32 %v384, 0.0
        %v395 = vmax.f32 %v385, 0.0
        %v396 = vmax.f32 %v386, 0.0
        %397 = vst [vmem:[%s302] sm:$0xff] %v387
        %398 = vst [vmem:[%s302 + $0x8] sm:$0xff] %v388
        %399 = vst [vmem:[%s302 + $0x10] sm:$0xff] %v389
        %400 = vst [vmem:[%s302 + $0x18] sm:$0xff] %v390
        %401 = vst [vmem:[%s302 + $0x20] sm:$0xff] %v391
        %402 = vst [vmem:[%s302 + $0x28] sm:$0xff] %v392
        %403 = vst [vmem:[%s302 + $0x30] sm:$0xff] %v393
        %404 = vst [vmem:[%s302 + $0x38] sm:$0xff] %v394
        %405 = vst [vmem:[%s302 + $0x40] sm:$0xff] %v395
        %406 = vst [vmem:[%s302 + $0x48] sm:$0xff] %v396
        %s407 = sand.u32 %s145, 1
        %s408 = scalar_lea.sflag [#allocation4], %s407
        %s409 = sand.u32 %s145, 1
        %s410 = smul.addr %s409, 80
        %s411 = scalar_lea.vmem [#allocation10], %s410
        // Predicated region
        $region53: #{basic_block_forward.7} parent=35 // pred_check
          %p412 = pneg %p155
        $region54: #{basic_block_forward.7} parent=35 // pred_check_branch
          %414 = sbr.rel (%p412) target = $region56
        $region55: #{basic_block_forward.7} parent=35 // pred_region
          %s416 = ssub.s32 1280, 1280
          %417 = vsyncadd %s408, %s416
          %s418 = smul.addr %s30, 10
          %s419 = smul.addr %s29, 80
          %s420 = sadd.s32 %s418, %s419
          %s421 = smul.addr %s420, 128
          %s422 = scalar_lea.hbm %s4, %s421
          %s423 = sshll.u32 %s411, 4
          %s424 = int_to_ptr.vmem [resolvable:$true] %s423
          %429 = dma.vmem_to_hbm [thread:$0]  %s424, 1280, %s422, %s408, 128, 128, 8
        $region56: #{basic_block_forward.7} parent=35 // pred_fallthru
          _
      $region36: #{basic_block_forward.7} parent=5 // pred_fallthru
        _
      %p430 = scmp.le.s32.totalorder 2, %s20
      // Predicated region
      $region57: #{basic_block_forward.7} parent=5 // pred_check
        %p431 = pneg %p430
      $region58: #{basic_block_forward.7} parent=5 // pred_check_branch
        %433 = sbr.rel (%p431) target = $region60
      $region59: #{basic_block_forward.7} parent=5 // pred_region
        %s434 = ssub.s32 %s20, 2
        // Predicated region
        $region61: #{basic_block_forward.7} parent=59 // pred_check
          %p435 = pneg %p161
        $region62: #{basic_block_forward.7} parent=59 // pred_check_branch
          %437 = sbr.rel (%p435) target = $region64
        $region63: #{basic_block_forward.7} parent=59 // pred_region
          %s438 = sand.u32 %s146, 1
          %s439 = scalar_lea.sflag [#allocation4], %s438
          %s440 = sand.u32 %s146, 1
          %s441 = smul.addr %s440, 80
          %s442 = scalar_lea.vmem [#allocation10], %s441
          %443 = dma.done %s439, 1280
        $region64: #{basic_block_forward.7} parent=59 // pred_fallthru
          _
      $region60: #{basic_block_forward.7} parent=5 // pred_fallthru
        _
    $region6: #{basic_block_forward.7} parent=1 // loop_footer
      %s24 = sadd.s32 1, %s20
    $region7: #{basic_block_forward.7} parent=1 // loop_footer_branch
      %19 = sbr.rel target = $region3
    $region8: #{basic_block_forward.7} parent=1 // loop_exit
      _
    %444 = vsyncpa [#allocation3], 1
    %s445 = scalar_lea.sflag [#allocation3], 1
    %446 = vsyncpa %s445, 1
    %447 = vsyncpa [#allocation6], 1
    %448 = vsyncpa [#allocation9], 1
    %s449 = scalar_lea.sflag [#allocation9], 1
    %450 = vsyncpa %s449, 1
    %451 = vsyncpa [#allocation4], 1
    %s452 = scalar_lea.sflag [#allocation4], 1
    %453 = vsyncpa %s452, 1

</llo_original>
